<compile_context>
chip_gen: v5e
topology: v5e:2x2
jax: 0.10.0
libtpu: 0.0.40
codegen_flags: <defaults>
</compile_context>

<pallas_src>
import functools
import math

import jax
import jax.numpy as jnp
from jax.experimental import pallas as pl
from jax.experimental.pallas import tpu as pltpu

_MIB = 1024 * 1024
_HEADROOM_BYTES = 2 * _MIB


# -----------------------------------------------------------------------------
# Small helpers (tile rounding / VMEM budgeting)
# -----------------------------------------------------------------------------
def _round_up(x, m):
    return -(-x // m) * m


def _padded_bytes(shape, dtype):
    s = list(shape)
    s[-1] = _round_up(s[-1], 128)
    if len(s) >= 2:
        s[-2] = _round_up(s[-2], 8)
    return math.prod(s) * jnp.dtype(dtype).itemsize


def _vmem_bytes(entries):
    """entries: iterable of (shape, dtype, n_buffers)."""
    return sum(n * _padded_bytes(shape, dt) for shape, dt, n in entries)


def _tpu_vmem_capacity_bytes():
    try:
        return int(pltpu.get_tpu_info().vmem_capacity_bytes)
    except Exception:
        return 128 * _MIB  # v5e/v6e default; only used as a cap on vmem_limit_bytes


# -----------------------------------------------------------------------------
# Kernel 1: attention (online softmax over L tiles) + LSTM cell.
# -----------------------------------------------------------------------------
def _attn_lstm_kernel(
    x_ref,        # (TB, E)       embedded token
    h0_ref,       # (TB, H)
    c0_ref,       # (TB, H)
    enc_ref,      # (TB, TL, 2H)  one L-tile of encoder outputs
    attn_wh_ref,  # (H, H)        attn rows hit by the hidden state
    attn_we_ref,  # (2H, H)       attn rows hit by encoder outputs
    attn_b_ref,   # (1, H)
    v_ref,        # (1, H)        v as a row vector
    w_ctx_hbm,    # (2H, 4H)      HBM (memory_space=pl.ANY): LSTM w_ih (context rows)
    w_x_hbm,      # (E, 4H)       HBM: LSTM w_ih (token rows)
    w_hh_hbm,     # (H, 4H)       HBM
    b_hbm,        # (1, 4H)       HBM: b_ih + b_hh pre-summed
    h_out_ref,    # (TB, H)
    c_out_ref,    # (TB, H)
    hterm_sc,     # (TB, H)  f32  h0 @ attn_wh + attn_b (L-invariant)
    m_sc,         # (TB, 1)  f32  running softmax max
    l_sc,         # (TB, 1)  f32  running softmax denom
    ctx_sc,       # (TB, 2H) f32  unnormalized context accumulator
    w_ctx_vmem,   # (2H, 4H)      VMEM landing buffers for the LSTM weights
    w_x_vmem,     # (E, 4H)
    w_hh_vmem,    # (H, 4H)
    b_vmem,       # (1, 4H)
    dma_sem,      # DMA semaphores (4,)
    *, seq_len, block_l, num_l_tiles,
):
    f32 = jnp.float32
    adt = attn_we_ref.dtype            # attention MXU operand dtype (f32 or bf16)
    ldt = w_ctx_vmem.dtype             # LSTM MXU operand dtype
    l_idx = pl.program_id(1)

    TB, TL, twoH = enc_ref.shape
    H = h0_ref.shape[1]

    def lstm_weight_copies():
        return (
            pltpu.make_async_copy(w_ctx_hbm, w_ctx_vmem, dma_sem.at[0]),
            pltpu.make_async_copy(w_x_hbm, w_x_vmem, dma_sem.at[1]),
            pltpu.make_async_copy(w_hh_hbm, w_hh_vmem, dma_sem.at[2]),
            pltpu.make_async_copy(b_hbm, b_vmem, dma_sem.at[3]),
        )

    # ---- first L tile: init online-softmax state and the L-invariant hidden term.
    @pl.when(l_idx == 0)
    def _init():
        hterm_sc[...] = (
            jnp.dot(h0_ref[...].astype(adt), attn_wh_ref[...],
                    preferred_element_type=f32)
            + attn_b_ref[...].astype(f32)
        )
        m_sc[...] = jnp.full(m_sc.shape, -jnp.inf, f32)
        l_sc[...] = jnp.zeros(l_sc.shape, f32)
        ctx_sc[...] = jnp.zeros(ctx_sc.shape, f32)

    # ---- LSTM weights are only read by the last L tile: start their HBM->VMEM DMA
    #      one tile early so it overlaps the final attention tile.
    @pl.when(l_idx == max(num_l_tiles - 2, 0))
    def _prefetch_lstm_weights():
        for cp in lstm_weight_copies():
            cp.start()

    # ---- attention energies for this L tile (split matmul; no (B,L,3H) concat).
    enc_t = enc_ref[...]                                        # (TB, TL, 2H)
    enc2d = enc_t.reshape(TB * TL, twoH).astype(adt)
    e2d = jnp.dot(enc2d, attn_we_ref[...], preferred_element_type=f32)
    energy = jnp.maximum(
        e2d.reshape(TB, TL, H) + hterm_sc[...][:, None, :], 0.0)  # (TB, TL, H) f32

    # scores = energy . v  as VPU multiply + lane (XLU) reduction -> (TB, TL).
    v_row = v_ref[...].astype(f32)                               # (1, H)
    scores = jnp.sum(energy * v_row[None, :, :], axis=-1)        # (TB, TL)

    # mask synthetic L padding (only the last tile can contain it).
    pos = l_idx * block_l + jax.lax.broadcasted_iota(jnp.int32, scores.shape, 1)
    scores = jnp.where(pos < seq_len, scores, -jnp.inf)

    # ---- online softmax + context accumulation over L tiles.
    m_prev = m_sc[...]
    m_new = jnp.maximum(m_prev, jnp.max(scores, axis=-1, keepdims=True))
    alpha = jnp.exp(m_prev - m_new)                              # (TB, 1)
    p = jnp.exp(scores - m_new)                                  # (TB, TL)
    l_sc[...] = alpha * l_sc[...] + jnp.sum(p, axis=-1, keepdims=True)
    # TODO(synk): if a bundle dump shows VALU/XLU as the binding slot here, switch to
    #             jnp.einsum('bl,blk->bk', p, enc_t) to use the otherwise-idle MXU.
    ctx_sc[...] = alpha * ctx_sc[...] + jnp.sum(p[:, :, None] * enc_t.astype(f32), axis=1)
    m_sc[...] = m_new

    # ---- last L tile: normalize context, run the LSTM cell, emit new state.
    @pl.when(l_idx == num_l_tiles - 1)
    def _finish():
        for cp in lstm_weight_copies():
            cp.wait()

        inv_l = pl.reciprocal(l_sc[...], approx=True)            # EUP slot
        context = ctx_sc[...] * inv_l                            # (TB, 2H) f32

        gates = (
            jnp.dot(context.astype(ldt), w_ctx_vmem[...], preferred_element_type=f32)
            + jnp.dot(x_ref[...].astype(ldt), w_x_vmem[...], preferred_element_type=f32)
            + jnp.dot(h0_ref[...].astype(ldt), w_hh_vmem[...], preferred_element_type=f32)
            + b_vmem[...].astype(f32)
        )                                                        # (TB, 4H)

        # PyTorch gate order: i, f, g, o  (activations stay f32 — v5e-safe).
        i_g = jax.nn.sigmoid(gates[:, 0 * H:1 * H])
        f_g = jax.nn.sigmoid(gates[:, 1 * H:2 * H])
        g_g = jnp.tanh(gates[:, 2 * H:3 * H])
        o_g = jax.nn.sigmoid(gates[:, 3 * H:4 * H])

        c0 = c0_ref[...].astype(f32)
        c_new = f_g * c0 + i_g * g_g
        h_new = o_g * jnp.tanh(c_new)

        h_out_ref[...] = h_new.astype(h_out_ref.dtype)
        c_out_ref[...] = c_new.astype(c_out_ref.dtype)


# -----------------------------------------------------------------------------
# Kernel 2: output projection (fc), tiled over the vocab axis.
# -----------------------------------------------------------------------------
def _fc_kernel(h_ref, w_ref, b_ref, out_ref):
    wdt = w_ref.dtype
    out_ref[...] = (
        jnp.dot(h_ref[...].astype(wdt), w_ref[...], preferred_element_type=jnp.float32)
        + b_ref[...].astype(jnp.float32)
    ).astype(out_ref.dtype)


# -----------------------------------------------------------------------------
# Wrapper (glue: embedding gather, layer-dim squeeze/unsqueeze, two pallas_calls)
# -----------------------------------------------------------------------------
@functools.partial(jax.jit, static_argnames=("tl", "tn", "tb", "single_buffer_consts"))
def lstm_decoder_attention(x_ids, h0_c0, encoder_outputs, params,
                           tl=None, tn=None, tb=None, single_buffer_consts=True):
    """Mirrors LSTMdecoderAttention.forward with num_layers=1, unidirectional.

    x_ids:            (B,) int32 token ids
    h0_c0:            tuple of (1, B, H) float32 arrays (h0, c0)
    encoder_outputs:  (B, L, 2H)
    returns (out (B,1,V), (hidden (1,B,H), cell (1,B,H)))
    """
    f32 = jnp.float32
    sbc = bool(single_buffer_consts)

    h0_full, c0_full = h0_c0
    h0 = h0_full[0]                                              # (B, H)
    c0 = c0_full[0]                                              # (B, H)

    B, L, twoH = encoder_outputs.shape
    H = h0.shape[-1]
    E = params["embedding"].shape[1]
    V = params["fc_w"].shape[1]

    # embedding lookup (padding_idx=0 handled by zeroed row 0 at init)
    x_emb = jnp.take(params["embedding"], x_ids, axis=0)         # (B, E)

    vmem_phys = _tpu_vmem_capacity_bytes()
    vmem_cap = int(0.85 * vmem_phys)          # leave room for Mosaic internals/semaphores
    big_vmem = vmem_phys >= 100 * _MIB        # v5e/v6e (128 MiB) vs v7x (64 MiB)

    # ---- batch tile: leading "parallel" axis (lets v7x shard across its 2 TCs).
    if tb is not None and B % tb == 0 and (tb == B or tb % 8 == 0):
        TB = tb
    elif B % 16 == 0:
        TB = B // 2
    else:
        TB = B

    # ---- L tile (online-softmax reduction axis; padded + masked if L % TL != 0).
    TL = tl if tl is not None else min(512, _round_up(L, 8))
    TL = max(8, _round_up(TL, 8))

    lstm_wdt = params["w_ih_ctx"].dtype
    bias_dt = params["b"].dtype
    attn_wdt = params["attn_we"].dtype
    n_const = 1 if sbc else 2

    def k1_entries(tl_):
        return [
            # pipelined inputs / outputs
            ((TB, E), x_emb.dtype, 2), ((TB, H), h0.dtype, 2), ((TB, H), c0.dtype, 2),
            ((TB, tl_, twoH), encoder_outputs.dtype, 2),
            ((H, H), params["attn_wh"].dtype, n_const), ((twoH, H), attn_wdt, n_const),
            ((1, H), params["attn_b"].dtype, n_const), ((1, H), params["v"].dtype, n_const),
            ((TB, H), f32, 2), ((TB, H), f32, 2),
            # persistent scratch (single-buffered)
            ((TB, H), f32, 1), ((TB, 1), f32, 1), ((TB, 1), f32, 1), ((TB, twoH), f32, 1),
            ((twoH, 4 * H), lstm_wdt, 1), ((E, 4 * H), lstm_wdt, 1),
            ((H, 4 * H), lstm_wdt, 1), ((1, 4 * H), bias_dt, 1),
            # kernel-body temporaries (energy / e2d / cast enc / probs / gates)
            ((TB * tl_, H), f32, 2), ((TB * tl_, twoH), attn_wdt, 1),
            ((TB, tl_), f32, 2), ((TB, 4 * H), f32, 2),
        ]

    if tl is None:  # clamp TL so the whole footprint fits the per-chip budget
        while TL > 8 and _vmem_bytes(k1_entries(TL)) + _HEADROOM_BYTES > vmem_cap:
            TL = max(8, _round_up(TL // 2, 8))

    num_l = pl.cdiv(L, TL)
    L_pad = num_l * TL
    enc_in = encoder_outputs if L_pad == L else jnp.pad(
        encoder_outputs, ((0, 0), (0, L_pad - L), (0, 0)))

    vmem_1 = int(min(max(_vmem_bytes(k1_entries(TL)) + _HEADROOM_BYTES, 8 * _MIB),
                     vmem_cap))

    def const_spec(shape, index_map):
        # grid-constant blocks: single buffer (halves their VMEM footprint).
        if sbc:
            return pl.BlockSpec(shape, index_map,
                                pipeline_mode=pl.Buffered(buffer_count=1))
        return pl.BlockSpec(shape, index_map)

    in_specs_1 = [
        pl.BlockSpec((TB, E), lambda b, l: (b, 0)),              # x_emb
        pl.BlockSpec((TB, H), lambda b, l: (b, 0)),              # h0
        pl.BlockSpec((TB, H), lambda b, l: (b, 0)),              # c0
        pl.BlockSpec((TB, TL, twoH), lambda b, l: (b, l, 0)),    # enc (tiled over L)
        const_spec((H, H), lambda b, l: (0, 0)),                 # attn_wh (grid-constant)
        const_spec((twoH, H), lambda b, l: (0, 0)),              # attn_we (grid-constant)
        const_spec((1, H), lambda b, l: (0, 0)),                 # attn_b
        const_spec((1, H), lambda b, l: (0, 0)),                 # v
        pl.BlockSpec(memory_space=pl.ANY),                       # w_ih_ctx (manual DMA)
        pl.BlockSpec(memory_space=pl.ANY),                       # w_ih_x   (manual DMA)
        pl.BlockSpec(memory_space=pl.ANY),                       # w_hh     (manual DMA)
        pl.BlockSpec(memory_space=pl.ANY),                       # b = b_ih + b_hh
    ]
    out_specs_1 = (
        pl.BlockSpec((TB, H), lambda b, l: (b, 0)),
        pl.BlockSpec((TB, H), lambda b, l: (b, 0)),
    )
    scratch_1 = [
        pltpu.VMEM((TB, H), f32),                # hterm
        pltpu.VMEM((TB, 1), f32),                # running max
        pltpu.VMEM((TB, 1), f32),                # running denom
        pltpu.VMEM((TB, twoH), f32),             # context accumulator
        pltpu.VMEM((twoH, 4 * H), lstm_wdt),     # LSTM weight landing buffers
        pltpu.VMEM((E, 4 * H), lstm_wdt),
        pltpu.VMEM((H, 4 * H), lstm_wdt),
        pltpu.VMEM((1, 4 * H), bias_dt),
        pltpu.SemaphoreType.DMA((4,)),
    ]

    kernel1 = functools.partial(_attn_lstm_kernel,
                                seq_len=L, block_l=TL, num_l_tiles=num_l)

    h_new, c_new = pl.pallas_call(
        kernel1,
        out_shape=(jax.ShapeDtypeStruct((B, H), f32),
                   jax.ShapeDtypeStruct((B, H), f32)),
        grid_spec=pltpu.PrefetchScalarGridSpec(
            num_scalar_prefetch=0,
            grid=(B // TB, num_l),
            in_specs=in_specs_1,
            out_specs=out_specs_1,
            scratch_shapes=scratch_1),
        compiler_params=pltpu.CompilerParams(
            dimension_semantics=("parallel", "arbitrary"),
            vmem_limit_bytes=vmem_1),
    )(x_emb, h0, c0, enc_in,
      params["attn_wh"], params["attn_we"], params["attn_b"], params["v"],
      params["w_ih_ctx"], params["w_ih_x"], params["w_hh"], params["b"])

    # ------------------ kernel 2: fc projection, tiled (and padded) over V ----------
    fc_w, fc_b = params["fc_w"], params["fc_b"]
    max_tn = 8192 if big_vmem else 2048          # bigger streaming tiles on v5e/v6e
    TN = tn if tn is not None else min(max_tn, _round_up(V, 128))
    TN = max(128, _round_up(TN, 128))

    def k2_entries(tn_):
        return [((B, H), f32, n_const), ((H, tn_), fc_w.dtype, 2),
                ((1, tn_), fc_b.dtype, 2), ((B, tn_), f32, 2), ((B, tn_), f32, 1)]

    if tn is None:
        while TN > 128 and _vmem_bytes(k2_entries(TN)) + _HEADROOM_BYTES > vmem_cap:
            TN = max(128, _round_up(TN // 2, 128))

    num_v = pl.cdiv(V, TN)
    V_pad = num_v * TN
    if V_pad != V:
        fc_w = jnp.pad(fc_w, ((0, 0), (0, V_pad - V)))
        fc_b = jnp.pad(fc_b, ((0, 0), (0, V_pad - V)))

    vmem_2 = int(min(max(_vmem_bytes(k2_entries(TN)) + _HEADROOM_BYTES, 8 * _MIB),
                     vmem_cap))

    logits = pl.pallas_call(
        _fc_kernel,
        out_shape=jax.ShapeDtypeStruct((B, V_pad), f32),
        grid_spec=pltpu.PrefetchScalarGridSpec(
            num_scalar_prefetch=0,
            grid=(num_v,),
            in_specs=[const_spec((B, H), lambda j: (0, 0)),
                      pl.BlockSpec((H, TN), lambda j: (0, j)),
                      pl.BlockSpec((1, TN), lambda j: (0, j))],
            out_specs=pl.BlockSpec((B, TN), lambda j: (0, j))),
        compiler_params=pltpu.CompilerParams(
            dimension_semantics=("parallel",),    # vocab tiles shard across TCs on v7x
            vmem_limit_bytes=vmem_2),
    )(h_new, fc_w, fc_b)

    if V_pad != V:
        logits = logits[:, :V]

    return logits[:, None, :], (h_new[None], c_new[None])


# -----------------------------------------------------------------------------
# Deterministic parameter construction (already in the kernel's split layout)
# -----------------------------------------------------------------------------
def make_params(key, vocab, embed_dim, hidden):
    keys = jax.random.split(key, 12)
    E, H, V = embed_dim, hidden, vocab

    def u(k, shape, scale=0.1):
        return jax.random.uniform(k, shape, jnp.float32, -scale, scale)

    embedding = u(keys[0], (V, E)).at[0].set(0.0)                # padding_idx=0

    return dict(
        embedding=embedding,
        # AttentionLayers: attn = Linear(3H -> H); weight stored transposed (in, out)
        # and split along the input axis: rows [:H] hit hidden, [H:] hit encoder outputs.
        attn_wh=u(keys[1], (H, H)),
        attn_we=u(keys[2], (2 * H, H)),
        attn_b=u(keys[3], (1, H)),
        v=u(keys[4], (1, H)),                                    # Linear(H->1, bias=False)
        # LSTM (num_layers=1), PyTorch gate order i,f,g,o along the 4H axis.
        # w_ih split along its input axis: [:2H] -> context, [2H:] -> embedded token.
        w_ih_ctx=u(keys[5], (2 * H, 4 * H)),
        w_ih_x=u(keys[6], (E, 4 * H)),
        w_hh=u(keys[7], (H, 4 * H)),
        b=u(keys[8], (1, 4 * H)) + u(keys[9], (1, 4 * H)),       # b_ih + b_hh pre-summed
        # fc
        fc_w=u(keys[10], (H, V)),
        fc_b=u(keys[11], (1, V)),
    )


def cast_weights_bf16(p):
    """bf16 weight storage (recommended default for the Pallas path); biases stay f32."""
    q = dict(p)
    for k in ("attn_wh", "attn_we", "w_ih_ctx", "w_ih_x", "w_hh", "fc_w"):
        q[k] = p[k].astype(jnp.bfloat16)
    return q


# -----------------------------------------------------------------------------
# Pure-JAX reference (PyTorch-literal math) for a correctness check
# -----------------------------------------------------------------------------
def reference(x_ids, h0_c0, enc, p):
    h0, c0 = h0_c0[0][0], h0_c0[1][0]
    B, L, _ = enc.shape
    H = h0.shape[1]
    x = jnp.take(p["embedding"], x_ids, axis=0)
    attn_w = jnp.concatenate([p["attn_wh"], p["attn_we"]], axis=0)       # (3H, H)
    h_rep = jnp.broadcast_to(h0[:, None, :], (B, L, H))
    e = jnp.maximum(jnp.concatenate([h_rep, enc], 2) @ attn_w + p["attn_b"], 0.0)
    s = jnp.einsum("blh,h->bl", e, p["v"][0])
    w = jax.nn.softmax(s, axis=1)
    ctx = jnp.einsum("bl,blk->bk", w, enc)
    w_ih = jnp.concatenate([p["w_ih_ctx"], p["w_ih_x"]], axis=0)         # (2H+E, 4H)
    lin = jnp.concatenate([ctx, x], 1)
    g = lin @ w_ih + h0 @ p["w_hh"] + p["b"]
    i, f, gg, o = (jax.nn.sigmoid(g[:, :H]), jax.nn.sigmoid(g[:, H:2 * H]),
                   jnp.tanh(g[:, 2 * H:3 * H]), jax.nn.sigmoid(g[:, 3 * H:]))
    c = f * c0 + i * gg
    h = o * jnp.tanh(c)
    out = h @ p["fc_w"] + p["fc_b"]
    return out[:, None, :], (h[None], c[None])


if __name__ == "__main__":
    B, L = 2, 16            # batch, encoder sequence length
    V, E, H = 256, 32, 32   # vocab (input_size), embed_dim, hidden_units

    key = jax.random.PRNGKey(0)
    k_p, k_x, k_h, k_c, k_e, k_p2, k_x2, k_e2 = jax.random.split(key, 8)

    params = make_params(k_p, V, E, H)
    x_ids = jax.random.randint(k_x, (B,), 1, V, dtype=jnp.int32)
    h0 = jax.random.normal(k_h, (1, B, H), jnp.float32) * 0.1
    c0 = jax.random.normal(k_c, (1, B, H), jnp.float32) * 0.1
    enc = jax.random.normal(k_e, (B, L, 2 * H), jnp.float32) * 0.1

    r_out, (r_h, r_c) = reference(x_ids, (h0, c0), enc, params)

    def run_f32(sbc_flag):
        o, (h_, c_) = lstm_decoder_attention(
            x_ids, (h0, c0), enc, params, tl=8, tn=128, single_buffer_consts=sbc_flag)
        jax.block_until_ready((o, h_, c_))
        ok = (bool(jnp.allclose(o, r_out, atol=5e-3))
              and bool(jnp.allclose(h_, r_h, atol=5e-3))
              and bool(jnp.allclose(c_, r_c, atol=5e-3)))
        return o, h_, c_, ok

    # Preferred path: grid-constant weight blocks single-buffered (pl.Buffered(1)).
    # If the installed runtime rejects buffer_count=1, fall back to default buffering.
    sbc = True
    try:
        out, h_new, c_new, ok = run_f32(True)
        if not ok:
            raise RuntimeError("single-buffered-constants path mismatch")
    except Exception:
        sbc = False
        out, h_new, c_new, ok = run_f32(False)

    assert out.shape == (B, 1, V) and h_new.shape == (1, B, H) and c_new.shape == (1, B, H)
    assert ok, "f32 mismatch"

    # bf16 weights at the MXU boundary (recommended on v6e/v7x); activations stay f32.
    out16, (h16, c16) = lstm_decoder_attention(
        x_ids, (h0, c0), enc, cast_weights_bf16(params), tl=8, tn=128,
        single_buffer_consts=sbc)
    jax.block_until_ready((out16, h16, c16))
    assert jnp.allclose(out16, r_out, atol=3e-2), "logits mismatch (bf16 weights)"
    assert jnp.allclose(h16, r_h, atol=3e-2), "hidden mismatch (bf16 weights)"
    assert jnp.allclose(c16, r_c, atol=3e-2), "cell mismatch (bf16 weights)"

    # Non-divisible L / V: exercises cdiv grids, masked L padding and padded fc tiles.
    V2, L2 = 250, 13
    params2 = make_params(k_p2, V2, E, H)
    x_ids2 = jax.random.randint(k_x2, (B,), 1, V2, dtype=jnp.int32)
    enc2 = jax.random.normal(k_e2, (B, L2, 2 * H), jnp.float32) * 0.1
    r_out2, (r_h2, r_c2) = reference(x_ids2, (h0, c0), enc2, params2)
    out2, (h2, c2) = lstm_decoder_attention(
        x_ids2, (h0, c0), enc2, params2, tl=8, tn=128, single_buffer_consts=sbc)
    jax.block_until_ready((out2, h2, c2))
    assert out2.shape == (B, 1, V2)
    assert jnp.allclose(out2, r_out2, atol=5e-3), "logits mismatch (ragged L/V)"
    assert jnp.allclose(h2, r_h2, atol=5e-3), "hidden mismatch (ragged L/V)"
    assert jnp.allclose(c2, r_c2, atol=5e-3), "cell mismatch (ragged L/V)"

    print("KERNEL_OK")
</pallas_src>

<mosaic_0001>
module attributes {stable_mosaic.version = 11 : i64} {
  func.func @_fc_kernel(%arg0: i32, %arg1: memref<2x32xf32, #tpu.memory_space<vmem>>, %arg2: memref<32x128xf32, #tpu.memory_space<vmem>>, %arg3: memref<1x128xf32, #tpu.memory_space<vmem>>, %arg4: memref<2x128xf32, #tpu.memory_space<vmem>>) attributes {dimension_semantics = [#tpu.dimension_semantics<parallel>], iteration_bounds = array<i64: 2>, scalar_prefetch = 0 : i64, scratch_operands = 0 : i64, tpu.core_type = #tpu.core_type<tc>, window_params = [{pipeline_mode = #tpu.pipeline_mode<synchronous>, transform_indices = @transform_0, window_bounds = array<i64: 2, 32>}, {transform_indices = @transform_1, window_bounds = array<i64: 32, 128>}, {transform_indices = @transform_2, window_bounds = array<i64: 1, 128>}, {transform_indices = @transform_3, window_bounds = array<i64: 2, 128>}]} {
    %c0 = arith.constant 0 : index
    %c0_0 = arith.constant 0 : index
    %0 = vector.load %arg1[%c0, %c0_0] : memref<2x32xf32, #tpu.memory_space<vmem>>, vector<2x32xf32>
    %c0_1 = arith.constant 0 : index
    %c0_2 = arith.constant 0 : index
    %1 = vector.load %arg2[%c0_1, %c0_2] : memref<32x128xf32, #tpu.memory_space<vmem>>, vector<32x128xf32>
    %cst = arith.constant dense<0.000000e+00> : vector<2x128xf32>
    %2 = tpu.matmul %0, %1, %cst {dimension_numbers = #tpu.dot_dimension_numbers<[1], [0], [0], [1], [0, 0, 1, 1], [], []>} : vector<2x32xf32>, vector<32x128xf32>, vector<2x128xf32> -> vector<2x128xf32>
    %c0_3 = arith.constant 0 : index
    %c0_4 = arith.constant 0 : index
    %3 = vector.load %arg3[%c0_3, %c0_4] : memref<1x128xf32, #tpu.memory_space<vmem>>, vector<1x128xf32>
    %4 = vector.broadcast %3 : vector<1x128xf32> to vector<2x128xf32>
    %5 = arith.addf %2, %4 : vector<2x128xf32>
    %c0_5 = arith.constant 0 : index
    %c0_6 = arith.constant 0 : index
    %6 = vector.load %arg4[%c0_5, %c0_6] : memref<2x128xf32, #tpu.memory_space<vmem>>, vector<2x128xf32>
    tpu.vector_store %arg4[%c0_5, %c0_6], %5 {strides = array<i32>} : memref<2x128xf32, #tpu.memory_space<vmem>>, vector<2x128xf32>,
    return
  }
  func.func @transform_0(%arg0: i32) -> (i32, i32) {
    %c0_i32 = arith.constant 0 : i32
    %c0_i32_0 = arith.constant 0 : i32
    %c0_i32_1 = arith.constant 0 : i32
    return %c0_i32, %c0_i32_0 : i32, i32
  }
  func.func @transform_1(%arg0: i32) -> (i32, i32) {
    %c0_i32 = arith.constant 0 : i32
    %c0_i32_0 = arith.constant 0 : i32
    return %c0_i32, %arg0 : i32, i32
  }
  func.func @transform_2(%arg0: i32) -> (i32, i32) {
    %c0_i32 = arith.constant 0 : i32
    %c0_i32_0 = arith.constant 0 : i32
    return %c0_i32, %arg0 : i32, i32
  }
  func.func @transform_3(%arg0: i32) -> (i32, i32) {
    %c0_i32 = arith.constant 0 : i32
    %c0_i32_0 = arith.constant 0 : i32
    return %c0_i32, %arg0 : i32, i32
  }
}

module attributes {stable_mosaic.version = 11 : i64} {
  func.func @_attn_lstm_kernel(%arg0: i32, %arg1: i32, %arg2: memref<2x32xf32, #tpu.memory_space<vmem>>, %arg3: memref<2x32xf32, #tpu.memory_space<vmem>>, %arg4: memref<2x32xf32, #tpu.memory_space<vmem>>, %arg5: memref<2x8x64xf32, #tpu.memory_space<vmem>>, %arg6: memref<32x32xf32, #tpu.memory_space<vmem>>, %arg7: memref<64x32xf32, #tpu.memory_space<vmem>>, %arg8: memref<1x32xf32, #tpu.memory_space<vmem>>, %arg9: memref<1x32xf32, #tpu.memory_space<vmem>>, %arg10: memref<64x128xf32, #tpu.memory_space<any>>, %arg11: memref<32x128xf32, #tpu.memory_space<any>>, %arg12: memref<32x128xf32, #tpu.memory_space<any>>, %arg13: memref<1x128xf32, #tpu.memory_space<any>>, %arg14: memref<2x32xf32, #tpu.memory_space<vmem>>, %arg15: memref<2x32xf32, #tpu.memory_space<vmem>>, %arg16: memref<2x32xf32, #tpu.memory_space<vmem>>, %arg17: memref<2x1xf32, #tpu.memory_space<vmem>>, %arg18: memref<2x1xf32, #tpu.memory_space<vmem>>, %arg19: memref<2x64xf32, #tpu.memory_space<vmem>>, %arg20: memref<64x128xf32, #tpu.memory_space<vmem>>, %arg21: memref<32x128xf32, #tpu.memory_space<vmem>>, %arg22: memref<32x128xf32, #tpu.memory_space<vmem>>, %arg23: memref<1x128xf32, #tpu.memory_space<vmem>>, %arg24: memref<4x!tpu.dma_semaphore, #tpu.memory_space<semaphore_mem>>) attributes {dimension_semantics = [#tpu.dimension_semantics<parallel>, #tpu.dimension_semantics<arbitrary>], iteration_bounds = array<i64: 1, 2>, scalar_prefetch = 0 : i64, scratch_operands = 9 : i64, tpu.core_type = #tpu.core_type<tc>, window_params = [{transform_indices = @transform_0, window_bounds = array<i64: 2, 32>}, {transform_indices = @transform_1, window_bounds = array<i64: 2, 32>}, {transform_indices = @transform_2, window_bounds = array<i64: 2, 32>}, {transform_indices = @transform_3, window_bounds = array<i64: 2, 8, 64>}, {pipeline_mode = #tpu.pipeline_mode<synchronous>, transform_indices = @transform_4, window_bounds = array<i64: 32, 32>}, {pipeline_mode = #tpu.pipeline_mode<synchronous>, transform_indices = @transform_5, window_bounds = array<i64: 64, 32>}, {pipeline_mode = #tpu.pipeline_mode<synchronous>, transform_indices = @transform_6, window_bounds = array<i64: 1, 32>}, {pipeline_mode = #tpu.pipeline_mode<synchronous>, transform_indices = @transform_7, window_bounds = array<i64: 1, 32>}, {}, {}, {}, {}, {transform_indices = @transform_12, window_bounds = array<i64: 2, 32>}, {transform_indices = @transform_13, window_bounds = array<i64: 2, 32>}]} {
    %c0_i32 = arith.constant 0 : i32
    %0 = arith.cmpi eq, %arg1, %c0_i32 : i32
    %1 = arith.extui %0 : i1 to i32
    %c0_i32_0 = arith.constant 0 : i32
    %2 = arith.cmpi ne, %1, %c0_i32_0 : i32
    scf.if %2 {
      %c0_30 = arith.constant 0 : index
      %c0_31 = arith.constant 0 : index
      %58 = vector.load %arg3[%c0_30, %c0_31] : memref<2x32xf32, #tpu.memory_space<vmem>>, vector<2x32xf32>
      %c0_32 = arith.constant 0 : index
      %c0_33 = arith.constant 0 : index
      %59 = vector.load %arg6[%c0_32, %c0_33] : memref<32x32xf32, #tpu.memory_space<vmem>>, vector<32x32xf32>
      %cst_34 = arith.constant dense<0.000000e+00> : vector<2x32xf32>
      %60 = tpu.matmul %58, %59, %cst_34 {dimension_numbers = #tpu.dot_dimension_numbers<[1], [0], [0], [1], [0, 0, 1, 1], [], []>} : vector<2x32xf32>, vector<32x32xf32>, vector<2x32xf32> -> vector<2x32xf32>
      %c0_35 = arith.constant 0 : index
      %c0_36 = arith.constant 0 : index
      %61 = vector.load %arg8[%c0_35, %c0_36] : memref<1x32xf32, #tpu.memory_space<vmem>>, vector<1x32xf32>
      %62 = vector.broadcast %61 : vector<1x32xf32> to vector<2x32xf32>
      %63 = arith.addf %60, %62 : vector<2x32xf32>
      %c0_37 = arith.constant 0 : index
      %c0_38 = arith.constant 0 : index
      %64 = vector.load %arg16[%c0_37, %c0_38] : memref<2x32xf32, #tpu.memory_space<vmem>>, vector<2x32xf32>
      tpu.vector_store %arg16[%c0_37, %c0_38], %63 {strides = array<i32>} : memref<2x32xf32, #tpu.memory_space<vmem>>, vector<2x32xf32>,
      %cst_39 = arith.constant 0xFF800000 : f32
      %65 = vector.broadcast %cst_39 : f32 to vector<2x1xf32>
      %c0_40 = arith.constant 0 : index
      %c0_41 = arith.constant 0 : index
      %66 = vector.load %arg17[%c0_40, %c0_41] : memref<2x1xf32, #tpu.memory_space<vmem>>, vector<2x1xf32>
      tpu.vector_store %arg17[%c0_40, %c0_41], %65 {strides = array<i32>} : memref<2x1xf32, #tpu.memory_space<vmem>>, vector<2x1xf32>,
      %cst_42 = arith.constant 0.000000e+00 : f32
      %67 = vector.broadcast %cst_42 : f32 to vector<2x1xf32>
      %c0_43 = arith.constant 0 : index
      %c0_44 = arith.constant 0 : index
      %68 = vector.load %arg18[%c0_43, %c0_44] : memref<2x1xf32, #tpu.memory_space<vmem>>, vector<2x1xf32>
      tpu.vector_store %arg18[%c0_43, %c0_44], %67 {strides = array<i32>} : memref<2x1xf32, #tpu.memory_space<vmem>>, vector<2x1xf32>,
      %cst_45 = arith.constant 0.000000e+00 : f32
      %69 = vector.broadcast %cst_45 : f32 to vector<2x64xf32>
      %c0_46 = arith.constant 0 : index
      %c0_47 = arith.constant 0 : index
      %70 = vector.load %arg19[%c0_46, %c0_47] : memref<2x64xf32, #tpu.memory_space<vmem>>, vector<2x64xf32>
      tpu.vector_store %arg19[%c0_46, %c0_47], %69 {strides = array<i32>} : memref<2x64xf32, #tpu.memory_space<vmem>>, vector<2x64xf32>,
    } else {
    }
    %c0_i32_1 = arith.constant 0 : i32
    %3 = arith.cmpi eq, %arg1, %c0_i32_1 : i32
    %4 = arith.extui %3 : i1 to i32
    %c0_i32_2 = arith.constant 0 : i32
    %5 = arith.cmpi ne, %4, %c0_i32_2 : i32
    scf.if %5 {
      %c0_i32_30 = arith.constant 0 : i32
      %58 = tpu.memref_slice %arg24[%c0_i32_30] : memref<4x!tpu.dma_semaphore, #tpu.memory_space<semaphore_mem>> -> memref<1x!tpu.dma_semaphore, #tpu.memory_space<semaphore_mem>>
      %59 = tpu.memref_squeeze %58 : memref<1x!tpu.dma_semaphore, #tpu.memory_space<semaphore_mem>> -> memref<!tpu.dma_semaphore, #tpu.memory_space<semaphore_mem>>
      tpu.enqueue_dma source(%arg10 : memref<64x128xf32, #tpu.memory_space<any>>) target(%arg20 : memref<64x128xf32, #tpu.memory_space<vmem>>) target_semaphore(%59 : memref<!tpu.dma_semaphore, #tpu.memory_space<semaphore_mem>>)
      %c1_i32_31 = arith.constant 1 : i32
      %60 = tpu.memref_slice %arg24[%c1_i32_31] : memref<4x!tpu.dma_semaphore, #tpu.memory_space<semaphore_mem>> -> memref<1x!tpu.dma_semaphore, #tpu.memory_space<semaphore_mem>>
      %61 = tpu.memref_squeeze %60 : memref<1x!tpu.dma_semaphore, #tpu.memory_space<semaphore_mem>> -> memref<!tpu.dma_semaphore, #tpu.memory_space<semaphore_mem>>
      tpu.enqueue_dma source(%arg11 : memref<32x128xf32, #tpu.memory_space<any>>) target(%arg21 : memref<32x128xf32, #tpu.memory_space<vmem>>) target_semaphore(%61 : memref<!tpu.dma_semaphore, #tpu.memory_space<semaphore_mem>>)
      %c2_i32 = arith.constant 2 : i32
      %62 = tpu.memref_slice %arg24[%c2_i32] : memref<4x!tpu.dma_semaphore, #tpu.memory_space<semaphore_mem>> -> memref<1x!tpu.dma_semaphore, #tpu.memory_space<semaphore_mem>>
      %63 = tpu.memref_squeeze %62 : memref<1x!tpu.dma_semaphore, #tpu.memory_space<semaphore_mem>> -> memref<!tpu.dma_semaphore, #tpu.memory_space<semaphore_mem>>
      tpu.enqueue_dma source(%arg12 : memref<32x128xf32, #tpu.memory_space<any>>) target(%arg22 : memref<32x128xf32, #tpu.memory_space<vmem>>) target_semaphore(%63 : memref<!tpu.dma_semaphore, #tpu.memory_space<semaphore_mem>>)
      %c3_i32 = arith.constant 3 : i32
      %64 = tpu.memref_slice %arg24[%c3_i32] : memref<4x!tpu.dma_semaphore, #tpu.memory_space<semaphore_mem>> -> memref<1x!tpu.dma_semaphore, #tpu.memory_space<semaphore_mem>>
      %65 = tpu.memref_squeeze %64 : memref<1x!tpu.dma_semaphore, #tpu.memory_space<semaphore_mem>> -> memref<!tpu.dma_semaphore, #tpu.memory_space<semaphore_mem>>
      tpu.enqueue_dma source(%arg13 : memref<1x128xf32, #tpu.memory_space<any>>) target(%arg23 : memref<1x128xf32, #tpu.memory_space<vmem>>) target_semaphore(%65 : memref<!tpu.dma_semaphore, #tpu.memory_space<semaphore_mem>>)
    } else {
    }
    %c0 = arith.constant 0 : index
    %c0_3 = arith.constant 0 : index
    %c0_4 = arith.constant 0 : index
    %6 = vector.load %arg5[%c0, %c0_3, %c0_4] : memref<2x8x64xf32, #tpu.memory_space<vmem>>, vector<2x8x64xf32>
    %7 = vector.shape_cast %6 : vector<2x8x64xf32> to vector<16x64xf32>
    %c0_5 = arith.constant 0 : index
    %c0_6 = arith.constant 0 : index
    %8 = vector.load %arg7[%c0_5, %c0_6] : memref<64x32xf32, #tpu.memory_space<vmem>>, vector<64x32xf32>
    %cst = arith.constant dense<0.000000e+00> : vector<16x32xf32>
    %9 = tpu.matmul %7, %8, %cst {dimension_numbers = #tpu.dot_dimension_numbers<[1], [0], [0], [1], [0, 0, 1, 1], [], []>} : vector<16x64xf32>, vector<64x32xf32>, vector<16x32xf32> -> vector<16x32xf32>
    %10 = vector.shape_cast %9 : vector<16x32xf32> to vector<2x8x32xf32>
    %c0_7 = arith.constant 0 : index
    %c0_8 = arith.constant 0 : index
    %11 = vector.load %arg16[%c0_7, %c0_8] : memref<2x32xf32, #tpu.memory_space<vmem>>, vector<2x32xf32>
    %12 = vector.shape_cast %11 : vector<2x32xf32> to vector<2x1x32xf32>
    %13 = vector.broadcast %12 : vector<2x1x32xf32> to vector<2x8x32xf32>
    %14 = arith.addf %10, %13 : vector<2x8x32xf32>
    %cst_9 = arith.constant 0.000000e+00 : f32
    %15 = vector.broadcast %cst_9 : f32 to vector<2x8x32xf32>
    %16 = arith.maximumf %14, %15 : vector<2x8x32xf32>
    %c0_10 = arith.constant 0 : index
    %c0_11 = arith.constant 0 : index
    %17 = vector.load %arg9[%c0_10, %c0_11] : memref<1x32xf32, #tpu.memory_space<vmem>>, vector<1x32xf32>
    %18 = vector.shape_cast %17 : vector<1x32xf32> to vector<1x1x32xf32>
    %19 = vector.broadcast %18 : vector<1x1x32xf32> to vector<2x8x32xf32>
    %20 = arith.mulf %16, %19 : vector<2x8x32xf32>
    %cst_12 = arith.constant dense<0.000000e+00> : vector<2x8xf32>
    %21 = vector.multi_reduction <add>, %20, %cst_12 [2] : vector<2x8x32xf32> to vector<2x8xf32>
    %c8_i32 = arith.constant 8 : i32
    %22 = arith.muli %arg1, %c8_i32 : i32
    %23 = tpu.iota {dimensions = array<i32: 1>} : vector<2x8xi32>
    %24 = vector.broadcast %22 : i32 to vector<2x8xi32>
    %25 = arith.addi %24, %23 : vector<2x8xi32>
    %c16_i32 = arith.constant 16 : i32
    %26 = vector.broadcast %c16_i32 : i32 to vector<2x8xi32>
    %27 = arith.cmpi slt, %25, %26 : vector<2x8xi32>
    %cst_13 = arith.constant 0xFF800000 : f32
    %28 = vector.broadcast %cst_13 : f32 to vector<2x8xf32>
    %29 = arith.select %27, %21, %28 : vector<2x8xi1>, vector<2x8xf32>
    %c0_14 = arith.constant 0 : index
    %c0_15 = arith.constant 0 : index
    %30 = vector.load %arg17[%c0_14, %c0_15] : memref<2x1xf32, #tpu.memory_space<vmem>>, vector<2x1xf32>
    %cst_16 = arith.constant dense<0xFF800000> : vector<2xf32>
    %31 = vector.multi_reduction <maximumf>, %29, %cst_16 [1] : vector<2x8xf32> to vector<2xf32>
    %32 = vector.shape_cast %31 : vector<2xf32> to vector<2x1xf32>
    %33 = arith.maximumf %30, %32 : vector<2x1xf32>
    %34 = arith.subf %30, %33 : vector<2x1xf32>
    %35 = math.exp %34 : vector<2x1xf32>
    %36 = vector.broadcast %33 : vector<2x1xf32> to vector<2x8xf32>
    %37 = arith.subf %29, %36 : vector<2x8xf32>
    %38 = math.exp %37 : vector<2x8xf32>
    %c0_17 = arith.constant 0 : index
    %c0_18 = arith.constant 0 : index
    %39 = vector.load %arg18[%c0_17, %c0_18] : memref<2x1xf32, #tpu.memory_space<vmem>>, vector<2x1xf32>
    %40 = arith.mulf %35, %39 : vector<2x1xf32>
    %cst_19 = arith.constant dense<0.000000e+00> : vector<2xf32>
    %41 = vector.multi_reduction <add>, %38, %cst_19 [1] : vector<2x8xf32> to vector<2xf32>
    %42 = vector.shape_cast %41 : vector<2xf32> to vector<2x1xf32>
    %43 = arith.addf %40, %42 : vector<2x1xf32>
    %c0_20 = arith.constant 0 : index
    %c0_21 = arith.constant 0 : index
    %44 = vector.load %arg18[%c0_20, %c0_21] : memref<2x1xf32, #tpu.memory_space<vmem>>, vector<2x1xf32>
    tpu.vector_store %arg18[%c0_20, %c0_21], %43 {strides = array<i32>} : memref<2x1xf32, #tpu.memory_space<vmem>>, vector<2x1xf32>,
    %c0_22 = arith.constant 0 : index
    %c0_23 = arith.constant 0 : index
    %45 = vector.load %arg19[%c0_22, %c0_23] : memref<2x64xf32, #tpu.memory_space<vmem>>, vector<2x64xf32>
    %46 = vector.broadcast %35 : vector<2x1xf32> to vector<2x64xf32>
    %47 = arith.mulf %46, %45 : vector<2x64xf32>
    %48 = vector.shape_cast %38 : vector<2x8xf32> to vector<2x8x1xf32>
    %49 = vector.broadcast %48 : vector<2x8x1xf32> to vector<2x8x64xf32>
    %50 = arith.mulf %49, %6 : vector<2x8x64xf32>
    %cst_24 = arith.constant dense<0.000000e+00> : vector<2x64xf32>
    %51 = vector.multi_reduction <add>, %50, %cst_24 [1] : vector<2x8x64xf32> to vector<2x64xf32>
    %52 = arith.addf %47, %51 : vector<2x64xf32>
    %c0_25 = arith.constant 0 : index
    %c0_26 = arith.constant 0 : index
    %53 = vector.load %arg19[%c0_25, %c0_26] : memref<2x64xf32, #tpu.memory_space<vmem>>, vector<2x64xf32>
    tpu.vector_store %arg19[%c0_25, %c0_26], %52 {strides = array<i32>} : memref<2x64xf32, #tpu.memory_space<vmem>>, vector<2x64xf32>,
    %c0_27 = arith.constant 0 : index
    %c0_28 = arith.constant 0 : index
    %54 = vector.load %arg17[%c0_27, %c0_28] : memref<2x1xf32, #tpu.memory_space<vmem>>, vector<2x1xf32>
    tpu.vector_store %arg17[%c0_27, %c0_28], %33 {strides = array<i32>} : memref<2x1xf32, #tpu.memory_space<vmem>>, vector<2x1xf32>,
    %c1_i32 = arith.constant 1 : i32
    %55 = arith.cmpi eq, %arg1, %c1_i32 : i32
    %56 = arith.extui %55 : i1 to i32
    %c0_i32_29 = arith.constant 0 : i32
    %57 = arith.cmpi ne, %56, %c0_i32_29 : i32
    scf.if %57 {
      %c0_i32_30 = arith.constant 0 : i32
      %58 = tpu.memref_slice %arg24[%c0_i32_30] : memref<4x!tpu.dma_semaphore, #tpu.memory_space<semaphore_mem>> -> memref<1x!tpu.dma_semaphore, #tpu.memory_space<semaphore_mem>>
      %59 = tpu.memref_squeeze %58 : memref<1x!tpu.dma_semaphore, #tpu.memory_space<semaphore_mem>> -> memref<!tpu.dma_semaphore, #tpu.memory_space<semaphore_mem>>
      tpu.wait_dma2 semaphore(%59 : memref<!tpu.dma_semaphore, #tpu.memory_space<semaphore_mem>>) src(%arg10 : memref<64x128xf32, #tpu.memory_space<any>>) dst(%arg20 : memref<64x128xf32, #tpu.memory_space<vmem>>)
      %c1_i32_31 = arith.constant 1 : i32
      %60 = tpu.memref_slice %arg24[%c1_i32_31] : memref<4x!tpu.dma_semaphore, #tpu.memory_space<semaphore_mem>> -> memref<1x!tpu.dma_semaphore, #tpu.memory_space<semaphore_mem>>
      %61 = tpu.memref_squeeze %60 : memref<1x!tpu.dma_semaphore, #tpu.memory_space<semaphore_mem>> -> memref<!tpu.dma_semaphore, #tpu.memory_space<semaphore_mem>>
      tpu.wait_dma2 semaphore(%61 : memref<!tpu.dma_semaphore, #tpu.memory_space<semaphore_mem>>) src(%arg11 : memref<32x128xf32, #tpu.memory_space<any>>) dst(%arg21 : memref<32x128xf32, #tpu.memory_space<vmem>>)
      %c2_i32 = arith.constant 2 : i32
      %62 = tpu.memref_slice %arg24[%c2_i32] : memref<4x!tpu.dma_semaphore, #tpu.memory_space<semaphore_mem>> -> memref<1x!tpu.dma_semaphore, #tpu.memory_space<semaphore_mem>>
      %63 = tpu.memref_squeeze %62 : memref<1x!tpu.dma_semaphore, #tpu.memory_space<semaphore_mem>> -> memref<!tpu.dma_semaphore, #tpu.memory_space<semaphore_mem>>
      tpu.wait_dma2 semaphore(%63 : memref<!tpu.dma_semaphore, #tpu.memory_space<semaphore_mem>>) src(%arg12 : memref<32x128xf32, #tpu.memory_space<any>>) dst(%arg22 : memref<32x128xf32, #tpu.memory_space<vmem>>)
      %c3_i32 = arith.constant 3 : i32
      %64 = tpu.memref_slice %arg24[%c3_i32] : memref<4x!tpu.dma_semaphore, #tpu.memory_space<semaphore_mem>> -> memref<1x!tpu.dma_semaphore, #tpu.memory_space<semaphore_mem>>
      %65 = tpu.memref_squeeze %64 : memref<1x!tpu.dma_semaphore, #tpu.memory_space<semaphore_mem>> -> memref<!tpu.dma_semaphore, #tpu.memory_space<semaphore_mem>>
      tpu.wait_dma2 semaphore(%65 : memref<!tpu.dma_semaphore, #tpu.memory_space<semaphore_mem>>) src(%arg13 : memref<1x128xf32, #tpu.memory_space<any>>) dst(%arg23 : memref<1x128xf32, #tpu.memory_space<vmem>>)
      %c0_32 = arith.constant 0 : index
      %c0_33 = arith.constant 0 : index
      %66 = vector.load %arg18[%c0_32, %c0_33] : memref<2x1xf32, #tpu.memory_space<vmem>>, vector<2x1xf32>
      %67 = tpu.reciprocal %66 {approx = true} : vector<2x1xf32> -> vector<2x1xf32>
      %c0_34 = arith.constant 0 : index
      %c0_35 = arith.constant 0 : index
      %68 = vector.load %arg19[%c0_34, %c0_35] : memref<2x64xf32, #tpu.memory_space<vmem>>, vector<2x64xf32>
      %69 = vector.broadcast %67 : vector<2x1xf32> to vector<2x64xf32>
      %70 = arith.mulf %68, %69 : vector<2x64xf32>
      %c0_36 = arith.constant 0 : index
      %c0_37 = arith.constant 0 : index
      %71 = vector.load %arg20[%c0_36, %c0_37] : memref<64x128xf32, #tpu.memory_space<vmem>>, vector<64x128xf32>
      %cst_38 = arith.constant dense<0.000000e+00> : vector<2x128xf32>
      %72 = tpu.matmul %70, %71, %cst_38 {dimension_numbers = #tpu.dot_dimension_numbers<[1], [0], [0], [1], [0, 0, 1, 1], [], []>} : vector<2x64xf32>, vector<64x128xf32>, vector<2x128xf32> -> vector<2x128xf32>
      %c0_39 = arith.constant 0 : index
      %c0_40 = arith.constant 0 : index
      %73 = vector.load %arg2[%c0_39, %c0_40] : memref<2x32xf32, #tpu.memory_space<vmem>>, vector<2x32xf32>
      %c0_41 = arith.constant 0 : index
      %c0_42 = arith.constant 0 : index
      %74 = vector.load %arg21[%c0_41, %c0_42] : memref<32x128xf32, #tpu.memory_space<vmem>>, vector<32x128xf32>
      %cst_43 = arith.constant dense<0.000000e+00> : vector<2x128xf32>
      %75 = tpu.matmul %73, %74, %cst_43 {dimension_numbers = #tpu.dot_dimension_numbers<[1], [0], [0], [1], [0, 0, 1, 1], [], []>} : vector<2x32xf32>, vector<32x128xf32>, vector<2x128xf32> -> vector<2x128xf32>
      %76 = arith.addf %72, %75 : vector<2x128xf32>
      %c0_44 = arith.constant 0 : index
      %c0_45 = arith.constant 0 : index
      %77 = vector.load %arg3[%c0_44, %c0_45] : memref<2x32xf32, #tpu.memory_space<vmem>>, vector<2x32xf32>
      %c0_46 = arith.constant 0 : index
      %c0_47 = arith.constant 0 : index
      %78 = vector.load %arg22[%c0_46, %c0_47] : memref<32x128xf32, #tpu.memory_space<vmem>>, vector<32x128xf32>
      %cst_48 = arith.constant dense<0.000000e+00> : vector<2x128xf32>
      %79 = tpu.matmul %77, %78, %cst_48 {dimension_numbers = #tpu.dot_dimension_numbers<[1], [0], [0], [1], [0, 0, 1, 1], [], []>} : vector<2x32xf32>, vector<32x128xf32>, vector<2x128xf32> -> vector<2x128xf32>
      %80 = arith.addf %76, %79 : vector<2x128xf32>
      %c0_49 = arith.constant 0 : index
      %c0_50 = arith.constant 0 : index
      %81 = vector.load %arg23[%c0_49, %c0_50] : memref<1x128xf32, #tpu.memory_space<vmem>>, vector<1x128xf32>
      %82 = vector.broadcast %81 : vector<1x128xf32> to vector<2x128xf32>
      %83 = arith.addf %80, %82 : vector<2x128xf32>
      %84 = vector.extract_strided_slice %83 {offsets = [0, 0], sizes = [2, 32], strides = [1, 1]} : vector<2x128xf32> to vector<2x32xf32>
      %85 = arith.negf %84 : vector<2x32xf32>
      %86 = math.exp %85 : vector<2x32xf32>
      %cst_51 = arith.constant 1.000000e+00 : f32
      %87 = vector.broadcast %cst_51 : f32 to vector<2x32xf32>
      %88 = arith.addf %87, %86 : vector<2x32xf32>
      %89 = arith.divf %87, %88 : vector<2x32xf32>
      %90 = vector.extract_strided_slice %83 {offsets = [0, 32], sizes = [2, 32], strides = [1, 1]} : vector<2x128xf32> to vector<2x32xf32>
      %91 = arith.negf %90 : vector<2x32xf32>
      %92 = math.exp %91 : vector<2x32xf32>
      %cst_52 = arith.constant 1.000000e+00 : f32
      %93 = vector.broadcast %cst_52 : f32 to vector<2x32xf32>
      %94 = arith.addf %93, %92 : vector<2x32xf32>
      %95 = arith.divf %93, %94 : vector<2x32xf32>
      %96 = vector.extract_strided_slice %83 {offsets = [0, 64], sizes = [2, 32], strides = [1, 1]} : vector<2x128xf32> to vector<2x32xf32>
      %97 = math.tanh %96 : vector<2x32xf32>
      %98 = vector.extract_strided_slice %83 {offsets = [0, 96], sizes = [2, 32], strides = [1, 1]} : vector<2x128xf32> to vector<2x32xf32>
      %99 = arith.negf %98 : vector<2x32xf32>
      %100 = math.exp %99 : vector<2x32xf32>
      %cst_53 = arith.constant 1.000000e+00 : f32
      %101 = vector.broadcast %cst_53 : f32 to vector<2x32xf32>
      %102 = arith.addf %101, %100 : vector<2x32xf32>
      %103 = arith.divf %101, %102 : vector<2x32xf32>
      %c0_54 = arith.constant 0 : index
      %c0_55 = arith.constant 0 : index
      %104 = vector.load %arg4[%c0_54, %c0_55] : memref<2x32xf32, #tpu.memory_space<vmem>>, vector<2x32xf32>
      %105 = arith.mulf %95, %104 : vector<2x32xf32>
      %106 = arith.mulf %89, %97 : vector<2x32xf32>
      %107 = arith.addf %105, %106 : vector<2x32xf32>
      %108 = math.tanh %107 : vector<2x32xf32>
      %109 = arith.mulf %103, %108 : vector<2x32xf32>
      %c0_56 = arith.constant 0 : index
      %c0_57 = arith.constant 0 : index
      %110 = vector.load %arg14[%c0_56, %c0_57] : memref<2x32xf32, #tpu.memory_space<vmem>>, vector<2x32xf32>
      tpu.vector_store %arg14[%c0_56, %c0_57], %109 {strides = array<i32>} : memref<2x32xf32, #tpu.memory_space<vmem>>, vector<2x32xf32>,
      %c0_58 = arith.constant 0 : index
      %c0_59 = arith.constant 0 : index
      %111 = vector.load %arg15[%c0_58, %c0_59] : memref<2x32xf32, #tpu.memory_space<vmem>>, vector<2x32xf32>
      tpu.vector_store %arg15[%c0_58, %c0_59], %107 {strides = array<i32>} : memref<2x32xf32, #tpu.memory_space<vmem>>, vector<2x32xf32>,
    } else {
    }
    return
  }
  func.func @transform_0(%arg0: i32, %arg1: i32) -> (i32, i32) {
    %c0_i32 = arith.constant 0 : i32
    %c0_i32_0 = arith.constant 0 : i32
    return %arg0, %c0_i32 : i32, i32
  }
  func.func @transform_1(%arg0: i32, %arg1: i32) -> (i32, i32) {
    %c0_i32 = arith.constant 0 : i32
    %c0_i32_0 = arith.constant 0 : i32
    return %arg0, %c0_i32 : i32, i32
  }
  func.func @transform_2(%arg0: i32, %arg1: i32) -> (i32, i32) {
    %c0_i32 = arith.constant 0 : i32
    %c0_i32_0 = arith.constant 0 : i32
    return %arg0, %c0_i32 : i32, i32
  }
  func.func @transform_3(%arg0: i32, %arg1: i32) -> (i32, i32, i32) {
    %c0_i32 = arith.constant 0 : i32
    %c0_i32_0 = arith.constant 0 : i32
    return %arg0, %arg1, %c0_i32 : i32, i32, i32
  }
  func.func @transform_4(%arg0: i32, %arg1: i32) -> (i32, i32) {
    %c0_i32 = arith.constant 0 : i32
    %c0_i32_0 = arith.constant 0 : i32
    %c0_i32_1 = arith.constant 0 : i32
    return %c0_i32, %c0_i32_0 : i32, i32
  }
  func.func @transform_5(%arg0: i32, %arg1: i32) -> (i32, i32) {
    %c0_i32 = arith.constant 0 : i32
    %c0_i32_0 = arith.constant 0 : i32
    %c0_i32_1 = arith.constant 0 : i32
    return %c0_i32, %c0_i32_0 : i32, i32
  }
  func.func @transform_6(%arg0: i32, %arg1: i32) -> (i32, i32) {
    %c0_i32 = arith.constant 0 : i32
    %c0_i32_0 = arith.constant 0 : i32
    %c0_i32_1 = arith.constant 0 : i32
    return %c0_i32, %c0_i32_0 : i32, i32
  }
  func.func @transform_7(%arg0: i32, %arg1: i32) -> (i32, i32) {
    %c0_i32 = arith.constant 0 : i32
    %c0_i32_0 = arith.constant 0 : i32
    %c0_i32_1 = arith.constant 0 : i32
    return %c0_i32, %c0_i32_0 : i32, i32
  }
  func.func @transform_12(%arg0: i32, %arg1: i32) -> (i32, i32) {
    %c0_i32 = arith.constant 0 : i32
    %c0_i32_0 = arith.constant 0 : i32
    return %arg0, %c0_i32 : i32, i32
  }
  func.func @transform_13(%arg0: i32, %arg1: i32) -> (i32, i32) {
    %c0_i32 = arith.constant 0 : i32
    %c0_i32_0 = arith.constant 0 : i32
    return %arg0, %c0_i32 : i32, i32
  }
}

module attributes {stable_mosaic.version = 11 : i64} {
  func.func @_attn_lstm_kernel(%arg0: i32, %arg1: i32, %arg2: memref<2x32xf32, #tpu.memory_space<vmem>>, %arg3: memref<2x32xf32, #tpu.memory_space<vmem>>, %arg4: memref<2x32xf32, #tpu.memory_space<vmem>>, %arg5: memref<2x8x64xf32, #tpu.memory_space<vmem>>, %arg6: memref<32x32xf32, #tpu.memory_space<vmem>>, %arg7: memref<64x32xf32, #tpu.memory_space<vmem>>, %arg8: memref<1x32xf32, #tpu.memory_space<vmem>>, %arg9: memref<1x32xf32, #tpu.memory_space<vmem>>, %arg10: memref<64x128xf32, #tpu.memory_space<any>>, %arg11: memref<32x128xf32, #tpu.memory_space<any>>, %arg12: memref<32x128xf32, #tpu.memory_space<any>>, %arg13: memref<1x128xf32, #tpu.memory_space<any>>, %arg14: memref<2x32xf32, #tpu.memory_space<vmem>>, %arg15: memref<2x32xf32, #tpu.memory_space<vmem>>, %arg16: memref<2x32xf32, #tpu.memory_space<vmem>>, %arg17: memref<2x1xf32, #tpu.memory_space<vmem>>, %arg18: memref<2x1xf32, #tpu.memory_space<vmem>>, %arg19: memref<2x64xf32, #tpu.memory_space<vmem>>, %arg20: memref<64x128xf32, #tpu.memory_space<vmem>>, %arg21: memref<32x128xf32, #tpu.memory_space<vmem>>, %arg22: memref<32x128xf32, #tpu.memory_space<vmem>>, %arg23: memref<1x128xf32, #tpu.memory_space<vmem>>, %arg24: memref<4x!tpu.dma_semaphore, #tpu.memory_space<semaphore_mem>>) attributes {dimension_semantics = [#tpu.dimension_semantics<parallel>, #tpu.dimension_semantics<arbitrary>], iteration_bounds = array<i64: 1, 2>, scalar_prefetch = 0 : i64, scratch_operands = 9 : i64, tpu.core_type = #tpu.core_type<tc>, window_params = [{transform_indices = @transform_0, window_bounds = array<i64: 2, 32>}, {transform_indices = @transform_1, window_bounds = array<i64: 2, 32>}, {transform_indices = @transform_2, window_bounds = array<i64: 2, 32>}, {transform_indices = @transform_3, window_bounds = array<i64: 2, 8, 64>}, {pipeline_mode = #tpu.pipeline_mode<synchronous>, transform_indices = @transform_4, window_bounds = array<i64: 32, 32>}, {pipeline_mode = #tpu.pipeline_mode<synchronous>, transform_indices = @transform_5, window_bounds = array<i64: 64, 32>}, {pipeline_mode = #tpu.pipeline_mode<synchronous>, transform_indices = @transform_6, window_bounds = array<i64: 1, 32>}, {pipeline_mode = #tpu.pipeline_mode<synchronous>, transform_indices = @transform_7, window_bounds = array<i64: 1, 32>}, {}, {}, {}, {}, {transform_indices = @transform_12, window_bounds = array<i64: 2, 32>}, {transform_indices = @transform_13, window_bounds = array<i64: 2, 32>}]} {
    %c0_i32 = arith.constant 0 : i32
    %0 = arith.cmpi eq, %arg1, %c0_i32 : i32
    %1 = arith.extui %0 : i1 to i32
    %c0_i32_0 = arith.constant 0 : i32
    %2 = arith.cmpi ne, %1, %c0_i32_0 : i32
    scf.if %2 {
      %c0_30 = arith.constant 0 : index
      %c0_31 = arith.constant 0 : index
      %58 = vector.load %arg3[%c0_30, %c0_31] : memref<2x32xf32, #tpu.memory_space<vmem>>, vector<2x32xf32>
      %c0_32 = arith.constant 0 : index
      %c0_33 = arith.constant 0 : index
      %59 = vector.load %arg6[%c0_32, %c0_33] : memref<32x32xf32, #tpu.memory_space<vmem>>, vector<32x32xf32>
      %cst_34 = arith.constant dense<0.000000e+00> : vector<2x32xf32>
      %60 = tpu.matmul %58, %59, %cst_34 {dimension_numbers = #tpu.dot_dimension_numbers<[1], [0], [0], [1], [0, 0, 1, 1], [], []>} : vector<2x32xf32>, vector<32x32xf32>, vector<2x32xf32> -> vector<2x32xf32>
      %c0_35 = arith.constant 0 : index
      %c0_36 = arith.constant 0 : index
      %61 = vector.load %arg8[%c0_35, %c0_36] : memref<1x32xf32, #tpu.memory_space<vmem>>, vector<1x32xf32>
      %62 = vector.broadcast %61 : vector<1x32xf32> to vector<2x32xf32>
      %63 = arith.addf %60, %62 : vector<2x32xf32>
      %c0_37 = arith.constant 0 : index
      %c0_38 = arith.constant 0 : index
      %64 = vector.load %arg16[%c0_37, %c0_38] : memref<2x32xf32, #tpu.memory_space<vmem>>, vector<2x32xf32>
      tpu.vector_store %arg16[%c0_37, %c0_38], %63 {strides = array<i32>} : memref<2x32xf32, #tpu.memory_space<vmem>>, vector<2x32xf32>,
      %cst_39 = arith.constant 0xFF800000 : f32
      %65 = vector.broadcast %cst_39 : f32 to vector<2x1xf32>
      %c0_40 = arith.constant 0 : index
      %c0_41 = arith.constant 0 : index
      %66 = vector.load %arg17[%c0_40, %c0_41] : memref<2x1xf32, #tpu.memory_space<vmem>>, vector<2x1xf32>
      tpu.vector_store %arg17[%c0_40, %c0_41], %65 {strides = array<i32>} : memref<2x1xf32, #tpu.memory_space<vmem>>, vector<2x1xf32>,
      %cst_42 = arith.constant 0.000000e+00 : f32
      %67 = vector.broadcast %cst_42 : f32 to vector<2x1xf32>
      %c0_43 = arith.constant 0 : index
      %c0_44 = arith.constant 0 : index
      %68 = vector.load %arg18[%c0_43, %c0_44] : memref<2x1xf32, #tpu.memory_space<vmem>>, vector<2x1xf32>
      tpu.vector_store %arg18[%c0_43, %c0_44], %67 {strides = array<i32>} : memref<2x1xf32, #tpu.memory_space<vmem>>, vector<2x1xf32>,
      %cst_45 = arith.constant 0.000000e+00 : f32
      %69 = vector.broadcast %cst_45 : f32 to vector<2x64xf32>
      %c0_46 = arith.constant 0 : index
      %c0_47 = arith.constant 0 : index
      %70 = vector.load %arg19[%c0_46, %c0_47] : memref<2x64xf32, #tpu.memory_space<vmem>>, vector<2x64xf32>
      tpu.vector_store %arg19[%c0_46, %c0_47], %69 {strides = array<i32>} : memref<2x64xf32, #tpu.memory_space<vmem>>, vector<2x64xf32>,
    } else {
    }
    %c0_i32_1 = arith.constant 0 : i32
    %3 = arith.cmpi eq, %arg1, %c0_i32_1 : i32
    %4 = arith.extui %3 : i1 to i32
    %c0_i32_2 = arith.constant 0 : i32
    %5 = arith.cmpi ne, %4, %c0_i32_2 : i32
    scf.if %5 {
      %c0_i32_30 = arith.constant 0 : i32
      %58 = tpu.memref_slice %arg24[%c0_i32_30] : memref<4x!tpu.dma_semaphore, #tpu.memory_space<semaphore_mem>> -> memref<1x!tpu.dma_semaphore, #tpu.memory_space<semaphore_mem>>
      %59 = tpu.memref_squeeze %58 : memref<1x!tpu.dma_semaphore, #tpu.memory_space<semaphore_mem>> -> memref<!tpu.dma_semaphore, #tpu.memory_space<semaphore_mem>>
      tpu.enqueue_dma source(%arg10 : memref<64x128xf32, #tpu.memory_space<any>>) target(%arg20 : memref<64x128xf32, #tpu.memory_space<vmem>>) target_semaphore(%59 : memref<!tpu.dma_semaphore, #tpu.memory_space<semaphore_mem>>)
      %c1_i32_31 = arith.constant 1 : i32
      %60 = tpu.memref_slice %arg24[%c1_i32_31] : memref<4x!tpu.dma_semaphore, #tpu.memory_space<semaphore_mem>> -> memref<1x!tpu.dma_semaphore, #tpu.memory_space<semaphore_mem>>
      %61 = tpu.memref_squeeze %60 : memref<1x!tpu.dma_semaphore, #tpu.memory_space<semaphore_mem>> -> memref<!tpu.dma_semaphore, #tpu.memory_space<semaphore_mem>>
      tpu.enqueue_dma source(%arg11 : memref<32x128xf32, #tpu.memory_space<any>>) target(%arg21 : memref<32x128xf32, #tpu.memory_space<vmem>>) target_semaphore(%61 : memref<!tpu.dma_semaphore, #tpu.memory_space<semaphore_mem>>)
      %c2_i32 = arith.constant 2 : i32
      %62 = tpu.memref_slice %arg24[%c2_i32] : memref<4x!tpu.dma_semaphore, #tpu.memory_space<semaphore_mem>> -> memref<1x!tpu.dma_semaphore, #tpu.memory_space<semaphore_mem>>
      %63 = tpu.memref_squeeze %62 : memref<1x!tpu.dma_semaphore, #tpu.memory_space<semaphore_mem>> -> memref<!tpu.dma_semaphore, #tpu.memory_space<semaphore_mem>>
      tpu.enqueue_dma source(%arg12 : memref<32x128xf32, #tpu.memory_space<any>>) target(%arg22 : memref<32x128xf32, #tpu.memory_space<vmem>>) target_semaphore(%63 : memref<!tpu.dma_semaphore, #tpu.memory_space<semaphore_mem>>)
      %c3_i32 = arith.constant 3 : i32
      %64 = tpu.memref_slice %arg24[%c3_i32] : memref<4x!tpu.dma_semaphore, #tpu.memory_space<semaphore_mem>> -> memref<1x!tpu.dma_semaphore, #tpu.memory_space<semaphore_mem>>
      %65 = tpu.memref_squeeze %64 : memref<1x!tpu.dma_semaphore, #tpu.memory_space<semaphore_mem>> -> memref<!tpu.dma_semaphore, #tpu.memory_space<semaphore_mem>>
      tpu.enqueue_dma source(%arg13 : memref<1x128xf32, #tpu.memory_space<any>>) target(%arg23 : memref<1x128xf32, #tpu.memory_space<vmem>>) target_semaphore(%65 : memref<!tpu.dma_semaphore, #tpu.memory_space<semaphore_mem>>)
    } else {
    }
    %c0 = arith.constant 0 : index
    %c0_3 = arith.constant 0 : index
    %c0_4 = arith.constant 0 : index
    %6 = vector.load %arg5[%c0, %c0_3, %c0_4] : memref<2x8x64xf32, #tpu.memory_space<vmem>>, vector<2x8x64xf32>
    %7 = vector.shape_cast %6 : vector<2x8x64xf32> to vector<16x64xf32>
    %c0_5 = arith.constant 0 : index
    %c0_6 = arith.constant 0 : index
    %8 = vector.load %arg7[%c0_5, %c0_6] : memref<64x32xf32, #tpu.memory_space<vmem>>, vector<64x32xf32>
    %cst = arith.constant dense<0.000000e+00> : vector<16x32xf32>
    %9 = tpu.matmul %7, %8, %cst {dimension_numbers = #tpu.dot_dimension_numbers<[1], [0], [0], [1], [0, 0, 1, 1], [], []>} : vector<16x64xf32>, vector<64x32xf32>, vector<16x32xf32> -> vector<16x32xf32>
    %10 = vector.shape_cast %9 : vector<16x32xf32> to vector<2x8x32xf32>
    %c0_7 = arith.constant 0 : index
    %c0_8 = arith.constant 0 : index
    %11 = vector.load %arg16[%c0_7, %c0_8] : memref<2x32xf32, #tpu.memory_space<vmem>>, vector<2x32xf32>
    %12 = vector.shape_cast %11 : vector<2x32xf32> to vector<2x1x32xf32>
    %13 = vector.broadcast %12 : vector<2x1x32xf32> to vector<2x8x32xf32>
    %14 = arith.addf %10, %13 : vector<2x8x32xf32>
    %cst_9 = arith.constant 0.000000e+00 : f32
    %15 = vector.broadcast %cst_9 : f32 to vector<2x8x32xf32>
    %16 = arith.maximumf %14, %15 : vector<2x8x32xf32>
    %c0_10 = arith.constant 0 : index
    %c0_11 = arith.constant 0 : index
    %17 = vector.load %arg9[%c0_10, %c0_11] : memref<1x32xf32, #tpu.memory_space<vmem>>, vector<1x32xf32>
    %18 = vector.shape_cast %17 : vector<1x32xf32> to vector<1x1x32xf32>
    %19 = vector.broadcast %18 : vector<1x1x32xf32> to vector<2x8x32xf32>
    %20 = arith.mulf %16, %19 : vector<2x8x32xf32>
    %cst_12 = arith.constant dense<0.000000e+00> : vector<2x8xf32>
    %21 = vector.multi_reduction <add>, %20, %cst_12 [2] : vector<2x8x32xf32> to vector<2x8xf32>
    %c8_i32 = arith.constant 8 : i32
    %22 = arith.muli %arg1, %c8_i32 : i32
    %23 = tpu.iota {dimensions = array<i32: 1>} : vector<2x8xi32>
    %24 = vector.broadcast %22 : i32 to vector<2x8xi32>
    %25 = arith.addi %24, %23 : vector<2x8xi32>
    %c16_i32 = arith.constant 16 : i32
    %26 = vector.broadcast %c16_i32 : i32 to vector<2x8xi32>
    %27 = arith.cmpi slt, %25, %26 : vector<2x8xi32>
    %cst_13 = arith.constant 0xFF800000 : f32
    %28 = vector.broadcast %cst_13 : f32 to vector<2x8xf32>
    %29 = arith.select %27, %21, %28 : vector<2x8xi1>, vector<2x8xf32>
    %c0_14 = arith.constant 0 : index
    %c0_15 = arith.constant 0 : index
    %30 = vector.load %arg17[%c0_14, %c0_15] : memref<2x1xf32, #tpu.memory_space<vmem>>, vector<2x1xf32>
    %cst_16 = arith.constant dense<0xFF800000> : vector<2xf32>
    %31 = vector.multi_reduction <maximumf>, %29, %cst_16 [1] : vector<2x8xf32> to vector<2xf32>
    %32 = vector.shape_cast %31 : vector<2xf32> to vector<2x1xf32>
    %33 = arith.maximumf %30, %32 : vector<2x1xf32>
    %34 = arith.subf %30, %33 : vector<2x1xf32>
    %35 = math.exp %34 : vector<2x1xf32>
    %36 = vector.broadcast %33 : vector<2x1xf32> to vector<2x8xf32>
    %37 = arith.subf %29, %36 : vector<2x8xf32>
    %38 = math.exp %37 : vector<2x8xf32>
    %c0_17 = arith.constant 0 : index
    %c0_18 = arith.constant 0 : index
    %39 = vector.load %arg18[%c0_17, %c0_18] : memref<2x1xf32, #tpu.memory_space<vmem>>, vector<2x1xf32>
    %40 = arith.mulf %35, %39 : vector<2x1xf32>
    %cst_19 = arith.constant dense<0.000000e+00> : vector<2xf32>
    %41 = vector.multi_reduction <add>, %38, %cst_19 [1] : vector<2x8xf32> to vector<2xf32>
    %42 = vector.shape_cast %41 : vector<2xf32> to vector<2x1xf32>
    %43 = arith.addf %40, %42 : vector<2x1xf32>
    %c0_20 = arith.constant 0 : index
    %c0_21 = arith.constant 0 : index
    %44 = vector.load %arg18[%c0_20, %c0_21] : memref<2x1xf32, #tpu.memory_space<vmem>>, vector<2x1xf32>
    tpu.vector_store %arg18[%c0_20, %c0_21], %43 {strides = array<i32>} : memref<2x1xf32, #tpu.memory_space<vmem>>, vector<2x1xf32>,
    %c0_22 = arith.constant 0 : index
    %c0_23 = arith.constant 0 : index
    %45 = vector.load %arg19[%c0_22, %c0_23] : memref<2x64xf32, #tpu.memory_space<vmem>>, vector<2x64xf32>
    %46 = vector.broadcast %35 : vector<2x1xf32> to vector<2x64xf32>
    %47 = arith.mulf %46, %45 : vector<2x64xf32>
    %48 = vector.shape_cast %38 : vector<2x8xf32> to vector<2x8x1xf32>
    %49 = vector.broadcast %48 : vector<2x8x1xf32> to vector<2x8x64xf32>
    %50 = arith.mulf %49, %6 : vector<2x8x64xf32>
    %cst_24 = arith.constant dense<0.000000e+00> : vector<2x64xf32>
    %51 = vector.multi_reduction <add>, %50, %cst_24 [1] : vector<2x8x64xf32> to vector<2x64xf32>
    %52 = arith.addf %47, %51 : vector<2x64xf32>
    %c0_25 = arith.constant 0 : index
    %c0_26 = arith.constant 0 : index
    %53 = vector.load %arg19[%c0_25, %c0_26] : memref<2x64xf32, #tpu.memory_space<vmem>>, vector<2x64xf32>
    tpu.vector_store %arg19[%c0_25, %c0_26], %52 {strides = array<i32>} : memref<2x64xf32, #tpu.memory_space<vmem>>, vector<2x64xf32>,
    %c0_27 = arith.constant 0 : index
    %c0_28 = arith.constant 0 : index
    %54 = vector.load %arg17[%c0_27, %c0_28] : memref<2x1xf32, #tpu.memory_space<vmem>>, vector<2x1xf32>
    tpu.vector_store %arg17[%c0_27, %c0_28], %33 {strides = array<i32>} : memref<2x1xf32, #tpu.memory_space<vmem>>, vector<2x1xf32>,
    %c1_i32 = arith.constant 1 : i32
    %55 = arith.cmpi eq, %arg1, %c1_i32 : i32
    %56 = arith.extui %55 : i1 to i32
    %c0_i32_29 = arith.constant 0 : i32
    %57 = arith.cmpi ne, %56, %c0_i32_29 : i32
    scf.if %57 {
      %c0_i32_30 = arith.constant 0 : i32
      %58 = tpu.memref_slice %arg24[%c0_i32_30] : memref<4x!tpu.dma_semaphore, #tpu.memory_space<semaphore_mem>> -> memref<1x!tpu.dma_semaphore, #tpu.memory_space<semaphore_mem>>
      %59 = tpu.memref_squeeze %58 : memref<1x!tpu.dma_semaphore, #tpu.memory_space<semaphore_mem>> -> memref<!tpu.dma_semaphore, #tpu.memory_space<semaphore_mem>>
      tpu.wait_dma2 semaphore(%59 : memref<!tpu.dma_semaphore, #tpu.memory_space<semaphore_mem>>) src(%arg10 : memref<64x128xf32, #tpu.memory_space<any>>) dst(%arg20 : memref<64x128xf32, #tpu.memory_space<vmem>>)
      %c1_i32_31 = arith.constant 1 : i32
      %60 = tpu.memref_slice %arg24[%c1_i32_31] : memref<4x!tpu.dma_semaphore, #tpu.memory_space<semaphore_mem>> -> memref<1x!tpu.dma_semaphore, #tpu.memory_space<semaphore_mem>>
      %61 = tpu.memref_squeeze %60 : memref<1x!tpu.dma_semaphore, #tpu.memory_space<semaphore_mem>> -> memref<!tpu.dma_semaphore, #tpu.memory_space<semaphore_mem>>
      tpu.wait_dma2 semaphore(%61 : memref<!tpu.dma_semaphore, #tpu.memory_space<semaphore_mem>>) src(%arg11 : memref<32x128xf32, #tpu.memory_space<any>>) dst(%arg21 : memref<32x128xf32, #tpu.memory_space<vmem>>)
      %c2_i32 = arith.constant 2 : i32
      %62 = tpu.memref_slice %arg24[%c2_i32] : memref<4x!tpu.dma_semaphore, #tpu.memory_space<semaphore_mem>> -> memref<1x!tpu.dma_semaphore, #tpu.memory_space<semaphore_mem>>
      %63 = tpu.memref_squeeze %62 : memref<1x!tpu.dma_semaphore, #tpu.memory_space<semaphore_mem>> -> memref<!tpu.dma_semaphore, #tpu.memory_space<semaphore_mem>>
      tpu.wait_dma2 semaphore(%63 : memref<!tpu.dma_semaphore, #tpu.memory_space<semaphore_mem>>) src(%arg12 : memref<32x128xf32, #tpu.memory_space<any>>) dst(%arg22 : memref<32x128xf32, #tpu.memory_space<vmem>>)
      %c3_i32 = arith.constant 3 : i32
      %64 = tpu.memref_slice %arg24[%c3_i32] : memref<4x!tpu.dma_semaphore, #tpu.memory_space<semaphore_mem>> -> memref<1x!tpu.dma_semaphore, #tpu.memory_space<semaphore_mem>>
      %65 = tpu.memref_squeeze %64 : memref<1x!tpu.dma_semaphore, #tpu.memory_space<semaphore_mem>> -> memref<!tpu.dma_semaphore, #tpu.memory_space<semaphore_mem>>
      tpu.wait_dma2 semaphore(%65 : memref<!tpu.dma_semaphore, #tpu.memory_space<semaphore_mem>>) src(%arg13 : memref<1x128xf32, #tpu.memory_space<any>>) dst(%arg23 : memref<1x128xf32, #tpu.memory_space<vmem>>)
      %c0_32 = arith.constant 0 : index
      %c0_33 = arith.constant 0 : index
      %66 = vector.load %arg18[%c0_32, %c0_33] : memref<2x1xf32, #tpu.memory_space<vmem>>, vector<2x1xf32>
      %67 = tpu.reciprocal %66 {approx = true} : vector<2x1xf32> -> vector<2x1xf32>
      %c0_34 = arith.constant 0 : index
      %c0_35 = arith.constant 0 : index
      %68 = vector.load %arg19[%c0_34, %c0_35] : memref<2x64xf32, #tpu.memory_space<vmem>>, vector<2x64xf32>
      %69 = vector.broadcast %67 : vector<2x1xf32> to vector<2x64xf32>
      %70 = arith.mulf %68, %69 : vector<2x64xf32>
      %c0_36 = arith.constant 0 : index
      %c0_37 = arith.constant 0 : index
      %71 = vector.load %arg20[%c0_36, %c0_37] : memref<64x128xf32, #tpu.memory_space<vmem>>, vector<64x128xf32>
      %cst_38 = arith.constant dense<0.000000e+00> : vector<2x128xf32>
      %72 = tpu.matmul %70, %71, %cst_38 {dimension_numbers = #tpu.dot_dimension_numbers<[1], [0], [0], [1], [0, 0, 1, 1], [], []>} : vector<2x64xf32>, vector<64x128xf32>, vector<2x128xf32> -> vector<2x128xf32>
      %c0_39 = arith.constant 0 : index
      %c0_40 = arith.constant 0 : index
      %73 = vector.load %arg2[%c0_39, %c0_40] : memref<2x32xf32, #tpu.memory_space<vmem>>, vector<2x32xf32>
      %c0_41 = arith.constant 0 : index
      %c0_42 = arith.constant 0 : index
      %74 = vector.load %arg21[%c0_41, %c0_42] : memref<32x128xf32, #tpu.memory_space<vmem>>, vector<32x128xf32>
      %cst_43 = arith.constant dense<0.000000e+00> : vector<2x128xf32>
      %75 = tpu.matmul %73, %74, %cst_43 {dimension_numbers = #tpu.dot_dimension_numbers<[1], [0], [0], [1], [0, 0, 1, 1], [], []>} : vector<2x32xf32>, vector<32x128xf32>, vector<2x128xf32> -> vector<2x128xf32>
      %76 = arith.addf %72, %75 : vector<2x128xf32>
      %c0_44 = arith.constant 0 : index
      %c0_45 = arith.constant 0 : index
      %77 = vector.load %arg3[%c0_44, %c0_45] : memref<2x32xf32, #tpu.memory_space<vmem>>, vector<2x32xf32>
      %c0_46 = arith.constant 0 : index
      %c0_47 = arith.constant 0 : index
      %78 = vector.load %arg22[%c0_46, %c0_47] : memref<32x128xf32, #tpu.memory_space<vmem>>, vector<32x128xf32>
      %cst_48 = arith.constant dense<0.000000e+00> : vector<2x128xf32>
      %79 = tpu.matmul %77, %78, %cst_48 {dimension_numbers = #tpu.dot_dimension_numbers<[1], [0], [0], [1], [0, 0, 1, 1], [], []>} : vector<2x32xf32>, vector<32x128xf32>, vector<2x128xf32> -> vector<2x128xf32>
      %80 = arith.addf %76, %79 : vector<2x128xf32>
      %c0_49 = arith.constant 0 : index
      %c0_50 = arith.constant 0 : index
      %81 = vector.load %arg23[%c0_49, %c0_50] : memref<1x128xf32, #tpu.memory_space<vmem>>, vector<1x128xf32>
      %82 = vector.broadcast %81 : vector<1x128xf32> to vector<2x128xf32>
      %83 = arith.addf %80, %82 : vector<2x128xf32>
      %84 = vector.extract_strided_slice %83 {offsets = [0, 0], sizes = [2, 32], strides = [1, 1]} : vector<2x128xf32> to vector<2x32xf32>
      %85 = arith.negf %84 : vector<2x32xf32>
      %86 = math.exp %85 : vector<2x32xf32>
      %cst_51 = arith.constant 1.000000e+00 : f32
      %87 = vector.broadcast %cst_51 : f32 to vector<2x32xf32>
      %88 = arith.addf %87, %86 : vector<2x32xf32>
      %89 = arith.divf %87, %88 : vector<2x32xf32>
      %90 = vector.extract_strided_slice %83 {offsets = [0, 32], sizes = [2, 32], strides = [1, 1]} : vector<2x128xf32> to vector<2x32xf32>
      %91 = arith.negf %90 : vector<2x32xf32>
      %92 = math.exp %91 : vector<2x32xf32>
      %cst_52 = arith.constant 1.000000e+00 : f32
      %93 = vector.broadcast %cst_52 : f32 to vector<2x32xf32>
      %94 = arith.addf %93, %92 : vector<2x32xf32>
      %95 = arith.divf %93, %94 : vector<2x32xf32>
      %96 = vector.extract_strided_slice %83 {offsets = [0, 64], sizes = [2, 32], strides = [1, 1]} : vector<2x128xf32> to vector<2x32xf32>
      %97 = math.tanh %96 : vector<2x32xf32>
      %98 = vector.extract_strided_slice %83 {offsets = [0, 96], sizes = [2, 32], strides = [1, 1]} : vector<2x128xf32> to vector<2x32xf32>
      %99 = arith.negf %98 : vector<2x32xf32>
      %100 = math.exp %99 : vector<2x32xf32>
      %cst_53 = arith.constant 1.000000e+00 : f32
      %101 = vector.broadcast %cst_53 : f32 to vector<2x32xf32>
      %102 = arith.addf %101, %100 : vector<2x32xf32>
      %103 = arith.divf %101, %102 : vector<2x32xf32>
      %c0_54 = arith.constant 0 : index
      %c0_55 = arith.constant 0 : index
      %104 = vector.load %arg4[%c0_54, %c0_55] : memref<2x32xf32, #tpu.memory_space<vmem>>, vector<2x32xf32>
      %105 = arith.mulf %95, %104 : vector<2x32xf32>
      %106 = arith.mulf %89, %97 : vector<2x32xf32>
      %107 = arith.addf %105, %106 : vector<2x32xf32>
      %108 = math.tanh %107 : vector<2x32xf32>
      %109 = arith.mulf %103, %108 : vector<2x32xf32>
      %c0_56 = arith.constant 0 : index
      %c0_57 = arith.constant 0 : index
      %110 = vector.load %arg14[%c0_56, %c0_57] : memref<2x32xf32, #tpu.memory_space<vmem>>, vector<2x32xf32>
      tpu.vector_store %arg14[%c0_56, %c0_57], %109 {strides = array<i32>} : memref<2x32xf32, #tpu.memory_space<vmem>>, vector<2x32xf32>,
      %c0_58 = arith.constant 0 : index
      %c0_59 = arith.constant 0 : index
      %111 = vector.load %arg15[%c0_58, %c0_59] : memref<2x32xf32, #tpu.memory_space<vmem>>, vector<2x32xf32>
      tpu.vector_store %arg15[%c0_58, %c0_59], %107 {strides = array<i32>} : memref<2x32xf32, #tpu.memory_space<vmem>>, vector<2x32xf32>,
    } else {
    }
    return
  }
  func.func @transform_0(%arg0: i32, %arg1: i32) -> (i32, i32) {
    %c0_i32 = arith.constant 0 : i32
    %c0_i32_0 = arith.constant 0 : i32
    return %arg0, %c0_i32 : i32, i32
  }
  func.func @transform_1(%arg0: i32, %arg1: i32) -> (i32, i32) {
    %c0_i32 = arith.constant 0 : i32
    %c0_i32_0 = arith.constant 0 : i32
    return %arg0, %c0_i32 : i32, i32
  }
  func.func @transform_2(%arg0: i32, %arg1: i32) -> (i32, i32) {
    %c0_i32 = arith.constant 0 : i32
    %c0_i32_0 = arith.constant 0 : i32
    return %arg0, %c0_i32 : i32, i32
  }
  func.func @transform_3(%arg0: i32, %arg1: i32) -> (i32, i32, i32) {
    %c0_i32 = arith.constant 0 : i32
    %c0_i32_0 = arith.constant 0 : i32
    return %arg0, %arg1, %c0_i32 : i32, i32, i32
  }
  func.func @transform_4(%arg0: i32, %arg1: i32) -> (i32, i32) {
    %c0_i32 = arith.constant 0 : i32
    %c0_i32_0 = arith.constant 0 : i32
    %c0_i32_1 = arith.constant 0 : i32
    return %c0_i32, %c0_i32_0 : i32, i32
  }
  func.func @transform_5(%arg0: i32, %arg1: i32) -> (i32, i32) {
    %c0_i32 = arith.constant 0 : i32
    %c0_i32_0 = arith.constant 0 : i32
    %c0_i32_1 = arith.constant 0 : i32
    return %c0_i32, %c0_i32_0 : i32, i32
  }
  func.func @transform_6(%arg0: i32, %arg1: i32) -> (i32, i32) {
    %c0_i32 = arith.constant 0 : i32
    %c0_i32_0 = arith.constant 0 : i32
    %c0_i32_1 = arith.constant 0 : i32
    return %c0_i32, %c0_i32_0 : i32, i32
  }
  func.func @transform_7(%arg0: i32, %arg1: i32) -> (i32, i32) {
    %c0_i32 = arith.constant 0 : i32
    %c0_i32_0 = arith.constant 0 : i32
    %c0_i32_1 = arith.constant 0 : i32
    return %c0_i32, %c0_i32_0 : i32, i32
  }
  func.func @transform_12(%arg0: i32, %arg1: i32) -> (i32, i32) {
    %c0_i32 = arith.constant 0 : i32
    %c0_i32_0 = arith.constant 0 : i32
    return %arg0, %c0_i32 : i32, i32
  }
  func.func @transform_13(%arg0: i32, %arg1: i32) -> (i32, i32) {
    %c0_i32 = arith.constant 0 : i32
    %c0_i32_0 = arith.constant 0 : i32
    return %arg0, %c0_i32 : i32, i32
  }
}

module attributes {stable_mosaic.version = 11 : i64} {
  func.func @_fc_kernel(%arg0: i32, %arg1: memref<2x32xf32, #tpu.memory_space<vmem>>, %arg2: memref<32x128xf32, #tpu.memory_space<vmem>>, %arg3: memref<1x128xf32, #tpu.memory_space<vmem>>, %arg4: memref<2x128xf32, #tpu.memory_space<vmem>>) attributes {dimension_semantics = [#tpu.dimension_semantics<parallel>], iteration_bounds = array<i64: 2>, scalar_prefetch = 0 : i64, scratch_operands = 0 : i64, tpu.core_type = #tpu.core_type<tc>, window_params = [{pipeline_mode = #tpu.pipeline_mode<synchronous>, transform_indices = @transform_0, window_bounds = array<i64: 2, 32>}, {transform_indices = @transform_1, window_bounds = array<i64: 32, 128>}, {transform_indices = @transform_2, window_bounds = array<i64: 1, 128>}, {transform_indices = @transform_3, window_bounds = array<i64: 2, 128>}]} {
    %c0 = arith.constant 0 : index
    %c0_0 = arith.constant 0 : index
    %0 = vector.load %arg1[%c0, %c0_0] : memref<2x32xf32, #tpu.memory_space<vmem>>, vector<2x32xf32>
    %c0_1 = arith.constant 0 : index
    %c0_2 = arith.constant 0 : index
    %1 = vector.load %arg2[%c0_1, %c0_2] : memref<32x128xf32, #tpu.memory_space<vmem>>, vector<32x128xf32>
    %cst = arith.constant dense<0.000000e+00> : vector<2x128xf32>
    %2 = tpu.matmul %0, %1, %cst {dimension_numbers = #tpu.dot_dimension_numbers<[1], [0], [0], [1], [0, 0, 1, 1], [], []>} : vector<2x32xf32>, vector<32x128xf32>, vector<2x128xf32> -> vector<2x128xf32>
    %c0_3 = arith.constant 0 : index
    %c0_4 = arith.constant 0 : index
    %3 = vector.load %arg3[%c0_3, %c0_4] : memref<1x128xf32, #tpu.memory_space<vmem>>, vector<1x128xf32>
    %4 = vector.broadcast %3 : vector<1x128xf32> to vector<2x128xf32>
    %5 = arith.addf %2, %4 : vector<2x128xf32>
    %c0_5 = arith.constant 0 : index
    %c0_6 = arith.constant 0 : index
    %6 = vector.load %arg4[%c0_5, %c0_6] : memref<2x128xf32, #tpu.memory_space<vmem>>, vector<2x128xf32>
    tpu.vector_store %arg4[%c0_5, %c0_6], %5 {strides = array<i32>} : memref<2x128xf32, #tpu.memory_space<vmem>>, vector<2x128xf32>,
    return
  }
  func.func @transform_0(%arg0: i32) -> (i32, i32) {
    %c0_i32 = arith.constant 0 : i32
    %c0_i32_0 = arith.constant 0 : i32
    %c0_i32_1 = arith.constant 0 : i32
    return %c0_i32, %c0_i32_0 : i32, i32
  }
  func.func @transform_1(%arg0: i32) -> (i32, i32) {
    %c0_i32 = arith.constant 0 : i32
    %c0_i32_0 = arith.constant 0 : i32
    return %c0_i32, %arg0 : i32, i32
  }
  func.func @transform_2(%arg0: i32) -> (i32, i32) {
    %c0_i32 = arith.constant 0 : i32
    %c0_i32_0 = arith.constant 0 : i32
    return %c0_i32, %arg0 : i32, i32
  }
  func.func @transform_3(%arg0: i32) -> (i32, i32) {
    %c0_i32 = arith.constant 0 : i32
    %c0_i32_0 = arith.constant 0 : i32
    return %c0_i32, %arg0 : i32, i32
  }
}

</mosaic_0001>

<llo_original>
// kernel: lstm_decoder_attention.3
$region0: #{lstm_decoder_attention.3}
  #allocation0 [shape = 'u32[]', space=smem, size = 0x4, offset = 0x4, fixed_abs, tag = 'smem constant byte address 0x4 - core index']
  #allocation1 [shape = 'u32[72,128]{1,0:T(1,128)}', space=vmem, size = 0x9000, scoped, tag = 'internal scratch']
  %s0 = inlined_call_operand.vmem [shape: f32[2,32], index: 0, kind: input, shape index: {}]
  %s1 = inlined_call_operand.vmem [shape: f32[32,256], index: 1, kind: input, shape index: {}]
  %s2 = inlined_call_operand.vmem [shape: f32[1,256], index: 2, kind: input, shape index: {}]
  %s3 = inlined_call_operand.vmem [shape: f32[2,256], index: 3, kind: output, shape index: {}]
  %s4 = sld [smem:[#allocation0]]
  $region83: #{lstm_decoder_attention.3} parent=0
    _
  %s6 = ssub.s32 1, %s4
  %s7 = scalar_select 0, %s6, %s4
  $region1: #{lstm_decoder_attention.3} parent=0
    #allocation2 [shape = 'u8[32768]{0}', space=vmem, size = 0x8000, scoped, tag = 'input window, operand 1']
    loop: start=0, step=1, limit=4
    $region2: #{lstm_decoder_attention.3} parent=1 // loop_pre_header
      _
    $region3: #{lstm_decoder_attention.3} parent=1 // loop_header
      %s9 = sphi 0, %s13
      %p10 = scmp.ge.s32.totalorder %s9, 4
      %s17 = sphi 0, %s17
      %s19 = sphi 0, %s17
      %s20 = sphi 0, %s19
      %s34 = sphi 0, %s20
      %s40 = sphi 0, %s42
      %s43 = sphi 0, %s40
      %s44 = sphi 0, %s43
      %s60 = sphi 0, %s44
      %s66 = sphi 0, %s68
      %s69 = sphi 0, %s66
      %s70 = sphi 0, %s69
      %s86 = sphi 0, %s70
      %s92 = sphi 0, %s94
      %s95 = sphi 0, %s92
      %s96 = sphi 0, %s95
      %s112 = sphi 0, %s96
    $region4: #{lstm_decoder_attention.3} parent=1 // loop_header_branch
      %12 = sbr.rel (%p10) target = $region8
    $region5: #{lstm_decoder_attention.3} parent=1 // loop_body
      %s14 = ssub.s32 %s9, 1
      %s15 = ssub.s32 %s9, 2
      %s16 = sadd.s32 %s9, 1
      %s18 = sadd.s32 %s17, 1
      %p21 = scmp.eq.s32.totalorder %s9, 1
      %p22 = scmp.ne.s32.totalorder %s17, %s19
      %p23 = scmp.eq.s32.totalorder %s9, 0
      %p24 = por %p22, %p23
      %p25 = scmp.ne.s32.totalorder %s17, %s19
      %p26 = scmp.eq.s32.totalorder %s14, 1
      %p27 = por %p25, %p26
      %p28 = scmp.ne.s32.totalorder %s19, %s20
      %p29 = scmp.eq.s32.totalorder %s14, 0
      %p30 = por %p28, %p29
      %p31 = scmp.ne.s32.totalorder %s19, %s20
      %p32 = scmp.eq.s32.totalorder %s15, 1
      %p33 = por %p31, %p32
      %p35 = scmp.ne.s32.totalorder %s20, %s34
      %p36 = scmp.eq.s32.totalorder %s15, 0
      %p37 = por %p35, %p36
      %s38 = ssub.s32 %s9, %s16
      %p39 = scmp.eq.s32.totalorder %s38, 0
      %s41 = sadd.s32 %s40, 1
      %s42 = scalar_select %p39, %s40, %s41
      %p45 = pneg %p39
      %p46 = scmp.eq.s32.totalorder %s9, 1
      %p47 = por %p45, %p46
      %p48 = scmp.ne.s32.totalorder %s40, %s43
      %p49 = scmp.eq.s32.totalorder %s9, 0
      %p50 = por %p48, %p49
      %p51 = scmp.ne.s32.totalorder %s40, %s43
      %p52 = scmp.eq.s32.totalorder %s14, 1
      %p53 = por %p51, %p52
      %p54 = scmp.ne.s32.totalorder %s43, %s44
      %p55 = scmp.eq.s32.totalorder %s14, 0
      %p56 = por %p54, %p55
      %p57 = scmp.ne.s32.totalorder %s43, %s44
      %p58 = scmp.eq.s32.totalorder %s15, 1
      %p59 = por %p57, %p58
      %p61 = scmp.ne.s32.totalorder %s44, %s60
      %p62 = scmp.eq.s32.totalorder %s15, 0
      %p63 = por %p61, %p62
      %s64 = ssub.s32 %s9, %s16
      %p65 = scmp.eq.s32.totalorder %s64, 0
      %s67 = sadd.s32 %s66, 1
      %s68 = scalar_select %p65, %s66, %s67
      %p71 = pneg %p65
      %p72 = scmp.eq.s32.totalorder %s9, 1
      %p73 = por %p71, %p72
      %p74 = scmp.ne.s32.totalorder %s66, %s69
      %p75 = scmp.eq.s32.totalorder %s9, 0
      %p76 = por %p74, %p75
      %p77 = scmp.ne.s32.totalorder %s66, %s69
      %p78 = scmp.eq.s32.totalorder %s14, 1
      %p79 = por %p77, %p78
      %p80 = scmp.ne.s32.totalorder %s69, %s70
      %p81 = scmp.eq.s32.totalorder %s14, 0
      %p82 = por %p80, %p81
      %p83 = scmp.ne.s32.totalorder %s69, %s70
      %p84 = scmp.eq.s32.totalorder %s15, 1
      %p85 = por %p83, %p84
      %p87 = scmp.ne.s32.totalorder %s70, %s86
      %p88 = scmp.eq.s32.totalorder %s15, 0
      %p89 = por %p87, %p88
      %s90 = ssub.s32 %s9, %s16
      %p91 = scmp.eq.s32.totalorder %s90, 0
      %s93 = sadd.s32 %s92, 1
      %s94 = scalar_select %p91, %s92, %s93
      %p97 = pneg %p91
      %p98 = scmp.eq.s32.totalorder %s9, 1
      %p99 = por %p97, %p98
      %p100 = scmp.ne.s32.totalorder %s92, %s95
      %p101 = scmp.eq.s32.totalorder %s9, 0
      %p102 = por %p100, %p101
      %p103 = scmp.ne.s32.totalorder %s92, %s95
      %p104 = scmp.eq.s32.totalorder %s14, 1
      %p105 = por %p103, %p104
      %p106 = scmp.ne.s32.totalorder %s95, %s96
      %p107 = scmp.eq.s32.totalorder %s14, 0
      %p108 = por %p106, %p107
      %p109 = scmp.ne.s32.totalorder %s95, %s96
      %p110 = scmp.eq.s32.totalorder %s15, 1
      %p111 = por %p109, %p110
      %p113 = scmp.ne.s32.totalorder %s96, %s112
      %p114 = scmp.eq.s32.totalorder %s15, 0
      %p115 = por %p113, %p114
      %p116 = scmp.le.s32.totalorder 1, %s9
      %p117 = scmp.lt.s32.totalorder %s9, 3
      %p118 = pnand %p116, %p117
      %p119 = pneg %p118
      // Predicated region
      $region9: #{lstm_decoder_attention.3} parent=5 // pred_check
        _
      $region10: #{lstm_decoder_attention.3} parent=5 // pred_check_branch
        %121 = sbr.rel (%p118) target = $region12
      $region11: #{lstm_decoder_attention.3} parent=5 // pred_region
        %s122 = ssub.s32 %s9, 1
        // Predicated region
        $region13: #{lstm_decoder_attention.3} parent=11 // pred_check
          %p123 = pneg %p30
        $region14: #{lstm_decoder_attention.3} parent=11 // pred_check_branch
          %125 = sbr.rel (%p123) target = $region16
        $region15: #{lstm_decoder_attention.3} parent=11 // pred_region
          _
        $region16: #{lstm_decoder_attention.3} parent=11 // pred_fallthru
          _
      $region12: #{lstm_decoder_attention.3} parent=5 // pred_fallthru
        _
      %p126 = scmp.lt.s32.totalorder %s9, 2
      // Predicated region
      $region17: #{lstm_decoder_attention.3} parent=5 // pred_check
        %p127 = pneg %p126
      $region18: #{lstm_decoder_attention.3} parent=5 // pred_check_branch
        %129 = sbr.rel (%p127) target = $region20
      $region19: #{lstm_decoder_attention.3} parent=5 // pred_region
        // Predicated region
        $region21: #{lstm_decoder_attention.3} parent=19 // pred_check
          %p130 = pneg %p50
        $region22: #{lstm_decoder_attention.3} parent=19 // pred_check_branch
          %132 = sbr.rel (%p130) target = $region24
        $region23: #{lstm_decoder_attention.3} parent=19 // pred_region
          %s133 = sand.u32 %s40, 1
          %s134 = sand.u32 %s40, 1
          %s135 = smul.addr %s134, 32
          %s136 = scalar_lea.vmem [#allocation2], %s135
          %s137 = smul.addr %s9, 8
          %s138 = scalar_lea.vmem %s1, %s137
          // Predicated region
          $region25: #{lstm_decoder_attention.3} parent=23 // pred_check
            _
          $region26: #{lstm_decoder_attention.3} parent=23 // pred_check_branch
            %140 = sbr.rel (0) target = $region28
          $region27: #{lstm_decoder_attention.3} parent=23 // pred_region
            // Predicated region
            $region29: #{lstm_decoder_attention.3} parent=27 // pred_check
              _
            $region30: #{lstm_decoder_attention.3} parent=27 // pred_check_branch
              %142 = sbr.rel (0) target = $region32
            $region31: #{lstm_decoder_attention.3} parent=27 // pred_region
              // Predicated region
              $region44: #{lstm_decoder_attention.3} parent=31 // pred_check
                _
              $region45: #{lstm_decoder_attention.3} parent=31 // pred_check_branch
                %164 = sbr.rel (0) target = $region47
              $region46: #{lstm_decoder_attention.3} parent=31 // pred_region
                loop: start=0, step=1, limit=1
                $region48: #{lstm_decoder_attention.3} parent=46 // loop_pre_header
                  _
                $region49: #{lstm_decoder_attention.3} parent=46 // loop_header
                  %s166 = sphi 0, %s170
                  %p167 = scmp.ge.s32.totalorder %s166, 1
                  %s171 = sphi %s138, %s138
                  %s172 = sphi %s136, %s136
                $region50: #{lstm_decoder_attention.3} parent=46 // loop_header_branch
                  %169 = sbr.rel (%p167) target = $region54
                $region51: #{lstm_decoder_attention.3} parent=46 // loop_body
                  %v173 = vld [vmem:[%s171] sm:$0xff]
                  %174 = vst [vmem:[%s172] sm:$0xff] %v173
                  %v175 = vld [vmem:[%s171 + $0x10] sm:$0xff]
                  %176 = vst [vmem:[%s172 + $0x8] sm:$0xff] %v175
                  %v177 = vld [vmem:[%s171 + $0x20] sm:$0xff]
                  %178 = vst [vmem:[%s172 + $0x10] sm:$0xff] %v177
                  %v179 = vld [vmem:[%s171 + $0x30] sm:$0xff]
                  %180 = vst [vmem:[%s172 + $0x18] sm:$0xff] %v179
                $region52: #{lstm_decoder_attention.3} parent=46 // loop_footer
                  %s170 = sadd.s32 1, %s166
                $region53: #{lstm_decoder_attention.3} parent=46 // loop_footer_branch
                  %165 = sbr.rel target = $region49
                $region54: #{lstm_decoder_attention.3} parent=46 // loop_exit
                  _
              $region47: #{lstm_decoder_attention.3} parent=31 // pred_fallthru
                _
              // Predicated region
              $region55: #{lstm_decoder_attention.3} parent=31 // pred_check
                _
              $region56: #{lstm_decoder_attention.3} parent=31 // pred_check_branch
                %182 = sbr.rel target = $region58
              $region57: #{lstm_decoder_attention.3} parent=31 // pred_region
                _
              $region58: #{lstm_decoder_attention.3} parent=31 // pred_fallthru
                _
            $region32: #{lstm_decoder_attention.3} parent=27 // pred_fallthru
              _
            // Predicated region
            $region33: #{lstm_decoder_attention.3} parent=27 // pred_check
              _
            $region34: #{lstm_decoder_attention.3} parent=27 // pred_check_branch
              %144 = sbr.rel target = $region36
            $region35: #{lstm_decoder_attention.3} parent=27 // pred_region
              %s146 = ssub.s32 256, 1
              loop: start=0, step=1, limit=1
              $region37: #{lstm_decoder_attention.3} parent=35 // loop_pre_header
                _
              $region38: #{lstm_decoder_attention.3} parent=35 // loop_header
                %s148 = sphi 0, %s152
                %p149 = scmp.ge.s32.totalorder %s148, 1
                %s153 = sphi %s138, %s138
                %s154 = sphi %s136, %s136
              $region39: #{lstm_decoder_attention.3} parent=35 // loop_header_branch
                %151 = sbr.rel (%p149) target = $region43
              $region40: #{lstm_decoder_attention.3} parent=35 // loop_body
                %v155 = vld [vmem:[%s153] sm:%s146]
                %156 = vst [vmem:[%s154] sm:%s146] %v155
                %v157 = vld [vmem:[%s153 + $0x10] sm:%s146]
                %158 = vst [vmem:[%s154 + $0x8] sm:%s146] %v157
                %v159 = vld [vmem:[%s153 + $0x20] sm:%s146]
                %160 = vst [vmem:[%s154 + $0x10] sm:%s146] %v159
                %v161 = vld [vmem:[%s153 + $0x30] sm:%s146]
                %162 = vst [vmem:[%s154 + $0x18] sm:%s146] %v161
              $region41: #{lstm_decoder_attention.3} parent=35 // loop_footer
                %s152 = sadd.s32 1, %s148
              $region42: #{lstm_decoder_attention.3} parent=35 // loop_footer_branch
                %147 = sbr.rel target = $region38
              $region43: #{lstm_decoder_attention.3} parent=35 // loop_exit
                _
            $region36: #{lstm_decoder_attention.3} parent=27 // pred_fallthru
              _
          $region28: #{lstm_decoder_attention.3} parent=23 // pred_fallthru
            _
          %183 = vnop
        $region24: #{lstm_decoder_attention.3} parent=19 // pred_fallthru
          _
        // Predicated region
        $region59: #{lstm_decoder_attention.3} parent=19 // pred_check
          %p184 = pneg %p76
        $region60: #{lstm_decoder_attention.3} parent=19 // pred_check_branch
          %186 = sbr.rel (%p184) target = $region62
        $region61: #{lstm_decoder_attention.3} parent=19 // pred_region
          %p187 = scmp.lt.s32.totalorder %s9, 1
          %s188 = scalar_select %p187, %s9, 1
          %s189 = scalar_lea.vmem %s2, %s188
        $region62: #{lstm_decoder_attention.3} parent=19 // pred_fallthru
          _
      $region20: #{lstm_decoder_attention.3} parent=5 // pred_fallthru
        _
      %p190 = scmp.le.s32.totalorder 1, %s9
      %p191 = scmp.lt.s32.totalorder %s9, 3
      %p192 = pnand %p190, %p191
      %p193 = pneg %p192
      // Predicated region
      $region63: #{lstm_decoder_attention.3} parent=5 // pred_check
        _
      $region64: #{lstm_decoder_attention.3} parent=5 // pred_check_branch
        %195 = sbr.rel (%p192) target = $region66
      $region65: #{lstm_decoder_attention.3} parent=5 // pred_region
        %s196 = ssub.s32 %s9, 1
        %s197 = sand.u32 %s43, 1
        %s198 = sand.u32 %s43, 1
        %s199 = smul.addr %s198, 32
        %s200 = scalar_lea.vmem [#allocation2], %s199
        // Predicated region
        $region67: #{lstm_decoder_attention.3} parent=65 // pred_check
          %p201 = pneg %p56
        $region68: #{lstm_decoder_attention.3} parent=65 // pred_check_branch
          %203 = sbr.rel (%p201) target = $region70
        $region69: #{lstm_decoder_attention.3} parent=65 // pred_region
          _
        $region70: #{lstm_decoder_attention.3} parent=65 // pred_fallthru
          _
        %p204 = pneg %p30
        %p205 = pneg %p27
        %s206 = sand.u32 %s43, 1
        %s207 = sand.u32 %s43, 1
        %s208 = smul.addr %s207, 32
        %s209 = scalar_lea.vmem [#allocation2], %s208
        %p210 = pneg %p56
        %p211 = pneg %p53
        %p212 = scmp.lt.s32.totalorder %s14, 1
        %s213 = scalar_select %p212, %s14, 1
        %s214 = scalar_lea.vmem %s2, %s213
        %p215 = pneg %p82
        %p216 = pneg %p79
        %p217 = pneg %p108
        %p218 = pneg %p105
        %p219 = scmp.lt.s32.totalorder %s14, 1
        %s220 = scalar_select %p219, %s14, 1
        %s221 = smul.addr %s220, 2
        %s222 = scalar_lea.vmem %s3, %s221
        %p223 = scmp.lt.s32.totalorder %s14, 1
        %s224 = scalar_select %p223, %s14, 1
        %s225 = scalar_lea.vmem %s2, %s224
        %p226 = scmp.lt.s32.totalorder %s14, 1
        %s227 = scalar_select %p226, %s14, 1
        %s228 = smul.addr %s227, 2
        %s229 = scalar_lea.vmem %s3, %s228
        %v230 = vld [vmem:[%s0] sm:$0x3]
        %v231 = vld [vmem:[%s200] sm:$0xff]
        %v232 = vld [vmem:[%s200 + $0x8] sm:$0xff]
        %v233 = vld [vmem:[%s200 + $0x10] sm:$0xff]
        %v234 = vld [vmem:[%s200 + $0x18] sm:$0xff]
        %v235 = vld [vmem:[%s225] sm:$0x1]
        %v237 = vperm.slane %v235, 0
        %vm239 = vcmask 261120
        %v241 = vsel %vm239, %v230, 0
        %243 = vmatpush.msra.mxu0 0.0
        %244 = vmatpush.msra.mxu0 0.0
        %245 = vmatpush.msra.mxu0 0.0
        %246 = vmatpush.msra.mxu0 0.0
        %247 = vmatpush.msra.mxu0 0.0
        %248 = vmatpush.msra.mxu0 0.0
        %249 = vmatpush.msra.mxu0 0.0
        %250 = vmatpush.msra.mxu0 0.0
        %251 = vmatpush.msra.mxu0 0.0
        %252 = vmatpush.msra.mxu0 0.0
        %253 = vmatpush.msra.mxu0 0.0
        %254 = vmatpush.msra.mxu0 0.0
        %255 = vmatpush.msra.mxu0 %v234
        %256 = vmatpush.msra.mxu0 %v233
        %257 = vmatpush.msra.mxu0 %v232
        %258 = vmatpush.msra.mxu0 %v231
        %259 = vmatmul.f32.gmra.mxu0 %v241
        %v260 = vpop.f32.mrf.mxu0
        %v261 = vadd.f32 %v237, %v260
        %262 = vdwg.mxu0
        %263 = vst [vmem:[%s229] sm:$0x3] %v261
        %p264 = scmp.lt.s32.totalorder %s14, 1
        %s265 = scalar_select %p264, %s14, 1
        %s266 = smul.addr %s265, 2
        %s267 = scalar_lea.vmem %s3, %s266
        // Predicated region
        $region71: #{lstm_decoder_attention.3} parent=65 // pred_check
          %p268 = pneg %p105
        $region72: #{lstm_decoder_attention.3} parent=65 // pred_check_branch
          %270 = sbr.rel (%p268) target = $region74
        $region73: #{lstm_decoder_attention.3} parent=65 // pred_region
          _
        $region74: #{lstm_decoder_attention.3} parent=65 // pred_fallthru
          _
      $region66: #{lstm_decoder_attention.3} parent=5 // pred_fallthru
        _
      %p271 = scmp.le.s32.totalorder 2, %s9
      // Predicated region
      $region75: #{lstm_decoder_attention.3} parent=5 // pred_check
        %p272 = pneg %p271
      $region76: #{lstm_decoder_attention.3} parent=5 // pred_check_branch
        %274 = sbr.rel (%p272) target = $region78
      $region77: #{lstm_decoder_attention.3} parent=5 // pred_region
        %s275 = ssub.s32 %s9, 2
        // Predicated region
        $region79: #{lstm_decoder_attention.3} parent=77 // pred_check
          %p276 = pneg %p111
        $region80: #{lstm_decoder_attention.3} parent=77 // pred_check_branch
          %278 = sbr.rel (%p276) target = $region82
        $region81: #{lstm_decoder_attention.3} parent=77 // pred_region
          %p279 = scmp.lt.s32.totalorder %s15, 1
          %s280 = scalar_select %p279, %s15, 1
          %s281 = smul.addr %s280, 2
          %s282 = scalar_lea.vmem %s3, %s281
        $region82: #{lstm_decoder_attention.3} parent=77 // pred_fallthru
          _
      $region78: #{lstm_decoder_attention.3} parent=5 // pred_fallthru
        _
    $region6: #{lstm_decoder_attention.3} parent=1 // loop_footer
      %s13 = sadd.s32 1, %s9
    $region7: #{lstm_decoder_attention.3} parent=1 // loop_footer_branch
      %8 = sbr.rel target = $region3
    $region8: #{lstm_decoder_attention.3} parent=1 // loop_exit
      _

// kernel: lstm_decoder_attention.2
$region0: #{lstm_decoder_attention.2}
  #allocation0 [shape = 'u32[]', space=smem, size = 0x4, offset = 0x4, fixed_abs, tag = 'smem constant byte address 0x4 - core index']
  #allocation1 [shape = 'u32[72,128]{1,0:T(1,128)}', space=vmem, size = 0x9000, scoped, tag = 'internal scratch']
  #allocation2 [shape = 'f32[2,32]{1,0:T(2,128)}', space=vmem, size = 0x400, scoped, tag = 'scratch operand']
  #allocation3 [shape = 'f32[2,1]{1,0:T(2,128)}', space=vmem, size = 0x400, scoped, tag = 'scratch operand']
  #allocation4 [shape = 'f32[2,1]{1,0:T(2,128)}', space=vmem, size = 0x400, scoped, tag = 'scratch operand']
  #allocation5 [shape = 'f32[2,64]{1,0:T(2,128)}', space=vmem, size = 0x400, scoped, tag = 'scratch operand']
  #allocation6 [shape = 'f32[64,128]{1,0:T(8,128)}', space=vmem, size = 0x8000, scoped, tag = 'scratch operand']
  #allocation7 [shape = 'f32[32,128]{1,0:T(8,128)}', space=vmem, size = 0x4000, scoped, tag = 'scratch operand']
  #allocation8 [shape = 'f32[32,128]{1,0:T(8,128)}', space=vmem, size = 0x4000, scoped, tag = 'scratch operand']
  #allocation9 [shape = 'f32[1,128]{1,0:T(1,128)}', space=vmem, size = 0x200, scoped, tag = 'scratch operand']
  #allocation10 [shape = 's32[4]{0}', space=sflag, size = 0x10, scoped, tag = 'scratch operand']
  #allocation14 [shape = 's32[]', space=sflag, size = 0x4, offset = 0, fixed_abs, tag = 'sflag constant byte address 0x0 - dummy sync flag']
  #allocation15 [shape = 's32[]', space=sflag, size = 0x4, offset = 0, fixed_abs, tag = 'sflag constant byte address 0x0 - dummy sync flag']
  #allocation16 [shape = 's32[]', space=sflag, size = 0x4, offset = 0, fixed_abs, tag = 'sflag constant byte address 0x0 - dummy sync flag']
  #allocation17 [shape = 's32[]', space=sflag, size = 0x4, offset = 0, fixed_abs, tag = 'sflag constant byte address 0x0 - dummy sync flag']
  %s0 = inlined_call_operand.vmem [shape: f32[2,32], index: 0, kind: input, shape index: {}]
  %s1 = inlined_call_operand.vmem [shape: f32[2,32], index: 1, kind: input, shape index: {}]
  %s2 = inlined_call_operand.vmem [shape: f32[2,32], index: 2, kind: input, shape index: {}]
  %s3 = inlined_call_operand.vmem [shape: f32[2,16,64], index: 3, kind: input, shape index: {}]
  %s4 = inlined_call_operand.vmem [shape: f32[32,32], index: 4, kind: input, shape index: {}]
  %s5 = inlined_call_operand.vmem [shape: f32[64,32], index: 5, kind: input, shape index: {}]
  %s6 = inlined_call_operand.vmem [shape: f32[1,32], index: 6, kind: input, shape index: {}]
  %s7 = inlined_call_operand.vmem [shape: f32[1,32], index: 7, kind: input, shape index: {}]
  %s8 = inlined_call_operand.vmem [shape: f32[64,128], index: 8, kind: input, shape index: {}]
  %s9 = inlined_call_operand.vmem [shape: f32[32,128], index: 9, kind: input, shape index: {}]
  %s10 = inlined_call_operand.vmem [shape: f32[32,128], index: 10, kind: input, shape index: {}]
  %s11 = inlined_call_operand.vmem [shape: f32[1,128], index: 11, kind: input, shape index: {}]
  %s12 = inlined_call_operand.vmem [shape: f32[2,32], index: 12, kind: output, shape index: {0}]
  %s13 = inlined_call_operand.hbm [shape: f32[2,32], index: 13, kind: output, shape index: {1}]
  %14 = xla_tuple %s12, %s13
  %s15 = sld [smem:[#allocation0]]
  $region206: #{lstm_decoder_attention.2} parent=0
    _
  %s17 = ssub.s32 1, %s15
  %s18 = scalar_select 0, %s17, %s15
  $region1: #{lstm_decoder_attention.2} parent=0
    #allocation11 [shape = 'u8[16384]{0}', space=vmem, size = 0x4000, scoped, tag = 'input window, operand 3']
    #allocation12 [shape = 'u8[1024]{0}', space=vmem, size = 0x400, scoped, tag = 'output window, operand 1, single buffered']
    #allocation13 [shape = 's32[2]{0}', space=sflag, size = 0x8, scoped, tag = 'scoped memory for lstm_decoder_attention.2']
    %19 = vsyncpa [#allocation13], 0
    loop: start=0, step=1, limit=4
    $region2: #{lstm_decoder_attention.2} parent=1 // loop_pre_header
      _
    $region3: #{lstm_decoder_attention.2} parent=1 // loop_header
      %s21 = sphi 0, %s25
      %p22 = scmp.ge.s32.totalorder %s21, 4
      %s28 = sphi 0, %s40
      %s29 = sphi 0, %s36
      %s30 = sphi 0, %s28
      %s31 = sphi 0, %s29
      %s32 = sphi 0, %s30
      %s33 = sphi 0, %s31
      %s43 = sphi 0, %s45
      %s46 = sphi 0, %s43
      %s47 = sphi 0, %s46
      %s63 = sphi 0, %s47
      %s69 = sphi 0, %s71
      %s72 = sphi 0, %s69
      %s73 = sphi 0, %s72
      %s89 = sphi 0, %s73
      %s95 = sphi 0, %s97
      %s98 = sphi 0, %s95
      %s99 = sphi 0, %s98
      %s115 = sphi 0, %s99
      %s123 = sphi 0, %s125
      %s126 = sphi 0, %s123
      %s127 = sphi 0, %s126
      %s143 = sphi 0, %s127
      %s147 = sphi 0, %s147
      %s149 = sphi 0, %s147
      %s150 = sphi 0, %s149
      %s164 = sphi 0, %s150
      %s168 = sphi 0, %s168
      %s170 = sphi 0, %s168
      %s171 = sphi 0, %s170
      %s185 = sphi 0, %s171
      %s189 = sphi 0, %s189
      %s191 = sphi 0, %s189
      %s192 = sphi 0, %s191
      %s206 = sphi 0, %s192
      %s210 = sphi 0, %s210
      %s212 = sphi 0, %s210
      %s213 = sphi 0, %s212
      %s227 = sphi 0, %s213
      %s233 = sphi 0, %s235
      %s236 = sphi 0, %s233
      %s237 = sphi 0, %s236
      %s253 = sphi 0, %s237
      %s259 = sphi 0, %s261
      %s262 = sphi 0, %s259
      %s263 = sphi 0, %s262
      %s279 = sphi 0, %s263
    $region4: #{lstm_decoder_attention.2} parent=1 // loop_header_branch
      %24 = sbr.rel (%p22) target = $region8
    $region5: #{lstm_decoder_attention.2} parent=1 // loop_body
      %s26 = ssub.s32 %s21, 1
      %s27 = ssub.s32 %s21, 2
      %s34 = sadd.s32 1, %s29
      %p35 = scmp.ge.s32.totalorder %s34, 2
      %s36 = scalar_select %p35, 0, %s34
      %s37 = sadd.s32 1, %s28
      %s38 = scalar_select %p35, %s37, %s28
      %p39 = scmp.ge.s32.totalorder %s38, 1
      %s40 = scalar_select %p39, 0, %s38
      %s41 = ssub.s32 %s28, %s40
      %p42 = scmp.eq.s32.totalorder %s41, 0
      %s44 = sadd.s32 %s43, 1
      %s45 = scalar_select %p42, %s43, %s44
      %p48 = pneg %p42
      %p49 = scmp.eq.s32.totalorder %s21, 1
      %p50 = por %p48, %p49
      %p51 = scmp.ne.s32.totalorder %s43, %s46
      %p52 = scmp.eq.s32.totalorder %s21, 0
      %p53 = por %p51, %p52
      %p54 = scmp.ne.s32.totalorder %s43, %s46
      %p55 = scmp.eq.s32.totalorder %s26, 1
      %p56 = por %p54, %p55
      %p57 = scmp.ne.s32.totalorder %s46, %s47
      %p58 = scmp.eq.s32.totalorder %s26, 0
      %p59 = por %p57, %p58
      %p60 = scmp.ne.s32.totalorder %s46, %s47
      %p61 = scmp.eq.s32.totalorder %s27, 1
      %p62 = por %p60, %p61
      %p64 = scmp.ne.s32.totalorder %s47, %s63
      %p65 = scmp.eq.s32.totalorder %s27, 0
      %p66 = por %p64, %p65
      %s67 = ssub.s32 %s28, %s40
      %p68 = scmp.eq.s32.totalorder %s67, 0
      %s70 = sadd.s32 %s69, 1
      %s71 = scalar_select %p68, %s69, %s70
      %p74 = pneg %p68
      %p75 = scmp.eq.s32.totalorder %s21, 1
      %p76 = por %p74, %p75
      %p77 = scmp.ne.s32.totalorder %s69, %s72
      %p78 = scmp.eq.s32.totalorder %s21, 0
      %p79 = por %p77, %p78
      %p80 = scmp.ne.s32.totalorder %s69, %s72
      %p81 = scmp.eq.s32.totalorder %s26, 1
      %p82 = por %p80, %p81
      %p83 = scmp.ne.s32.totalorder %s72, %s73
      %p84 = scmp.eq.s32.totalorder %s26, 0
      %p85 = por %p83, %p84
      %p86 = scmp.ne.s32.totalorder %s72, %s73
      %p87 = scmp.eq.s32.totalorder %s27, 1
      %p88 = por %p86, %p87
      %p90 = scmp.ne.s32.totalorder %s73, %s89
      %p91 = scmp.eq.s32.totalorder %s27, 0
      %p92 = por %p90, %p91
      %s93 = ssub.s32 %s28, %s40
      %p94 = scmp.eq.s32.totalorder %s93, 0
      %s96 = sadd.s32 %s95, 1
      %s97 = scalar_select %p94, %s95, %s96
      %p100 = pneg %p94
      %p101 = scmp.eq.s32.totalorder %s21, 1
      %p102 = por %p100, %p101
      %p103 = scmp.ne.s32.totalorder %s95, %s98
      %p104 = scmp.eq.s32.totalorder %s21, 0
      %p105 = por %p103, %p104
      %p106 = scmp.ne.s32.totalorder %s95, %s98
      %p107 = scmp.eq.s32.totalorder %s26, 1
      %p108 = por %p106, %p107
      %p109 = scmp.ne.s32.totalorder %s98, %s99
      %p110 = scmp.eq.s32.totalorder %s26, 0
      %p111 = por %p109, %p110
      %p112 = scmp.ne.s32.totalorder %s98, %s99
      %p113 = scmp.eq.s32.totalorder %s27, 1
      %p114 = por %p112, %p113
      %p116 = scmp.ne.s32.totalorder %s99, %s115
      %p117 = scmp.eq.s32.totalorder %s27, 0
      %p118 = por %p116, %p117
      %s119 = ssub.s32 %s28, %s40
      %s120 = ssub.s32 %s29, %s36
      %s121 = sor.u32 %s119, %s120
      %p122 = scmp.eq.s32.totalorder %s121, 0
      %s124 = sadd.s32 %s123, 1
      %s125 = scalar_select %p122, %s123, %s124
      %p128 = pneg %p122
      %p129 = scmp.eq.s32.totalorder %s21, 1
      %p130 = por %p128, %p129
      %p131 = scmp.ne.s32.totalorder %s123, %s126
      %p132 = scmp.eq.s32.totalorder %s21, 0
      %p133 = por %p131, %p132
      %p134 = scmp.ne.s32.totalorder %s123, %s126
      %p135 = scmp.eq.s32.totalorder %s26, 1
      %p136 = por %p134, %p135
      %p137 = scmp.ne.s32.totalorder %s126, %s127
      %p138 = scmp.eq.s32.totalorder %s26, 0
      %p139 = por %p137, %p138
      %p140 = scmp.ne.s32.totalorder %s126, %s127
      %p141 = scmp.eq.s32.totalorder %s27, 1
      %p142 = por %p140, %p141
      %p144 = scmp.ne.s32.totalorder %s127, %s143
      %p145 = scmp.eq.s32.totalorder %s27, 0
      %p146 = por %p144, %p145
      %s148 = sadd.s32 %s147, 1
      %p151 = scmp.eq.s32.totalorder %s21, 1
      %p152 = scmp.ne.s32.totalorder %s147, %s149
      %p153 = scmp.eq.s32.totalorder %s21, 0
      %p154 = por %p152, %p153
      %p155 = scmp.ne.s32.totalorder %s147, %s149
      %p156 = scmp.eq.s32.totalorder %s26, 1
      %p157 = por %p155, %p156
      %p158 = scmp.ne.s32.totalorder %s149, %s150
      %p159 = scmp.eq.s32.totalorder %s26, 0
      %p160 = por %p158, %p159
      %p161 = scmp.ne.s32.totalorder %s149, %s150
      %p162 = scmp.eq.s32.totalorder %s27, 1
      %p163 = por %p161, %p162
      %p165 = scmp.ne.s32.totalorder %s150, %s164
      %p166 = scmp.eq.s32.totalorder %s27, 0
      %p167 = por %p165, %p166
      %s169 = sadd.s32 %s168, 1
      %p172 = scmp.eq.s32.totalorder %s21, 1
      %p173 = scmp.ne.s32.totalorder %s168, %s170
      %p174 = scmp.eq.s32.totalorder %s21, 0
      %p175 = por %p173, %p174
      %p176 = scmp.ne.s32.totalorder %s168, %s170
      %p177 = scmp.eq.s32.totalorder %s26, 1
      %p178 = por %p176, %p177
      %p179 = scmp.ne.s32.totalorder %s170, %s171
      %p180 = scmp.eq.s32.totalorder %s26, 0
      %p181 = por %p179, %p180
      %p182 = scmp.ne.s32.totalorder %s170, %s171
      %p183 = scmp.eq.s32.totalorder %s27, 1
      %p184 = por %p182, %p183
      %p186 = scmp.ne.s32.totalorder %s171, %s185
      %p187 = scmp.eq.s32.totalorder %s27, 0
      %p188 = por %p186, %p187
      %s190 = sadd.s32 %s189, 1
      %p193 = scmp.eq.s32.totalorder %s21, 1
      %p194 = scmp.ne.s32.totalorder %s189, %s191
      %p195 = scmp.eq.s32.totalorder %s21, 0
      %p196 = por %p194, %p195
      %p197 = scmp.ne.s32.totalorder %s189, %s191
      %p198 = scmp.eq.s32.totalorder %s26, 1
      %p199 = por %p197, %p198
      %p200 = scmp.ne.s32.totalorder %s191, %s192
      %p201 = scmp.eq.s32.totalorder %s26, 0
      %p202 = por %p200, %p201
      %p203 = scmp.ne.s32.totalorder %s191, %s192
      %p204 = scmp.eq.s32.totalorder %s27, 1
      %p205 = por %p203, %p204
      %p207 = scmp.ne.s32.totalorder %s192, %s206
      %p208 = scmp.eq.s32.totalorder %s27, 0
      %p209 = por %p207, %p208
      %s211 = sadd.s32 %s210, 1
      %p214 = scmp.eq.s32.totalorder %s21, 1
      %p215 = scmp.ne.s32.totalorder %s210, %s212
      %p216 = scmp.eq.s32.totalorder %s21, 0
      %p217 = por %p215, %p216
      %p218 = scmp.ne.s32.totalorder %s210, %s212
      %p219 = scmp.eq.s32.totalorder %s26, 1
      %p220 = por %p218, %p219
      %p221 = scmp.ne.s32.totalorder %s212, %s213
      %p222 = scmp.eq.s32.totalorder %s26, 0
      %p223 = por %p221, %p222
      %p224 = scmp.ne.s32.totalorder %s212, %s213
      %p225 = scmp.eq.s32.totalorder %s27, 1
      %p226 = por %p224, %p225
      %p228 = scmp.ne.s32.totalorder %s213, %s227
      %p229 = scmp.eq.s32.totalorder %s27, 0
      %p230 = por %p228, %p229
      %s231 = ssub.s32 %s28, %s40
      %p232 = scmp.eq.s32.totalorder %s231, 0
      %s234 = sadd.s32 %s233, 1
      %s235 = scalar_select %p232, %s233, %s234
      %p238 = pneg %p232
      %p239 = scmp.eq.s32.totalorder %s21, 1
      %p240 = por %p238, %p239
      %p241 = scmp.ne.s32.totalorder %s233, %s236
      %p242 = scmp.eq.s32.totalorder %s21, 0
      %p243 = por %p241, %p242
      %p244 = scmp.ne.s32.totalorder %s233, %s236
      %p245 = scmp.eq.s32.totalorder %s26, 1
      %p246 = por %p244, %p245
      %p247 = scmp.ne.s32.totalorder %s236, %s237
      %p248 = scmp.eq.s32.totalorder %s26, 0
      %p249 = por %p247, %p248
      %p250 = scmp.ne.s32.totalorder %s236, %s237
      %p251 = scmp.eq.s32.totalorder %s27, 1
      %p252 = por %p250, %p251
      %p254 = scmp.ne.s32.totalorder %s237, %s253
      %p255 = scmp.eq.s32.totalorder %s27, 0
      %p256 = por %p254, %p255
      %s257 = ssub.s32 %s28, %s40
      %p258 = scmp.eq.s32.totalorder %s257, 0
      %s260 = sadd.s32 %s259, 1
      %s261 = scalar_select %p258, %s259, %s260
      %p264 = pneg %p258
      %p265 = scmp.eq.s32.totalorder %s21, 1
      %p266 = por %p264, %p265
      %p267 = scmp.ne.s32.totalorder %s259, %s262
      %p268 = scmp.eq.s32.totalorder %s21, 0
      %p269 = por %p267, %p268
      %p270 = scmp.ne.s32.totalorder %s259, %s262
      %p271 = scmp.eq.s32.totalorder %s26, 1
      %p272 = por %p270, %p271
      %p273 = scmp.ne.s32.totalorder %s262, %s263
      %p274 = scmp.eq.s32.totalorder %s26, 0
      %p275 = por %p273, %p274
      %p276 = scmp.ne.s32.totalorder %s262, %s263
      %p277 = scmp.eq.s32.totalorder %s27, 1
      %p278 = por %p276, %p277
      %p280 = scmp.ne.s32.totalorder %s263, %s279
      %p281 = scmp.eq.s32.totalorder %s27, 0
      %p282 = por %p280, %p281
      %p283 = scmp.le.s32.totalorder 1, %s21
      %p284 = scmp.lt.s32.totalorder %s21, 3
      %p285 = pnand %p283, %p284
      %p286 = pneg %p285
      // Predicated region
      $region9: #{lstm_decoder_attention.2} parent=5 // pred_check
        _
      $region10: #{lstm_decoder_attention.2} parent=5 // pred_check_branch
        %288 = sbr.rel (%p285) target = $region12
      $region11: #{lstm_decoder_attention.2} parent=5 // pred_region
        %s289 = ssub.s32 %s21, 1
        // Predicated region
        $region13: #{lstm_decoder_attention.2} parent=11 // pred_check
          %p290 = pneg %p59
        $region14: #{lstm_decoder_attention.2} parent=11 // pred_check_branch
          %292 = sbr.rel (%p290) target = $region16
        $region15: #{lstm_decoder_attention.2} parent=11 // pred_region
          %p293 = scmp.lt.s32.totalorder %s30, 0
          %s294 = scalar_select %p293, %s30, 0
          %s295 = smul.addr %s294, 2
          %s296 = scalar_lea.vmem %s0, %s295
        $region16: #{lstm_decoder_attention.2} parent=11 // pred_fallthru
          _
        // Predicated region
        $region17: #{lstm_decoder_attention.2} parent=11 // pred_check
          %p297 = pneg %p85
        $region18: #{lstm_decoder_attention.2} parent=11 // pred_check_branch
          %299 = sbr.rel (%p297) target = $region20
        $region19: #{lstm_decoder_attention.2} parent=11 // pred_region
          %p300 = scmp.lt.s32.totalorder %s30, 0
          %s301 = scalar_select %p300, %s30, 0
          %s302 = smul.addr %s301, 2
          %s303 = scalar_lea.vmem %s1, %s302
        $region20: #{lstm_decoder_attention.2} parent=11 // pred_fallthru
          _
        // Predicated region
        $region21: #{lstm_decoder_attention.2} parent=11 // pred_check
          %p304 = pneg %p111
        $region22: #{lstm_decoder_attention.2} parent=11 // pred_check_branch
          %306 = sbr.rel (%p304) target = $region24
        $region23: #{lstm_decoder_attention.2} parent=11 // pred_region
          %p307 = scmp.lt.s32.totalorder %s30, 0
          %s308 = scalar_select %p307, %s30, 0
          %s309 = smul.addr %s308, 2
          %s310 = scalar_lea.vmem %s2, %s309
        $region24: #{lstm_decoder_attention.2} parent=11 // pred_fallthru
          _
        // Predicated region
        $region25: #{lstm_decoder_attention.2} parent=11 // pred_check
          %p311 = pneg %p160
        $region26: #{lstm_decoder_attention.2} parent=11 // pred_check_branch
          %313 = sbr.rel (%p311) target = $region28
        $region27: #{lstm_decoder_attention.2} parent=11 // pred_region
          _
        $region28: #{lstm_decoder_attention.2} parent=11 // pred_fallthru
          _
        // Predicated region
        $region29: #{lstm_decoder_attention.2} parent=11 // pred_check
          %p314 = pneg %p181
        $region30: #{lstm_decoder_attention.2} parent=11 // pred_check_branch
          %316 = sbr.rel (%p314) target = $region32
        $region31: #{lstm_decoder_attention.2} parent=11 // pred_region
          _
        $region32: #{lstm_decoder_attention.2} parent=11 // pred_fallthru
          _
        // Predicated region
        $region33: #{lstm_decoder_attention.2} parent=11 // pred_check
          %p317 = pneg %p202
        $region34: #{lstm_decoder_attention.2} parent=11 // pred_check_branch
          %319 = sbr.rel (%p317) target = $region36
        $region35: #{lstm_decoder_attention.2} parent=11 // pred_region
          _
        $region36: #{lstm_decoder_attention.2} parent=11 // pred_fallthru
          _
        // Predicated region
        $region37: #{lstm_decoder_attention.2} parent=11 // pred_check
          %p320 = pneg %p223
        $region38: #{lstm_decoder_attention.2} parent=11 // pred_check_branch
          %322 = sbr.rel (%p320) target = $region40
        $region39: #{lstm_decoder_attention.2} parent=11 // pred_region
          _
        $region40: #{lstm_decoder_attention.2} parent=11 // pred_fallthru
          _
      $region12: #{lstm_decoder_attention.2} parent=5 // pred_fallthru
        _
      %p323 = scmp.lt.s32.totalorder %s21, 2
      // Predicated region
      $region41: #{lstm_decoder_attention.2} parent=5 // pred_check
        %p324 = pneg %p323
      $region42: #{lstm_decoder_attention.2} parent=5 // pred_check_branch
        %326 = sbr.rel (%p324) target = $region44
      $region43: #{lstm_decoder_attention.2} parent=5 // pred_region
        // Predicated region
        $region45: #{lstm_decoder_attention.2} parent=43 // pred_check
          %p327 = pneg %p133
        $region46: #{lstm_decoder_attention.2} parent=43 // pred_check_branch
          %329 = sbr.rel (%p327) target = $region48
        $region47: #{lstm_decoder_attention.2} parent=43 // pred_region
          %s330 = sand.u32 %s123, 1
          %s331 = sand.u32 %s123, 1
          %s332 = smul.addr %s331, 16
          %s333 = scalar_lea.vmem [#allocation11], %s332
          %s334 = smul.u32 2, %s28
          %s335 = smul.addr %s334, 2
          %s336 = sadd.s32 %s29, %s335
          %s337 = smul.addr %s336, 8
          %s338 = scalar_lea.vmem %s3, %s337
          // Predicated region
          $region49: #{lstm_decoder_attention.2} parent=47 // pred_check
            _
          $region50: #{lstm_decoder_attention.2} parent=47 // pred_check_branch
            %340 = sbr.rel (0) target = $region52
          $region51: #{lstm_decoder_attention.2} parent=47 // pred_region
            // Predicated region
            $region53: #{lstm_decoder_attention.2} parent=51 // pred_check
              _
            $region54: #{lstm_decoder_attention.2} parent=51 // pred_check_branch
              %342 = sbr.rel (0) target = $region56
            $region55: #{lstm_decoder_attention.2} parent=51 // pred_region
              // Predicated region
              $region68: #{lstm_decoder_attention.2} parent=55 // pred_check
                _
              $region69: #{lstm_decoder_attention.2} parent=55 // pred_check_branch
                %360 = sbr.rel (0) target = $region71
              $region70: #{lstm_decoder_attention.2} parent=55 // pred_region
                loop: start=0, step=1, limit=1
                $region72: #{lstm_decoder_attention.2} parent=70 // loop_pre_header
                  _
                $region73: #{lstm_decoder_attention.2} parent=70 // loop_header
                  %s362 = sphi 0, %s366
                  %p363 = scmp.ge.s32.totalorder %s362, 1
                  %s367 = sphi %s338, %s338
                  %s368 = sphi %s333, %s333
                $region74: #{lstm_decoder_attention.2} parent=70 // loop_header_branch
                  %365 = sbr.rel (%p363) target = $region78
                $region75: #{lstm_decoder_attention.2} parent=70 // loop_body
                  %v369 = vld [vmem:[%s367] sm:$0xff]
                  %370 = vst [vmem:[%s368] sm:$0xff] %v369
                  %v371 = vld [vmem:[%s367 + $0x10] sm:$0xff]
                  %372 = vst [vmem:[%s368 + $0x8] sm:$0xff] %v371
                $region76: #{lstm_decoder_attention.2} parent=70 // loop_footer
                  %s366 = sadd.s32 1, %s362
                $region77: #{lstm_decoder_attention.2} parent=70 // loop_footer_branch
                  %361 = sbr.rel target = $region73
                $region78: #{lstm_decoder_attention.2} parent=70 // loop_exit
                  _
              $region71: #{lstm_decoder_attention.2} parent=55 // pred_fallthru
                _
              // Predicated region
              $region79: #{lstm_decoder_attention.2} parent=55 // pred_check
                _
              $region80: #{lstm_decoder_attention.2} parent=55 // pred_check_branch
                %374 = sbr.rel target = $region82
              $region81: #{lstm_decoder_attention.2} parent=55 // pred_region
                _
              $region82: #{lstm_decoder_attention.2} parent=55 // pred_fallthru
                _
            $region56: #{lstm_decoder_attention.2} parent=51 // pred_fallthru
              _
            // Predicated region
            $region57: #{lstm_decoder_attention.2} parent=51 // pred_check
              _
            $region58: #{lstm_decoder_attention.2} parent=51 // pred_check_branch
              %344 = sbr.rel target = $region60
            $region59: #{lstm_decoder_attention.2} parent=51 // pred_region
              %s346 = ssub.s32 256, 1
              loop: start=0, step=1, limit=1
              $region61: #{lstm_decoder_attention.2} parent=59 // loop_pre_header
                _
              $region62: #{lstm_decoder_attention.2} parent=59 // loop_header
                %s348 = sphi 0, %s352
                %p349 = scmp.ge.s32.totalorder %s348, 1
                %s353 = sphi %s338, %s338
                %s354 = sphi %s333, %s333
              $region63: #{lstm_decoder_attention.2} parent=59 // loop_header_branch
                %351 = sbr.rel (%p349) target = $region67
              $region64: #{lstm_decoder_attention.2} parent=59 // loop_body
                %v355 = vld [vmem:[%s353] sm:%s346]
                %356 = vst [vmem:[%s354] sm:%s346] %v355
                %v357 = vld [vmem:[%s353 + $0x10] sm:%s346]
                %358 = vst [vmem:[%s354 + $0x8] sm:%s346] %v357
              $region65: #{lstm_decoder_attention.2} parent=59 // loop_footer
                %s352 = sadd.s32 1, %s348
              $region66: #{lstm_decoder_attention.2} parent=59 // loop_footer_branch
                %347 = sbr.rel target = $region62
              $region67: #{lstm_decoder_attention.2} parent=59 // loop_exit
                _
            $region60: #{lstm_decoder_attention.2} parent=51 // pred_fallthru
              _
          $region52: #{lstm_decoder_attention.2} parent=47 // pred_fallthru
            _
          %375 = vnop
        $region48: #{lstm_decoder_attention.2} parent=43 // pred_fallthru
          _
      $region44: #{lstm_decoder_attention.2} parent=5 // pred_fallthru
        _
      %p376 = scmp.le.s32.totalorder 1, %s21
      %p377 = scmp.lt.s32.totalorder %s21, 3
      %p378 = pnand %p376, %p377
      %p379 = pneg %p378
      // Predicated region
      $region83: #{lstm_decoder_attention.2} parent=5 // pred_check
        _
      $region84: #{lstm_decoder_attention.2} parent=5 // pred_check_branch
        %381 = sbr.rel (%p378) target = $region86
      $region85: #{lstm_decoder_attention.2} parent=5 // pred_region
        %s382 = ssub.s32 %s21, 1
        %s383 = sand.u32 %s126, 1
        %s384 = sand.u32 %s126, 1
        %s385 = smul.addr %s384, 16
        %s386 = scalar_lea.vmem [#allocation11], %s385
        // Predicated region
        $region87: #{lstm_decoder_attention.2} parent=85 // pred_check
          %p387 = pneg %p139
        $region88: #{lstm_decoder_attention.2} parent=85 // pred_check_branch
          %389 = sbr.rel (%p387) target = $region90
        $region89: #{lstm_decoder_attention.2} parent=85 // pred_region
          _
        $region90: #{lstm_decoder_attention.2} parent=85 // pred_fallthru
          _
        %p390 = scmp.lt.s32.totalorder %s30, 0
        %s391 = scalar_select %p390, %s30, 0
        %s392 = smul.addr %s391, 2
        %s393 = scalar_lea.vmem %s0, %s392
        %p394 = pneg %p59
        %p395 = pneg %p56
        %p396 = scmp.lt.s32.totalorder %s30, 0
        %s397 = scalar_select %p396, %s30, 0
        %s398 = smul.addr %s397, 2
        %s399 = scalar_lea.vmem %s1, %s398
        %p400 = pneg %p85
        %p401 = pneg %p82
        %p402 = scmp.lt.s32.totalorder %s30, 0
        %s403 = scalar_select %p402, %s30, 0
        %s404 = smul.addr %s403, 2
        %s405 = scalar_lea.vmem %s2, %s404
        %p406 = pneg %p111
        %p407 = pneg %p108
        %s408 = sand.u32 %s126, 1
        %s409 = sand.u32 %s126, 1
        %s410 = smul.addr %s409, 16
        %s411 = scalar_lea.vmem [#allocation11], %s410
        %p412 = pneg %p139
        %p413 = pneg %p136
        %p414 = pneg %p160
        %p415 = pneg %p157
        %p416 = pneg %p181
        %p417 = pneg %p178
        %p418 = pneg %p202
        %p419 = pneg %p199
        %p420 = pneg %p223
        %p421 = pneg %p220
        %p422 = pneg %p249
        %p423 = pneg %p246
        %p424 = scmp.lt.s32.totalorder %s30, 0
        %s425 = scalar_select %p424, %s30, 0
        %s426 = smul.addr %s425, 2
        %s427 = scalar_lea.vmem %s12, %s426
        %p428 = pneg %p275
        %p429 = pneg %p272
        %p430 = scmp.lt.s32.totalorder %s30, 0
        %s431 = scalar_select %p430, %s30, 0
        %s432 = smul.addr %s431, 2
        %s433 = scalar_lea.vmem %s0, %s432
        %p434 = scmp.lt.s32.totalorder %s30, 0
        %s435 = scalar_select %p434, %s30, 0
        %s436 = smul.addr %s435, 2
        %s437 = scalar_lea.vmem %s1, %s436
        %p438 = scmp.lt.s32.totalorder %s30, 0
        %s439 = scalar_select %p438, %s30, 0
        %s440 = smul.addr %s439, 2
        %s441 = scalar_lea.vmem %s2, %s440
        %s442 = smul.u32 2, %s30
        %p443 = scmp.lt.s32.totalorder %s30, 0
        %s444 = scalar_select %p443, %s30, 0
        %s445 = smul.addr %s444, 2
        %s446 = scalar_lea.vmem %s12, %s445
        %p447 = scmp.eq.s32.totalorder %s31, 0
        // Predicated region
        $region91: #{lstm_decoder_attention.2} parent=85 // pred_check
          %p448 = pneg %p447
        $region92: #{lstm_decoder_attention.2} parent=85 // pred_check_branch
          %450 = sbr.rel (%p448) target = $region94
        $region93: #{lstm_decoder_attention.2} parent=85 // pred_region
          %v451 = vld [vmem:[%s437] sm:$0x3]
          %v452 = vld [vmem:[%s4] sm:$0xff]
          %v453 = vld [vmem:[%s4 + $0x8] sm:$0xff]
          %v454 = vld [vmem:[%s4 + $0x10] sm:$0xff]
          %v455 = vld [vmem:[%s4 + $0x18] sm:$0xff]
          %v456 = vld [vmem:[%s6] sm:$0x1]
          %v458 = vperm.slane %v456, 0
          %vm460 = vcmask 261120
          %v462 = vsel %vm460, %v451, 0
          %464 = vmatpush.msra.mxu0 0.0
          %465 = vmatpush.msra.mxu0 0.0
          %466 = vmatpush.msra.mxu0 0.0
          %467 = vmatpush.msra.mxu0 0.0
          %468 = vmatpush.msra.mxu0 0.0
          %469 = vmatpush.msra.mxu0 0.0
          %470 = vmatpush.msra.mxu0 0.0
          %471 = vmatpush.msra.mxu0 0.0
          %472 = vmatpush.msra.mxu0 0.0
          %473 = vmatpush.msra.mxu0 0.0
          %474 = vmatpush.msra.mxu0 0.0
          %475 = vmatpush.msra.mxu0 0.0
          %476 = vmatpush.msra.mxu0 %v455
          %477 = vmatpush.msra.mxu0 %v454
          %478 = vmatpush.msra.mxu0 %v453
          %479 = vmatpush.msra.mxu0 %v452
          %480 = vmatmul.f32.gmra.mxu0 %v462
          %v481 = vpop.f32.mrf.mxu0
          %v482 = vadd.f32 %v458, %v481
          %483 = vdwg.mxu0
          %vm484 = vcmask 254976
          %485 = vst.msk [vmem:[#allocation2] sm:$0x3] %vm484, %v482
          %vm486 = vcmask 1024
          %487 = vst.msk [vmem:[#allocation3] sm:$0x3] %vm486, -inf
          %488 = vst.msk [vmem:[#allocation4] sm:$0x3] %vm486, 0.0
          %vm489 = vcmask 517120
          %490 = vst.msk [vmem:[#allocation5] sm:$0x3] %vm489, 0.0
          // Predicated region
          $region95: #{lstm_decoder_attention.2} parent=93 // pred_check
            _
          $region96: #{lstm_decoder_attention.2} parent=93 // pred_check_branch
            %492 = sbr.rel (0) target = $region98
          $region97: #{lstm_decoder_attention.2} parent=93 // pred_region
            loop: start=0, step=1, limit=1
            $region99: #{lstm_decoder_attention.2} parent=97 // loop_pre_header
              _
            $region100: #{lstm_decoder_attention.2} parent=97 // loop_header
              %s494 = sphi 0, %s498
              %p495 = scmp.ge.s32.totalorder %s494, 1
              %s499 = sphi %s8, %s8
              %s500 = sphi [#allocation6], [#allocation6]
            $region101: #{lstm_decoder_attention.2} parent=97 // loop_header_branch
              %497 = sbr.rel (%p495) target = $region105
            $region102: #{lstm_decoder_attention.2} parent=97 // loop_body
              %v501 = vld [vmem:[%s499] sm:$0xff]
              %502 = vst [vmem:[%s500] sm:$0xff] %v501
              %v503 = vld [vmem:[%s499 + $0x8] sm:$0xff]
              %504 = vst [vmem:[%s500 + $0x8] sm:$0xff] %v503
              %v505 = vld [vmem:[%s499 + $0x10] sm:$0xff]
              %506 = vst [vmem:[%s500 + $0x10] sm:$0xff] %v505
              %v507 = vld [vmem:[%s499 + $0x18] sm:$0xff]
              %508 = vst [vmem:[%s500 + $0x18] sm:$0xff] %v507
              %v509 = vld [vmem:[%s499 + $0x20] sm:$0xff]
              %510 = vst [vmem:[%s500 + $0x20] sm:$0xff] %v509
              %v511 = vld [vmem:[%s499 + $0x28] sm:$0xff]
              %512 = vst [vmem:[%s500 + $0x28] sm:$0xff] %v511
              %v513 = vld [vmem:[%s499 + $0x30] sm:$0xff]
              %514 = vst [vmem:[%s500 + $0x30] sm:$0xff] %v513
              %v515 = vld [vmem:[%s499 + $0x38] sm:$0xff]
              %516 = vst [vmem:[%s500 + $0x38] sm:$0xff] %v515
            $region103: #{lstm_decoder_attention.2} parent=97 // loop_footer
              %s498 = sadd.s32 1, %s494
            $region104: #{lstm_decoder_attention.2} parent=97 // loop_footer_branch
              %493 = sbr.rel target = $region100
            $region105: #{lstm_decoder_attention.2} parent=97 // loop_exit
              _
          $region98: #{lstm_decoder_attention.2} parent=93 // pred_fallthru
            _
          // Predicated region
          $region106: #{lstm_decoder_attention.2} parent=93 // pred_check
            _
          $region107: #{lstm_decoder_attention.2} parent=93 // pred_check_branch
            %518 = sbr.rel target = $region109
          $region108: #{lstm_decoder_attention.2} parent=93 // pred_region
            _
          $region109: #{lstm_decoder_attention.2} parent=93 // pred_fallthru
            _
          // Predicated region
          $region110: #{lstm_decoder_attention.2} parent=93 // pred_check
            _
          $region111: #{lstm_decoder_attention.2} parent=93 // pred_check_branch
            %521 = sbr.rel (0) target = $region113
          $region112: #{lstm_decoder_attention.2} parent=93 // pred_region
            %522 = vsyncadd [#allocation10], 1024
          $region113: #{lstm_decoder_attention.2} parent=93 // pred_fallthru
            _
          %s523 = scalar_lea.sflag [#allocation10], 1
          // Predicated region
          $region114: #{lstm_decoder_attention.2} parent=93 // pred_check
            _
          $region115: #{lstm_decoder_attention.2} parent=93 // pred_check_branch
            %525 = sbr.rel (0) target = $region117
          $region116: #{lstm_decoder_attention.2} parent=93 // pred_region
            loop: start=0, step=1, limit=1
            $region118: #{lstm_decoder_attention.2} parent=116 // loop_pre_header
              _
            $region119: #{lstm_decoder_attention.2} parent=116 // loop_header
              %s527 = sphi 0, %s531
              %p528 = scmp.ge.s32.totalorder %s527, 1
              %s532 = sphi %s9, %s9
              %s533 = sphi [#allocation7], [#allocation7]
            $region120: #{lstm_decoder_attention.2} parent=116 // loop_header_branch
              %530 = sbr.rel (%p528) target = $region124
            $region121: #{lstm_decoder_attention.2} parent=116 // loop_body
              %v534 = vld [vmem:[%s532] sm:$0xff]
              %535 = vst [vmem:[%s533] sm:$0xff] %v534
              %v536 = vld [vmem:[%s532 + $0x8] sm:$0xff]
              %537 = vst [vmem:[%s533 + $0x8] sm:$0xff] %v536
              %v538 = vld [vmem:[%s532 + $0x10] sm:$0xff]
              %539 = vst [vmem:[%s533 + $0x10] sm:$0xff] %v538
              %v540 = vld [vmem:[%s532 + $0x18] sm:$0xff]
              %541 = vst [vmem:[%s533 + $0x18] sm:$0xff] %v540
            $region122: #{lstm_decoder_attention.2} parent=116 // loop_footer
              %s531 = sadd.s32 1, %s527
            $region123: #{lstm_decoder_attention.2} parent=116 // loop_footer_branch
              %526 = sbr.rel target = $region119
            $region124: #{lstm_decoder_attention.2} parent=116 // loop_exit
              _
          $region117: #{lstm_decoder_attention.2} parent=93 // pred_fallthru
            _
          // Predicated region
          $region125: #{lstm_decoder_attention.2} parent=93 // pred_check
            _
          $region126: #{lstm_decoder_attention.2} parent=93 // pred_check_branch
            %543 = sbr.rel target = $region128
          $region127: #{lstm_decoder_attention.2} parent=93 // pred_region
            _
          $region128: #{lstm_decoder_attention.2} parent=93 // pred_fallthru
            _
          // Predicated region
          $region129: #{lstm_decoder_attention.2} parent=93 // pred_check
            _
          $region130: #{lstm_decoder_attention.2} parent=93 // pred_check_branch
            %546 = sbr.rel (0) target = $region132
          $region131: #{lstm_decoder_attention.2} parent=93 // pred_region
            %547 = vsyncadd %s523, 512
          $region132: #{lstm_decoder_attention.2} parent=93 // pred_fallthru
            _
          %s548 = scalar_lea.sflag [#allocation10], 2
          // Predicated region
          $region133: #{lstm_decoder_attention.2} parent=93 // pred_check
            _
          $region134: #{lstm_decoder_attention.2} parent=93 // pred_check_branch
            %550 = sbr.rel (0) target = $region136
          $region135: #{lstm_decoder_attention.2} parent=93 // pred_region
            loop: start=0, step=1, limit=1
            $region137: #{lstm_decoder_attention.2} parent=135 // loop_pre_header
              _
            $region138: #{lstm_decoder_attention.2} parent=135 // loop_header
              %s552 = sphi 0, %s556
              %p553 = scmp.ge.s32.totalorder %s552, 1
              %s557 = sphi %s10, %s10
              %s558 = sphi [#allocation8], [#allocation8]
            $region139: #{lstm_decoder_attention.2} parent=135 // loop_header_branch
              %555 = sbr.rel (%p553) target = $region143
            $region140: #{lstm_decoder_attention.2} parent=135 // loop_body
              %v559 = vld [vmem:[%s557] sm:$0xff]
              %560 = vst [vmem:[%s558] sm:$0xff] %v559
              %v561 = vld [vmem:[%s557 + $0x8] sm:$0xff]
              %562 = vst [vmem:[%s558 + $0x8] sm:$0xff] %v561
              %v563 = vld [vmem:[%s557 + $0x10] sm:$0xff]
              %564 = vst [vmem:[%s558 + $0x10] sm:$0xff] %v563
              %v565 = vld [vmem:[%s557 + $0x18] sm:$0xff]
              %566 = vst [vmem:[%s558 + $0x18] sm:$0xff] %v565
            $region141: #{lstm_decoder_attention.2} parent=135 // loop_footer
              %s556 = sadd.s32 1, %s552
            $region142: #{lstm_decoder_attention.2} parent=135 // loop_footer_branch
              %551 = sbr.rel target = $region138
            $region143: #{lstm_decoder_attention.2} parent=135 // loop_exit
              _
          $region136: #{lstm_decoder_attention.2} parent=93 // pred_fallthru
            _
          // Predicated region
          $region144: #{lstm_decoder_attention.2} parent=93 // pred_check
            _
          $region145: #{lstm_decoder_attention.2} parent=93 // pred_check_branch
            %568 = sbr.rel target = $region147
          $region146: #{lstm_decoder_attention.2} parent=93 // pred_region
            _
          $region147: #{lstm_decoder_attention.2} parent=93 // pred_fallthru
            _
          // Predicated region
          $region148: #{lstm_decoder_attention.2} parent=93 // pred_check
            _
          $region149: #{lstm_decoder_attention.2} parent=93 // pred_check_branch
            %571 = sbr.rel (0) target = $region151
          $region150: #{lstm_decoder_attention.2} parent=93 // pred_region
            %572 = vsyncadd %s548, 512
          $region151: #{lstm_decoder_attention.2} parent=93 // pred_fallthru
            _
          %s573 = scalar_lea.sflag [#allocation10], 3
          // Predicated region
          $region152: #{lstm_decoder_attention.2} parent=93 // pred_check
            _
          $region153: #{lstm_decoder_attention.2} parent=93 // pred_check_branch
            %575 = sbr.rel target = $region155
          $region154: #{lstm_decoder_attention.2} parent=93 // pred_region
            // Predicated region
            $region167: #{lstm_decoder_attention.2} parent=154 // pred_check
              _
            $region168: #{lstm_decoder_attention.2} parent=154 // pred_check_branch
              %591 = sbr.rel (0) target = $region170
            $region169: #{lstm_decoder_attention.2} parent=154 // pred_region
              %s593 = ssub.s32 2, 1
              loop: start=0, step=1, limit=1
              $region171: #{lstm_decoder_attention.2} parent=169 // loop_pre_header
                _
              $region172: #{lstm_decoder_attention.2} parent=169 // loop_header
                %s595 = sphi 0, %s599
                %p596 = scmp.ge.s32.totalorder %s595, 1
                %s600 = sphi %s11, %s11
                %s601 = sphi [#allocation9], [#allocation9]
              $region173: #{lstm_decoder_attention.2} parent=169 // loop_header_branch
                %598 = sbr.rel (%p596) target = $region177
              $region174: #{lstm_decoder_attention.2} parent=169 // loop_body
                %v602 = vld [vmem:[%s600] sm:%s593]
                %603 = vst [vmem:[%s601] sm:%s593] %v602
              $region175: #{lstm_decoder_attention.2} parent=169 // loop_footer
                %s599 = sadd.s32 1, %s595
              $region176: #{lstm_decoder_attention.2} parent=169 // loop_footer_branch
                %594 = sbr.rel target = $region172
              $region177: #{lstm_decoder_attention.2} parent=169 // loop_exit
                _
            $region170: #{lstm_decoder_attention.2} parent=154 // pred_fallthru
              _
          $region155: #{lstm_decoder_attention.2} parent=93 // pred_fallthru
            _
          // Predicated region
          $region156: #{lstm_decoder_attention.2} parent=93 // pred_check
            _
          $region157: #{lstm_decoder_attention.2} parent=93 // pred_check_branch
            %577 = sbr.rel (0) target = $region159
          $region158: #{lstm_decoder_attention.2} parent=93 // pred_region
            %s579 = ssub.s32 2, 1
            loop: start=0, step=1, limit=1
            $region160: #{lstm_decoder_attention.2} parent=158 // loop_pre_header
              _
            $region161: #{lstm_decoder_attention.2} parent=158 // loop_header
              %s581 = sphi 0, %s585
              %p582 = scmp.ge.s32.totalorder %s581, 1
              %s586 = sphi %s11, %s11
              %s587 = sphi [#allocation9], [#allocation9]
            $region162: #{lstm_decoder_attention.2} parent=158 // loop_header_branch
              %584 = sbr.rel (%p582) target = $region166
            $region163: #{lstm_decoder_attention.2} parent=158 // loop_body
              %v588 = vld [vmem:[%s586] sm:%s579]
              %589 = vst [vmem:[%s587] sm:%s579] %v588
            $region164: #{lstm_decoder_attention.2} parent=158 // loop_footer
              %s585 = sadd.s32 1, %s581
            $region165: #{lstm_decoder_attention.2} parent=158 // loop_footer_branch
              %580 = sbr.rel target = $region161
            $region166: #{lstm_decoder_attention.2} parent=158 // loop_exit
              _
          $region159: #{lstm_decoder_attention.2} parent=93 // pred_fallthru
            _
          // Predicated region
          $region178: #{lstm_decoder_attention.2} parent=93 // pred_check
            _
          $region179: #{lstm_decoder_attention.2} parent=93 // pred_check_branch
            %606 = sbr.rel (0) target = $region181
          $region180: #{lstm_decoder_attention.2} parent=93 // pred_region
            %607 = vsyncadd %s573, 16
          $region181: #{lstm_decoder_attention.2} parent=93 // pred_fallthru
            _
        $region94: #{lstm_decoder_attention.2} parent=85 // pred_fallthru
          _
        %v608 = vld [vmem:[%s386] sm:$0xff]
        %v609 = vld [vmem:[%s386 + $0x8] sm:$0xff]
        %v610 = vld [vmem:[%s5] sm:$0xff]
        %v611 = vld [vmem:[%s5 + $0x8] sm:$0xff]
        %v612 = vld [vmem:[%s5 + $0x10] sm:$0xff]
        %v613 = vld [vmem:[%s5 + $0x18] sm:$0xff]
        %v614 = vld [vmem:[%s5 + $0x20] sm:$0xff]
        %v615 = vld [vmem:[%s5 + $0x28] sm:$0xff]
        %v616 = vld [vmem:[%s5 + $0x30] sm:$0xff]
        %v617 = vld [vmem:[%s5 + $0x38] sm:$0xff]
        %vm618 = vcmask 523264
        %v620 = vsel %vm618, %v608, 0
        %v623 = vsel %vm618, %v609, 0
        %625 = vmatpush.msra.mxu0 0.0
        %626 = vmatpush.msra.mxu0 0.0
        %627 = vmatpush.msra.mxu0 0.0
        %628 = vmatpush.msra.mxu0 0.0
        %629 = vmatpush.msra.mxu0 0.0
        %630 = vmatpush.msra.mxu0 0.0
        %631 = vmatpush.msra.mxu0 0.0
        %632 = vmatpush.msra.mxu0 0.0
        %633 = vmatpush.msra.mxu0 %v617
        %634 = vmatpush.msra.mxu0 %v616
        %635 = vmatpush.msra.mxu0 %v615
        %636 = vmatpush.msra.mxu0 %v614
        %637 = vmatpush.msra.mxu0 %v613
        %638 = vmatpush.msra.mxu0 %v612
        %639 = vmatpush.msra.mxu0 %v611
        %640 = vmatpush.msra.mxu0 %v610
        %641 = vmatmul.f32.gmra.mxu0 %v620
        %v642 = vpop.f32.mrf.mxu0
        %v643 = vadd.f32 0.0, %v642
        %644 = vmatmul.f32.gmra.mxu0 %v623
        %v645 = vpop.f32.mrf.mxu0
        %v646 = vadd.f32 0.0, %v645
        %647 = vdwg.mxu0
        %v648 = vld [vmem:[#allocation2] sm:$0x3]
        %v650 = vrot.slane %v648, 1
        %v651 = vperm.slane %v648, 0
        %v652 = vperm.slane %v650, 0
        %v655 = vadd.f32 %v643, %v651
        %v656 = vadd.f32 %v646, %v652
        %v657 = vmax.f32 %v655, 0.0
        %v658 = vmax.f32 %v656, 0.0
        %v659 = vld [vmem:[%s7] sm:$0x1]
        %v661 = vperm.slane %v659, 0
        %v663 = vmul.f32 %v657, %v661
        %v664 = vmul.f32 %v658, %v661
        %vm665 = vcmask 261120
        %v666 = vsel %vm665, %v663, 0.0
        %667 = vadd.xlane.f32.xlu0 %v666
        %v668 = vpop.xlane.xlu0 %667
        %v669 = vsel %vm665, %v664, 0.0
        %670 = vadd.xlane.f32.xlu0 %v669
        %v671 = vpop.xlane.xlu0 %670
        %s672 = smul.u32 %s31, 8
        %v673 = vlaneseq
        %v674 = vand.u32 %v673, 127
        %v675 = vstv %s672
        %v676 = vadd.s32 %v675, %v674
        %vm677 = vcmp.lt.s32.totalorder %v676, 16
        %v680 = vperm.slane %v668, %v674
        %v681 = vperm.slane %v671, %v674
        %vm682 = vcmask 1041409
        %v683 = vsel %vm682, %v681, %v680
        %v685 = vsel %vm677, %v683, -inf
        %v686 = vld [vmem:[#allocation3] sm:$0x3]
        %vm687 = vcmask 58368
        %v688 = vsel %vm687, %v685, -inf
        %689 = vmax.xlane.f32.xlu0 %v688
        %v690 = vpop.xlane.xlu0 %689
        %v691 = vmax.f32 %v686, %v690
        %v692 = vsub.f32 %v686, %v691
        %v693 = vmul.f32 %v692, 1.442695
        %v694 = vpow.pop %v693
        %696 = vset.pattern.permute.xlu0 0
        %697 = vperm.xlu0 %696, %v691
        %v698 = vpop.permute.xlu0 %697
        %v700 = vsub.f32 %v685, %v698
        %v701 = vmul.f32 %v700, 1.442695
        %v702 = vpow.pop %v701
        %v703 = vld [vmem:[#allocation4] sm:$0x3]
        %v704 = vmul.f32 %v694, %v703
        %v705 = vsel %vm687, %v702, 0.0
        %706 = vadd.xlane.f32.xlu0 %v705
        %v707 = vpop.xlane.xlu0 %706
        %v708 = vadd.f32 %v704, %v707
        %vm709 = vcmask 1024
        %710 = vst.msk [vmem:[#allocation4] sm:$0x3] %vm709, %v708
        %v711 = vld [vmem:[#allocation5] sm:$0x3]
        %713 = vset.pattern.permute.xlu0 0
        %714 = vperm.xlu0 %713, %v694
        %v715 = vpop.permute.xlu0 %714
        %v717 = vmul.f32 %v715, %v711
        %v718 = vperm.slane %v702, 0
        %v719 = vlaneseq
        %v720 = vshrl.u32 %v719, 7
        %722 = vset.pattern.permute.xlu0 %v720
        %723 = vperm.xlu0 %722, %v718
        %v724 = vpop.permute.xlu0 %723
        %v725 = vperm.slane %v702, 1
        %v726 = vlaneseq
        %v727 = vshrl.u32 %v726, 7
        %729 = vset.pattern.permute.xlu0 %v727
        %730 = vperm.xlu0 %729, %v725
        %v731 = vpop.permute.xlu0 %730
        %v732 = vmul.f32 %v724, %v608
        %v733 = vmul.f32 %v731, %v609
        %v734 = vsel %vm618, %v732, 0.0
        %v735 = vrot.slane %v734, 4
        %v736 = vadd.f32 %v734, %v735
        %v737 = vrot.slane %v736, 2
        %v738 = vadd.f32 %v736, %v737
        %v739 = vrot.slane %v738, 1
        %v740 = vadd.f32 %v738, %v739
        %v741 = vsel %vm618, %v733, 0.0
        %v742 = vrot.slane %v741, 4
        %v743 = vadd.f32 %v741, %v742
        %v744 = vrot.slane %v743, 2
        %v745 = vadd.f32 %v743, %v744
        %v746 = vrot.slane %v745, 1
        %v747 = vadd.f32 %v745, %v746
        %v750 = vsel %vm682, %v747, %v740
        %v752 = vadd.f32 %v717, %v750
        %vm753 = vcmask 517120
        %754 = vst.msk [vmem:[#allocation5] sm:$0x3] %vm753, %v752
        %755 = vst.msk [vmem:[#allocation3] sm:$0x3] %vm709, %v691
        %p756 = scmp.eq.s32.totalorder %s31, 1
        // Predicated region
        $region182: #{lstm_decoder_attention.2} parent=85 // pred_check
          %p757 = pneg %p756
        $region183: #{lstm_decoder_attention.2} parent=85 // pred_check_branch
          %759 = sbr.rel (%p757) target = $region185
        $region184: #{lstm_decoder_attention.2} parent=85 // pred_region
          %s760 = smul.u32 64, 1
          %s761 = sshll.u32 %s760, 4
          %762 = dma.done [#allocation10], %s761
          %s763 = scalar_lea.sflag [#allocation10], 1
          %s764 = smul.u32 32, 1
          %s765 = sshll.u32 %s764, 4
          %766 = dma.done %s763, %s765
          %s767 = scalar_lea.sflag [#allocation10], 2
          %s768 = sshll.u32 %s764, 4
          %769 = dma.done %s767, %s768
          %s770 = scalar_lea.sflag [#allocation10], 3
          %s771 = smul.u32 1, 1
          %s772 = sshll.u32 %s771, 4
          %773 = dma.done %s770, %s772
          %v774 = vld [vmem:[#allocation4] sm:$0x3]
          %v775 = vrcp.pop %v774
          %v776 = vld [vmem:[#allocation5] sm:$0x3]
          %778 = vset.pattern.permute.xlu0 0
          %779 = vperm.xlu0 %778, %v775
          %v780 = vpop.permute.xlu0 %779
          %v782 = vmul.f32 %v776, %v780
          %v783 = vld [vmem:[#allocation6] sm:$0xff]
          %v784 = vld [vmem:[#allocation6 + $0x8] sm:$0xff]
          %v785 = vld [vmem:[#allocation6 + $0x10] sm:$0xff]
          %v786 = vld [vmem:[#allocation6 + $0x18] sm:$0xff]
          %v787 = vld [vmem:[#allocation6 + $0x20] sm:$0xff]
          %v788 = vld [vmem:[#allocation6 + $0x28] sm:$0xff]
          %v789 = vld [vmem:[#allocation6 + $0x30] sm:$0xff]
          %v790 = vld [vmem:[#allocation6 + $0x38] sm:$0xff]
          %v791 = vld [vmem:[%s433] sm:$0x3]
          %v792 = vld [vmem:[#allocation7] sm:$0xff]
          %v793 = vld [vmem:[#allocation7 + $0x8] sm:$0xff]
          %v794 = vld [vmem:[#allocation7 + $0x10] sm:$0xff]
          %v795 = vld [vmem:[#allocation7 + $0x18] sm:$0xff]
          %v797 = vsel %vm665, %v791, 0
          %799 = vmatpush.msra.mxu0 0.0
          %800 = vmatpush.msra.mxu0 0.0
          %801 = vmatpush.msra.mxu0 0.0
          %802 = vmatpush.msra.mxu0 0.0
          %803 = vmatpush.msra.mxu0 0.0
          %804 = vmatpush.msra.mxu0 0.0
          %805 = vmatpush.msra.mxu0 0.0
          %806 = vmatpush.msra.mxu0 0.0
          %807 = vmatpush.msra.mxu0 0.0
          %808 = vmatpush.msra.mxu0 0.0
          %809 = vmatpush.msra.mxu0 0.0
          %810 = vmatpush.msra.mxu0 0.0
          %811 = vmatpush.msra.mxu0 %v795
          %812 = vmatpush.msra.mxu0 %v794
          %813 = vmatpush.msra.mxu0 %v793
          %814 = vmatpush.msra.mxu0 %v792
          %815 = vmatmul.f32.gmra.mxu0 %v797
          %v816 = vpop.f32.mrf.mxu0
          %v817 = vadd.f32 0.0, %v816
          %818 = vdwg.mxu0
          %v820 = vsel %vm618, %v782, 0
          %822 = vmatpush.msra.mxu0 0.0
          %823 = vmatpush.msra.mxu0 0.0
          %824 = vmatpush.msra.mxu0 0.0
          %825 = vmatpush.msra.mxu0 0.0
          %826 = vmatpush.msra.mxu0 0.0
          %827 = vmatpush.msra.mxu0 0.0
          %828 = vmatpush.msra.mxu0 0.0
          %829 = vmatpush.msra.mxu0 0.0
          %830 = vmatpush.msra.mxu0 %v790
          %831 = vmatpush.msra.mxu0 %v789
          %832 = vmatpush.msra.mxu0 %v788
          %833 = vmatpush.msra.mxu0 %v787
          %834 = vmatpush.msra.mxu0 %v786
          %835 = vmatpush.msra.mxu0 %v785
          %836 = vmatpush.msra.mxu0 %v784
          %837 = vmatpush.msra.mxu0 %v783
          %838 = vmatmul.f32.gmra.mxu0 %v820
          %v839 = vpop.f32.mrf.mxu0
          %v840 = vadd.f32 %v817, %v839
          %841 = vdwg.mxu0
          %v842 = vld [vmem:[%s437] sm:$0x3]
          %v843 = vld [vmem:[#allocation8] sm:$0xff]
          %v844 = vld [vmem:[#allocation8 + $0x8] sm:$0xff]
          %v845 = vld [vmem:[#allocation8 + $0x10] sm:$0xff]
          %v846 = vld [vmem:[#allocation8 + $0x18] sm:$0xff]
          %v848 = vsel %vm665, %v842, 0
          %850 = vmatpush.msra.mxu0 0.0
          %851 = vmatpush.msra.mxu0 0.0
          %852 = vmatpush.msra.mxu0 0.0
          %853 = vmatpush.msra.mxu0 0.0
          %854 = vmatpush.msra.mxu0 0.0
          %855 = vmatpush.msra.mxu0 0.0
          %856 = vmatpush.msra.mxu0 0.0
          %857 = vmatpush.msra.mxu0 0.0
          %858 = vmatpush.msra.mxu0 0.0
          %859 = vmatpush.msra.mxu0 0.0
          %860 = vmatpush.msra.mxu0 0.0
          %861 = vmatpush.msra.mxu0 0.0
          %862 = vmatpush.msra.mxu0 %v846
          %863 = vmatpush.msra.mxu0 %v845
          %864 = vmatpush.msra.mxu0 %v844
          %865 = vmatpush.msra.mxu0 %v843
          %866 = vmatmul.f32.gmra.mxu0 %v848
          %v867 = vpop.f32.mrf.mxu0
          %v868 = vadd.f32 0.0, %v867
          %869 = vdwg.mxu0
          %v870 = vadd.f32 %v840, %v868
          %v871 = vld [vmem:[#allocation9] sm:$0x1]
          %v873 = vperm.slane %v871, 0
          %v875 = vadd.f32 %v870, %v873
          %v876 = vxor.u32 %v875, 2147483648
          %v877 = vmul.f32 %v876, 1.442695
          %v878 = vpow.pop %v877
          %v879 = vadd.f32 %v878, 1.0
          %v880 = vrcp.pop %v879
          %v881 = vmul.f32 %v879, %v880
          %v882 = vsub.f32 1.0, %v881
          %v883 = vmul.f32 %v880, %v882
          %v884 = vadd.f32 %v880, %v883
          %vm885 = vweird.f32 %v879
          %vm886 = vweird.f32 %v880
          %vm887 = vmor %vm885, %vm886
          %v888 = vsel %vm887, %v880, %v884
          %v889 = vand.u32 2147483647, %v879
          %vm890 = vcmp.eq.f32.partialorder %v889, 8.507059e+37
          %v891 = vand.u32 %v879, 2147483648
          %v892 = vor.u32 1.1754944e-38, %v891
          %v893 = vsel %vm890, %v892, %v888
          %v894 = vmul.f32 1.0, %v893
          %v895 = vtanh.pop %v875
          %v896 = vld [vmem:[%s441] sm:$0x3]
          %898 = vrot.lane.b32.xlu0 %v896, 32
          %v899 = vpop.permute.xlu0 %898
          %v901 = vmul.f32 %v894, %v899
          %903 = vrot.lane.b32.xlu0 %v895, 64
          %v904 = vpop.permute.xlu0 %903
          %v906 = vmul.f32 %v894, %v904
          %908 = vrot.lane.b32.xlu0 %v906, 32
          %v909 = vpop.permute.xlu0 %908
          %v911 = vadd.f32 %v901, %v909
          %v912 = vtanh.pop %v911
          %914 = vrot.lane.b32.xlu0 %v912, 64
          %v915 = vpop.permute.xlu0 %914
          %v917 = vmul.f32 %v894, %v915
          %919 = vrot.lane.b32.xlu0 %v917, 32
          %v920 = vpop.permute.xlu0 %919
          %vm922 = vcmask 254976
          %923 = vst.msk [vmem:[%s446] sm:$0x3] %vm922, %v920
          %925 = vrot.lane.b32.xlu0 %v911, 96
          %v926 = vpop.permute.xlu0 %925
          %928 = vst.msk [vmem:[#allocation12] sm:$0x3] %vm922, %v926
        $region185: #{lstm_decoder_attention.2} parent=85 // pred_fallthru
          _
        %p929 = scmp.lt.s32.totalorder %s30, 0
        %s930 = scalar_select %p929, %s30, 0
        %s931 = smul.addr %s930, 2
        %s932 = scalar_lea.vmem %s12, %s931
        // Predicated region
        $region186: #{lstm_decoder_attention.2} parent=85 // pred_check
          %p933 = pneg %p246
        $region187: #{lstm_decoder_attention.2} parent=85 // pred_check_branch
          %935 = sbr.rel (%p933) target = $region189
        $region188: #{lstm_decoder_attention.2} parent=85 // pred_region
          _
        $region189: #{lstm_decoder_attention.2} parent=85 // pred_fallthru
          _
        // Predicated region
        $region190: #{lstm_decoder_attention.2} parent=85 // pred_check
          %p936 = pneg %p272
        $region191: #{lstm_decoder_attention.2} parent=85 // pred_check_branch
          %938 = sbr.rel (%p936) target = $region193
        $region192: #{lstm_decoder_attention.2} parent=85 // pred_region
          %940 = vsyncadd [#allocation13], 0
          %s941 = smul.addr %s30, 2
          %s942 = scalar_lea.hbm %s13, %s941
          %s944 = sshll.u32 [#allocation12], 4
          %s945 = int_to_ptr.vmem [resolvable:$true] %s944
          %s946 = sshll.u32 %s942, 4
          %s947 = int_to_ptr.hbm [resolvable:$true] %s946
          %949 = dma.vmem_to_hbm [thread:$0]  %s945, 32, %s947, [#allocation13]
        $region193: #{lstm_decoder_attention.2} parent=85 // pred_fallthru
          _
        // Predicated region
        $region194: #{lstm_decoder_attention.2} parent=85 // pred_check
          %p950 = pneg %p246
        $region195: #{lstm_decoder_attention.2} parent=85 // pred_check_branch
          %952 = sbr.rel (%p950) target = $region197
        $region196: #{lstm_decoder_attention.2} parent=85 // pred_region
          %p953 = scmp.lt.s32.totalorder %s30, 0
          %s954 = scalar_select %p953, %s30, 0
          %s955 = smul.addr %s954, 2
          %s956 = scalar_lea.vmem %s12, %s955
        $region197: #{lstm_decoder_attention.2} parent=85 // pred_fallthru
          _
        // Predicated region
        $region198: #{lstm_decoder_attention.2} parent=85 // pred_check
          %p957 = pneg %p272
        $region199: #{lstm_decoder_attention.2} parent=85 // pred_check_branch
          %959 = sbr.rel (%p957) target = $region201
        $region200: #{lstm_decoder_attention.2} parent=85 // pred_region
          %961 = dma.done [#allocation13], 32
        $region201: #{lstm_decoder_attention.2} parent=85 // pred_fallthru
          _
      $region86: #{lstm_decoder_attention.2} parent=5 // pred_fallthru
        _
      %p962 = scmp.le.s32.totalorder 2, %s21
      // Predicated region
      $region202: #{lstm_decoder_attention.2} parent=5 // pred_check
        %p963 = pneg %p962
      $region203: #{lstm_decoder_attention.2} parent=5 // pred_check_branch
        %965 = sbr.rel (%p963) target = $region205
      $region204: #{lstm_decoder_attention.2} parent=5 // pred_region
        %s966 = ssub.s32 %s21, 2
      $region205: #{lstm_decoder_attention.2} parent=5 // pred_fallthru
        _
    $region6: #{lstm_decoder_attention.2} parent=1 // loop_footer
      %s25 = sadd.s32 1, %s21
    $region7: #{lstm_decoder_attention.2} parent=1 // loop_footer_branch
      %20 = sbr.rel target = $region3
    $region8: #{lstm_decoder_attention.2} parent=1 // loop_exit
      _
    %967 = vsyncpa [#allocation13], 1
    %s968 = scalar_lea.sflag [#allocation13], 1
    %969 = vsyncpa %s968, 1
  %970 = vsyncmov [#allocation10]
  %s971 = vpop.sfrf %970
  %p972 = scmp.eq.s32.totalorder %s971, 0
  %p973 = pneg %p972
  %975 = shalt.err (%p973)
  %s976 = scalar_lea.sflag [#allocation10], 1
  %977 = vsyncmov %s976
  %s978 = vpop.sfrf %977
  %p979 = scmp.eq.s32.totalorder %s978, 0
  %p980 = pneg %p979
  %982 = shalt.err (%p980)
  %s983 = scalar_lea.sflag [#allocation10], 2
  %984 = vsyncmov %s983
  %s985 = vpop.sfrf %984
  %p986 = scmp.eq.s32.totalorder %s985, 0
  %p987 = pneg %p986
  %989 = shalt.err (%p987)
  %s990 = scalar_lea.sflag [#allocation10], 3
  %991 = vsyncmov %s990
  %s992 = vpop.sfrf %991
  %p993 = scmp.eq.s32.totalorder %s992, 0
  %p994 = pneg %p993
  %996 = shalt.err (%p994)

// kernel: lstm_decoder_attention.3
$region0: #{lstm_decoder_attention.3}
  #allocation0 [shape = 'u32[]', space=smem, size = 0x4, offset = 0x4, fixed_abs, tag = 'smem constant byte address 0x4 - core index']
  #allocation1 [shape = 'u32[72,128]{1,0:T(1,128)}', space=vmem, size = 0x9000, scoped, tag = 'internal scratch']
  %s0 = inlined_call_operand.vmem [shape: f32[2,32], index: 0, kind: input, shape index: {}]
  %s1 = inlined_call_operand.vmem [shape: f32[32,256], index: 1, kind: input, shape index: {}]
  %s2 = inlined_call_operand.vmem [shape: f32[1,256], index: 2, kind: input, shape index: {}]
  %s3 = inlined_call_operand.vmem [shape: f32[2,256], index: 3, kind: output, shape index: {}]
  %s4 = sld [smem:[#allocation0]]
  $region83: #{lstm_decoder_attention.3} parent=0
    _
  %s6 = ssub.s32 1, %s4
  %s7 = scalar_select 0, %s6, %s4
  $region1: #{lstm_decoder_attention.3} parent=0
    #allocation2 [shape = 'u8[32768]{0}', space=vmem, size = 0x8000, scoped, tag = 'input window, operand 1']
    loop: start=0, step=1, limit=4
    $region2: #{lstm_decoder_attention.3} parent=1 // loop_pre_header
      _
    $region3: #{lstm_decoder_attention.3} parent=1 // loop_header
      %s9 = sphi 0, %s13
      %p10 = scmp.ge.s32.totalorder %s9, 4
      %s17 = sphi 0, %s17
      %s19 = sphi 0, %s17
      %s20 = sphi 0, %s19
      %s34 = sphi 0, %s20
      %s40 = sphi 0, %s42
      %s43 = sphi 0, %s40
      %s44 = sphi 0, %s43
      %s60 = sphi 0, %s44
      %s66 = sphi 0, %s68
      %s69 = sphi 0, %s66
      %s70 = sphi 0, %s69
      %s86 = sphi 0, %s70
      %s92 = sphi 0, %s94
      %s95 = sphi 0, %s92
      %s96 = sphi 0, %s95
      %s112 = sphi 0, %s96
    $region4: #{lstm_decoder_attention.3} parent=1 // loop_header_branch
      %12 = sbr.rel (%p10) target = $region8
    $region5: #{lstm_decoder_attention.3} parent=1 // loop_body
      %s14 = ssub.s32 %s9, 1
      %s15 = ssub.s32 %s9, 2
      %s16 = sadd.s32 %s9, 1
      %s18 = sadd.s32 %s17, 1
      %p21 = scmp.eq.s32.totalorder %s9, 1
      %p22 = scmp.ne.s32.totalorder %s17, %s19
      %p23 = scmp.eq.s32.totalorder %s9, 0
      %p24 = por %p22, %p23
      %p25 = scmp.ne.s32.totalorder %s17, %s19
      %p26 = scmp.eq.s32.totalorder %s14, 1
      %p27 = por %p25, %p26
      %p28 = scmp.ne.s32.totalorder %s19, %s20
      %p29 = scmp.eq.s32.totalorder %s14, 0
      %p30 = por %p28, %p29
      %p31 = scmp.ne.s32.totalorder %s19, %s20
      %p32 = scmp.eq.s32.totalorder %s15, 1
      %p33 = por %p31, %p32
      %p35 = scmp.ne.s32.totalorder %s20, %s34
      %p36 = scmp.eq.s32.totalorder %s15, 0
      %p37 = por %p35, %p36
      %s38 = ssub.s32 %s9, %s16
      %p39 = scmp.eq.s32.totalorder %s38, 0
      %s41 = sadd.s32 %s40, 1
      %s42 = scalar_select %p39, %s40, %s41
      %p45 = pneg %p39
      %p46 = scmp.eq.s32.totalorder %s9, 1
      %p47 = por %p45, %p46
      %p48 = scmp.ne.s32.totalorder %s40, %s43
      %p49 = scmp.eq.s32.totalorder %s9, 0
      %p50 = por %p48, %p49
      %p51 = scmp.ne.s32.totalorder %s40, %s43
      %p52 = scmp.eq.s32.totalorder %s14, 1
      %p53 = por %p51, %p52
      %p54 = scmp.ne.s32.totalorder %s43, %s44
      %p55 = scmp.eq.s32.totalorder %s14, 0
      %p56 = por %p54, %p55
      %p57 = scmp.ne.s32.totalorder %s43, %s44
      %p58 = scmp.eq.s32.totalorder %s15, 1
      %p59 = por %p57, %p58
      %p61 = scmp.ne.s32.totalorder %s44, %s60
      %p62 = scmp.eq.s32.totalorder %s15, 0
      %p63 = por %p61, %p62
      %s64 = ssub.s32 %s9, %s16
      %p65 = scmp.eq.s32.totalorder %s64, 0
      %s67 = sadd.s32 %s66, 1
      %s68 = scalar_select %p65, %s66, %s67
      %p71 = pneg %p65
      %p72 = scmp.eq.s32.totalorder %s9, 1
      %p73 = por %p71, %p72
      %p74 = scmp.ne.s32.totalorder %s66, %s69
      %p75 = scmp.eq.s32.totalorder %s9, 0
      %p76 = por %p74, %p75
      %p77 = scmp.ne.s32.totalorder %s66, %s69
      %p78 = scmp.eq.s32.totalorder %s14, 1
      %p79 = por %p77, %p78
      %p80 = scmp.ne.s32.totalorder %s69, %s70
      %p81 = scmp.eq.s32.totalorder %s14, 0
      %p82 = por %p80, %p81
      %p83 = scmp.ne.s32.totalorder %s69, %s70
      %p84 = scmp.eq.s32.totalorder %s15, 1
      %p85 = por %p83, %p84
      %p87 = scmp.ne.s32.totalorder %s70, %s86
      %p88 = scmp.eq.s32.totalorder %s15, 0
      %p89 = por %p87, %p88
      %s90 = ssub.s32 %s9, %s16
      %p91 = scmp.eq.s32.totalorder %s90, 0
      %s93 = sadd.s32 %s92, 1
      %s94 = scalar_select %p91, %s92, %s93
      %p97 = pneg %p91
      %p98 = scmp.eq.s32.totalorder %s9, 1
      %p99 = por %p97, %p98
      %p100 = scmp.ne.s32.totalorder %s92, %s95
      %p101 = scmp.eq.s32.totalorder %s9, 0
      %p102 = por %p100, %p101
      %p103 = scmp.ne.s32.totalorder %s92, %s95
      %p104 = scmp.eq.s32.totalorder %s14, 1
      %p105 = por %p103, %p104
      %p106 = scmp.ne.s32.totalorder %s95, %s96
      %p107 = scmp.eq.s32.totalorder %s14, 0
      %p108 = por %p106, %p107
      %p109 = scmp.ne.s32.totalorder %s95, %s96
      %p110 = scmp.eq.s32.totalorder %s15, 1
      %p111 = por %p109, %p110
      %p113 = scmp.ne.s32.totalorder %s96, %s112
      %p114 = scmp.eq.s32.totalorder %s15, 0
      %p115 = por %p113, %p114
      %p116 = scmp.le.s32.totalorder 1, %s9
      %p117 = scmp.lt.s32.totalorder %s9, 3
      %p118 = pnand %p116, %p117
      %p119 = pneg %p118
      // Predicated region
      $region9: #{lstm_decoder_attention.3} parent=5 // pred_check
        _
      $region10: #{lstm_decoder_attention.3} parent=5 // pred_check_branch
        %121 = sbr.rel (%p118) target = $region12
      $region11: #{lstm_decoder_attention.3} parent=5 // pred_region
        %s122 = ssub.s32 %s9, 1
        // Predicated region
        $region13: #{lstm_decoder_attention.3} parent=11 // pred_check
          %p123 = pneg %p30
        $region14: #{lstm_decoder_attention.3} parent=11 // pred_check_branch
          %125 = sbr.rel (%p123) target = $region16
        $region15: #{lstm_decoder_attention.3} parent=11 // pred_region
          _
        $region16: #{lstm_decoder_attention.3} parent=11 // pred_fallthru
          _
      $region12: #{lstm_decoder_attention.3} parent=5 // pred_fallthru
        _
      %p126 = scmp.lt.s32.totalorder %s9, 2
      // Predicated region
      $region17: #{lstm_decoder_attention.3} parent=5 // pred_check
        %p127 = pneg %p126
      $region18: #{lstm_decoder_attention.3} parent=5 // pred_check_branch
        %129 = sbr.rel (%p127) target = $region20
      $region19: #{lstm_decoder_attention.3} parent=5 // pred_region
        // Predicated region
        $region21: #{lstm_decoder_attention.3} parent=19 // pred_check
          %p130 = pneg %p50
        $region22: #{lstm_decoder_attention.3} parent=19 // pred_check_branch
          %132 = sbr.rel (%p130) target = $region24
        $region23: #{lstm_decoder_attention.3} parent=19 // pred_region
          %s133 = sand.u32 %s40, 1
          %s134 = sand.u32 %s40, 1
          %s135 = smul.addr %s134, 32
          %s136 = scalar_lea.vmem [#allocation2], %s135
          %s137 = smul.addr %s9, 8
          %s138 = scalar_lea.vmem %s1, %s137
          // Predicated region
          $region25: #{lstm_decoder_attention.3} parent=23 // pred_check
            _
          $region26: #{lstm_decoder_attention.3} parent=23 // pred_check_branch
            %140 = sbr.rel (0) target = $region28
          $region27: #{lstm_decoder_attention.3} parent=23 // pred_region
            // Predicated region
            $region29: #{lstm_decoder_attention.3} parent=27 // pred_check
              _
            $region30: #{lstm_decoder_attention.3} parent=27 // pred_check_branch
              %142 = sbr.rel (0) target = $region32
            $region31: #{lstm_decoder_attention.3} parent=27 // pred_region
              // Predicated region
              $region44: #{lstm_decoder_attention.3} parent=31 // pred_check
                _
              $region45: #{lstm_decoder_attention.3} parent=31 // pred_check_branch
                %164 = sbr.rel (0) target = $region47
              $region46: #{lstm_decoder_attention.3} parent=31 // pred_region
                loop: start=0, step=1, limit=1
                $region48: #{lstm_decoder_attention.3} parent=46 // loop_pre_header
                  _
                $region49: #{lstm_decoder_attention.3} parent=46 // loop_header
                  %s166 = sphi 0, %s170
                  %p167 = scmp.ge.s32.totalorder %s166, 1
                  %s171 = sphi %s138, %s138
                  %s172 = sphi %s136, %s136
                $region50: #{lstm_decoder_attention.3} parent=46 // loop_header_branch
                  %169 = sbr.rel (%p167) target = $region54
                $region51: #{lstm_decoder_attention.3} parent=46 // loop_body
                  %v173 = vld [vmem:[%s171] sm:$0xff]
                  %174 = vst [vmem:[%s172] sm:$0xff] %v173
                  %v175 = vld [vmem:[%s171 + $0x10] sm:$0xff]
                  %176 = vst [vmem:[%s172 + $0x8] sm:$0xff] %v175
                  %v177 = vld [vmem:[%s171 + $0x20] sm:$0xff]
                  %178 = vst [vmem:[%s172 + $0x10] sm:$0xff] %v177
                  %v179 = vld [vmem:[%s171 + $0x30] sm:$0xff]
                  %180 = vst [vmem:[%s172 + $0x18] sm:$0xff] %v179
                $region52: #{lstm_decoder_attention.3} parent=46 // loop_footer
                  %s170 = sadd.s32 1, %s166
                $region53: #{lstm_decoder_attention.3} parent=46 // loop_footer_branch
                  %165 = sbr.rel target = $region49
                $region54: #{lstm_decoder_attention.3} parent=46 // loop_exit
                  _
              $region47: #{lstm_decoder_attention.3} parent=31 // pred_fallthru
                _
              // Predicated region
              $region55: #{lstm_decoder_attention.3} parent=31 // pred_check
                _
              $region56: #{lstm_decoder_attention.3} parent=31 // pred_check_branch
                %182 = sbr.rel target = $region58
              $region57: #{lstm_decoder_attention.3} parent=31 // pred_region
                _
              $region58: #{lstm_decoder_attention.3} parent=31 // pred_fallthru
                _
            $region32: #{lstm_decoder_attention.3} parent=27 // pred_fallthru
              _
            // Predicated region
            $region33: #{lstm_decoder_attention.3} parent=27 // pred_check
              _
            $region34: #{lstm_decoder_attention.3} parent=27 // pred_check_branch
              %144 = sbr.rel target = $region36
            $region35: #{lstm_decoder_attention.3} parent=27 // pred_region
              %s146 = ssub.s32 256, 1
              loop: start=0, step=1, limit=1
              $region37: #{lstm_decoder_attention.3} parent=35 // loop_pre_header
                _
              $region38: #{lstm_decoder_attention.3} parent=35 // loop_header
                %s148 = sphi 0, %s152
                %p149 = scmp.ge.s32.totalorder %s148, 1
                %s153 = sphi %s138, %s138
                %s154 = sphi %s136, %s136
              $region39: #{lstm_decoder_attention.3} parent=35 // loop_header_branch
                %151 = sbr.rel (%p149) target = $region43
              $region40: #{lstm_decoder_attention.3} parent=35 // loop_body
                %v155 = vld [vmem:[%s153] sm:%s146]
                %156 = vst [vmem:[%s154] sm:%s146] %v155
                %v157 = vld [vmem:[%s153 + $0x10] sm:%s146]
                %158 = vst [vmem:[%s154 + $0x8] sm:%s146] %v157
                %v159 = vld [vmem:[%s153 + $0x20] sm:%s146]
                %160 = vst [vmem:[%s154 + $0x10] sm:%s146] %v159
                %v161 = vld [vmem:[%s153 + $0x30] sm:%s146]
                %162 = vst [vmem:[%s154 + $0x18] sm:%s146] %v161
              $region41: #{lstm_decoder_attention.3} parent=35 // loop_footer
                %s152 = sadd.s32 1, %s148
              $region42: #{lstm_decoder_attention.3} parent=35 // loop_footer_branch
                %147 = sbr.rel target = $region38
              $region43: #{lstm_decoder_attention.3} parent=35 // loop_exit
                _
            $region36: #{lstm_decoder_attention.3} parent=27 // pred_fallthru
              _
          $region28: #{lstm_decoder_attention.3} parent=23 // pred_fallthru
            _
          %183 = vnop
        $region24: #{lstm_decoder_attention.3} parent=19 // pred_fallthru
          _
        // Predicated region
        $region59: #{lstm_decoder_attention.3} parent=19 // pred_check
          %p184 = pneg %p76
        $region60: #{lstm_decoder_attention.3} parent=19 // pred_check_branch
          %186 = sbr.rel (%p184) target = $region62
        $region61: #{lstm_decoder_attention.3} parent=19 // pred_region
          %p187 = scmp.lt.s32.totalorder %s9, 1
          %s188 = scalar_select %p187, %s9, 1
          %s189 = scalar_lea.vmem %s2, %s188
        $region62: #{lstm_decoder_attention.3} parent=19 // pred_fallthru
          _
      $region20: #{lstm_decoder_attention.3} parent=5 // pred_fallthru
        _
      %p190 = scmp.le.s32.totalorder 1, %s9
      %p191 = scmp.lt.s32.totalorder %s9, 3
      %p192 = pnand %p190, %p191
      %p193 = pneg %p192
      // Predicated region
      $region63: #{lstm_decoder_attention.3} parent=5 // pred_check
        _
      $region64: #{lstm_decoder_attention.3} parent=5 // pred_check_branch
        %195 = sbr.rel (%p192) target = $region66
      $region65: #{lstm_decoder_attention.3} parent=5 // pred_region
        %s196 = ssub.s32 %s9, 1
        %s197 = sand.u32 %s43, 1
        %s198 = sand.u32 %s43, 1
        %s199 = smul.addr %s198, 32
        %s200 = scalar_lea.vmem [#allocation2], %s199
        // Predicated region
        $region67: #{lstm_decoder_attention.3} parent=65 // pred_check
          %p201 = pneg %p56
        $region68: #{lstm_decoder_attention.3} parent=65 // pred_check_branch
          %203 = sbr.rel (%p201) target = $region70
        $region69: #{lstm_decoder_attention.3} parent=65 // pred_region
          _
        $region70: #{lstm_decoder_attention.3} parent=65 // pred_fallthru
          _
        %p204 = pneg %p30
        %p205 = pneg %p27
        %s206 = sand.u32 %s43, 1
        %s207 = sand.u32 %s43, 1
        %s208 = smul.addr %s207, 32
        %s209 = scalar_lea.vmem [#allocation2], %s208
        %p210 = pneg %p56
        %p211 = pneg %p53
        %p212 = scmp.lt.s32.totalorder %s14, 1
        %s213 = scalar_select %p212, %s14, 1
        %s214 = scalar_lea.vmem %s2, %s213
        %p215 = pneg %p82
        %p216 = pneg %p79
        %p217 = pneg %p108
        %p218 = pneg %p105
        %p219 = scmp.lt.s32.totalorder %s14, 1
        %s220 = scalar_select %p219, %s14, 1
        %s221 = smul.addr %s220, 2
        %s222 = scalar_lea.vmem %s3, %s221
        %p223 = scmp.lt.s32.totalorder %s14, 1
        %s224 = scalar_select %p223, %s14, 1
        %s225 = scalar_lea.vmem %s2, %s224
        %p226 = scmp.lt.s32.totalorder %s14, 1
        %s227 = scalar_select %p226, %s14, 1
        %s228 = smul.addr %s227, 2
        %s229 = scalar_lea.vmem %s3, %s228
        %v230 = vld [vmem:[%s0] sm:$0x3]
        %v231 = vld [vmem:[%s200] sm:$0xff]
        %v232 = vld [vmem:[%s200 + $0x8] sm:$0xff]
        %v233 = vld [vmem:[%s200 + $0x10] sm:$0xff]
        %v234 = vld [vmem:[%s200 + $0x18] sm:$0xff]
        %v235 = vld [vmem:[%s225] sm:$0x1]
        %v237 = vperm.slane %v235, 0
        %vm239 = vcmask 261120
        %v241 = vsel %vm239, %v230, 0
        %243 = vmatpush.msra.mxu0 0.0
        %244 = vmatpush.msra.mxu0 0.0
        %245 = vmatpush.msra.mxu0 0.0
        %246 = vmatpush.msra.mxu0 0.0
        %247 = vmatpush.msra.mxu0 0.0
        %248 = vmatpush.msra.mxu0 0.0
        %249 = vmatpush.msra.mxu0 0.0
        %250 = vmatpush.msra.mxu0 0.0
        %251 = vmatpush.msra.mxu0 0.0
        %252 = vmatpush.msra.mxu0 0.0
        %253 = vmatpush.msra.mxu0 0.0
        %254 = vmatpush.msra.mxu0 0.0
        %255 = vmatpush.msra.mxu0 %v234
        %256 = vmatpush.msra.mxu0 %v233
        %257 = vmatpush.msra.mxu0 %v232
        %258 = vmatpush.msra.mxu0 %v231
        %259 = vmatmul.f32.gmra.mxu0 %v241
        %v260 = vpop.f32.mrf.mxu0
        %v261 = vadd.f32 %v237, %v260
        %262 = vdwg.mxu0
        %263 = vst [vmem:[%s229] sm:$0x3] %v261
        %p264 = scmp.lt.s32.totalorder %s14, 1
        %s265 = scalar_select %p264, %s14, 1
        %s266 = smul.addr %s265, 2
        %s267 = scalar_lea.vmem %s3, %s266
        // Predicated region
        $region71: #{lstm_decoder_attention.3} parent=65 // pred_check
          %p268 = pneg %p105
        $region72: #{lstm_decoder_attention.3} parent=65 // pred_check_branch
          %270 = sbr.rel (%p268) target = $region74
        $region73: #{lstm_decoder_attention.3} parent=65 // pred_region
          _
        $region74: #{lstm_decoder_attention.3} parent=65 // pred_fallthru
          _
      $region66: #{lstm_decoder_attention.3} parent=5 // pred_fallthru
        _
      %p271 = scmp.le.s32.totalorder 2, %s9
      // Predicated region
      $region75: #{lstm_decoder_attention.3} parent=5 // pred_check
        %p272 = pneg %p271
      $region76: #{lstm_decoder_attention.3} parent=5 // pred_check_branch
        %274 = sbr.rel (%p272) target = $region78
      $region77: #{lstm_decoder_attention.3} parent=5 // pred_region
        %s275 = ssub.s32 %s9, 2
        // Predicated region
        $region79: #{lstm_decoder_attention.3} parent=77 // pred_check
          %p276 = pneg %p111
        $region80: #{lstm_decoder_attention.3} parent=77 // pred_check_branch
          %278 = sbr.rel (%p276) target = $region82
        $region81: #{lstm_decoder_attention.3} parent=77 // pred_region
          %p279 = scmp.lt.s32.totalorder %s15, 1
          %s280 = scalar_select %p279, %s15, 1
          %s281 = smul.addr %s280, 2
          %s282 = scalar_lea.vmem %s3, %s281
        $region82: #{lstm_decoder_attention.3} parent=77 // pred_fallthru
          _
      $region78: #{lstm_decoder_attention.3} parent=5 // pred_fallthru
        _
    $region6: #{lstm_decoder_attention.3} parent=1 // loop_footer
      %s13 = sadd.s32 1, %s9
    $region7: #{lstm_decoder_attention.3} parent=1 // loop_footer_branch
      %8 = sbr.rel target = $region3
    $region8: #{lstm_decoder_attention.3} parent=1 // loop_exit
      _

// kernel: lstm_decoder_attention.2
$region0: #{lstm_decoder_attention.2}
  #allocation0 [shape = 'u32[]', space=smem, size = 0x4, offset = 0x4, fixed_abs, tag = 'smem constant byte address 0x4 - core index']
  #allocation1 [shape = 'u32[72,128]{1,0:T(1,128)}', space=vmem, size = 0x9000, scoped, tag = 'internal scratch']
  #allocation2 [shape = 'f32[2,32]{1,0:T(2,128)}', space=vmem, size = 0x400, scoped, tag = 'scratch operand']
  #allocation3 [shape = 'f32[2,1]{1,0:T(2,128)}', space=vmem, size = 0x400, scoped, tag = 'scratch operand']
  #allocation4 [shape = 'f32[2,1]{1,0:T(2,128)}', space=vmem, size = 0x400, scoped, tag = 'scratch operand']
  #allocation5 [shape = 'f32[2,64]{1,0:T(2,128)}', space=vmem, size = 0x400, scoped, tag = 'scratch operand']
  #allocation6 [shape = 'f32[64,128]{1,0:T(8,128)}', space=vmem, size = 0x8000, scoped, tag = 'scratch operand']
  #allocation7 [shape = 'f32[32,128]{1,0:T(8,128)}', space=vmem, size = 0x4000, scoped, tag = 'scratch operand']
  #allocation8 [shape = 'f32[32,128]{1,0:T(8,128)}', space=vmem, size = 0x4000, scoped, tag = 'scratch operand']
  #allocation9 [shape = 'f32[1,128]{1,0:T(1,128)}', space=vmem, size = 0x200, scoped, tag = 'scratch operand']
  #allocation10 [shape = 's32[4]{0}', space=sflag, size = 0x10, scoped, tag = 'scratch operand']
  #allocation14 [shape = 's32[]', space=sflag, size = 0x4, offset = 0, fixed_abs, tag = 'sflag constant byte address 0x0 - dummy sync flag']
  #allocation15 [shape = 's32[]', space=sflag, size = 0x4, offset = 0, fixed_abs, tag = 'sflag constant byte address 0x0 - dummy sync flag']
  #allocation16 [shape = 's32[]', space=sflag, size = 0x4, offset = 0, fixed_abs, tag = 'sflag constant byte address 0x0 - dummy sync flag']
  #allocation17 [shape = 's32[]', space=sflag, size = 0x4, offset = 0, fixed_abs, tag = 'sflag constant byte address 0x0 - dummy sync flag']
  %s0 = inlined_call_operand.vmem [shape: f32[2,32], index: 0, kind: input, shape index: {}]
  %s1 = inlined_call_operand.vmem [shape: f32[2,32], index: 1, kind: input, shape index: {}]
  %s2 = inlined_call_operand.vmem [shape: f32[2,32], index: 2, kind: input, shape index: {}]
  %s3 = inlined_call_operand.vmem [shape: f32[2,16,64], index: 3, kind: input, shape index: {}]
  %s4 = inlined_call_operand.vmem [shape: f32[32,32], index: 4, kind: input, shape index: {}]
  %s5 = inlined_call_operand.vmem [shape: f32[64,32], index: 5, kind: input, shape index: {}]
  %s6 = inlined_call_operand.vmem [shape: f32[1,32], index: 6, kind: input, shape index: {}]
  %s7 = inlined_call_operand.vmem [shape: f32[1,32], index: 7, kind: input, shape index: {}]
  %s8 = inlined_call_operand.vmem [shape: f32[64,128], index: 8, kind: input, shape index: {}]
  %s9 = inlined_call_operand.vmem [shape: f32[32,128], index: 9, kind: input, shape index: {}]
  %s10 = inlined_call_operand.vmem [shape: f32[32,128], index: 10, kind: input, shape index: {}]
  %s11 = inlined_call_operand.vmem [shape: f32[1,128], index: 11, kind: input, shape index: {}]
  %s12 = inlined_call_operand.vmem [shape: f32[2,32], index: 12, kind: output, shape index: {0}]
  %s13 = inlined_call_operand.hbm [shape: f32[2,32], index: 13, kind: output, shape index: {1}]
  %14 = xla_tuple %s12, %s13
  %s15 = sld [smem:[#allocation0]]
  $region206: #{lstm_decoder_attention.2} parent=0
    _
  %s17 = ssub.s32 1, %s15
  %s18 = scalar_select 0, %s17, %s15
  $region1: #{lstm_decoder_attention.2} parent=0
    #allocation11 [shape = 'u8[16384]{0}', space=vmem, size = 0x4000, scoped, tag = 'input window, operand 3']
    #allocation12 [shape = 'u8[1024]{0}', space=vmem, size = 0x400, scoped, tag = 'output window, operand 1, single buffered']
    #allocation13 [shape = 's32[2]{0}', space=sflag, size = 0x8, scoped, tag = 'scoped memory for lstm_decoder_attention.2']
    %19 = vsyncpa [#allocation13], 0
    loop: start=0, step=1, limit=4
    $region2: #{lstm_decoder_attention.2} parent=1 // loop_pre_header
      _
    $region3: #{lstm_decoder_attention.2} parent=1 // loop_header
      %s21 = sphi 0, %s25
      %p22 = scmp.ge.s32.totalorder %s21, 4
      %s28 = sphi 0, %s40
      %s29 = sphi 0, %s36
      %s30 = sphi 0, %s28
      %s31 = sphi 0, %s29
      %s32 = sphi 0, %s30
      %s33 = sphi 0, %s31
      %s43 = sphi 0, %s45
      %s46 = sphi 0, %s43
      %s47 = sphi 0, %s46
      %s63 = sphi 0, %s47
      %s69 = sphi 0, %s71
      %s72 = sphi 0, %s69
      %s73 = sphi 0, %s72
      %s89 = sphi 0, %s73
      %s95 = sphi 0, %s97
      %s98 = sphi 0, %s95
      %s99 = sphi 0, %s98
      %s115 = sphi 0, %s99
      %s123 = sphi 0, %s125
      %s126 = sphi 0, %s123
      %s127 = sphi 0, %s126
      %s143 = sphi 0, %s127
      %s147 = sphi 0, %s147
      %s149 = sphi 0, %s147
      %s150 = sphi 0, %s149
      %s164 = sphi 0, %s150
      %s168 = sphi 0, %s168
      %s170 = sphi 0, %s168
      %s171 = sphi 0, %s170
      %s185 = sphi 0, %s171
      %s189 = sphi 0, %s189
      %s191 = sphi 0, %s189
      %s192 = sphi 0, %s191
      %s206 = sphi 0, %s192
      %s210 = sphi 0, %s210
      %s212 = sphi 0, %s210
      %s213 = sphi 0, %s212
      %s227 = sphi 0, %s213
      %s233 = sphi 0, %s235
      %s236 = sphi 0, %s233
      %s237 = sphi 0, %s236
      %s253 = sphi 0, %s237
      %s259 = sphi 0, %s261
      %s262 = sphi 0, %s259
      %s263 = sphi 0, %s262
      %s279 = sphi 0, %s263
    $region4: #{lstm_decoder_attention.2} parent=1 // loop_header_branch
      %24 = sbr.rel (%p22) target = $region8
    $region5: #{lstm_decoder_attention.2} parent=1 // loop_body
      %s26 = ssub.s32 %s21, 1
      %s27 = ssub.s32 %s21, 2
      %s34 = sadd.s32 1, %s29
      %p35 = scmp.ge.s32.totalorder %s34, 2
      %s36 = scalar_select %p35, 0, %s34
      %s37 = sadd.s32 1, %s28
      %s38 = scalar_select %p35, %s37, %s28
      %p39 = scmp.ge.s32.totalorder %s38, 1
      %s40 = scalar_select %p39, 0, %s38
      %s41 = ssub.s32 %s28, %s40
      %p42 = scmp.eq.s32.totalorder %s41, 0
      %s44 = sadd.s32 %s43, 1
      %s45 = scalar_select %p42, %s43, %s44
      %p48 = pneg %p42
      %p49 = scmp.eq.s32.totalorder %s21, 1
      %p50 = por %p48, %p49
      %p51 = scmp.ne.s32.totalorder %s43, %s46
      %p52 = scmp.eq.s32.totalorder %s21, 0
      %p53 = por %p51, %p52
      %p54 = scmp.ne.s32.totalorder %s43, %s46
      %p55 = scmp.eq.s32.totalorder %s26, 1
      %p56 = por %p54, %p55
      %p57 = scmp.ne.s32.totalorder %s46, %s47
      %p58 = scmp.eq.s32.totalorder %s26, 0
      %p59 = por %p57, %p58
      %p60 = scmp.ne.s32.totalorder %s46, %s47
      %p61 = scmp.eq.s32.totalorder %s27, 1
      %p62 = por %p60, %p61
      %p64 = scmp.ne.s32.totalorder %s47, %s63
      %p65 = scmp.eq.s32.totalorder %s27, 0
      %p66 = por %p64, %p65
      %s67 = ssub.s32 %s28, %s40
      %p68 = scmp.eq.s32.totalorder %s67, 0
      %s70 = sadd.s32 %s69, 1
      %s71 = scalar_select %p68, %s69, %s70
      %p74 = pneg %p68
      %p75 = scmp.eq.s32.totalorder %s21, 1
      %p76 = por %p74, %p75
      %p77 = scmp.ne.s32.totalorder %s69, %s72
      %p78 = scmp.eq.s32.totalorder %s21, 0
      %p79 = por %p77, %p78
      %p80 = scmp.ne.s32.totalorder %s69, %s72
      %p81 = scmp.eq.s32.totalorder %s26, 1
      %p82 = por %p80, %p81
      %p83 = scmp.ne.s32.totalorder %s72, %s73
      %p84 = scmp.eq.s32.totalorder %s26, 0
      %p85 = por %p83, %p84
      %p86 = scmp.ne.s32.totalorder %s72, %s73
      %p87 = scmp.eq.s32.totalorder %s27, 1
      %p88 = por %p86, %p87
      %p90 = scmp.ne.s32.totalorder %s73, %s89
      %p91 = scmp.eq.s32.totalorder %s27, 0
      %p92 = por %p90, %p91
      %s93 = ssub.s32 %s28, %s40
      %p94 = scmp.eq.s32.totalorder %s93, 0
      %s96 = sadd.s32 %s95, 1
      %s97 = scalar_select %p94, %s95, %s96
      %p100 = pneg %p94
      %p101 = scmp.eq.s32.totalorder %s21, 1
      %p102 = por %p100, %p101
      %p103 = scmp.ne.s32.totalorder %s95, %s98
      %p104 = scmp.eq.s32.totalorder %s21, 0
      %p105 = por %p103, %p104
      %p106 = scmp.ne.s32.totalorder %s95, %s98
      %p107 = scmp.eq.s32.totalorder %s26, 1
      %p108 = por %p106, %p107
      %p109 = scmp.ne.s32.totalorder %s98, %s99
      %p110 = scmp.eq.s32.totalorder %s26, 0
      %p111 = por %p109, %p110
      %p112 = scmp.ne.s32.totalorder %s98, %s99
      %p113 = scmp.eq.s32.totalorder %s27, 1
      %p114 = por %p112, %p113
      %p116 = scmp.ne.s32.totalorder %s99, %s115
      %p117 = scmp.eq.s32.totalorder %s27, 0
      %p118 = por %p116, %p117
      %s119 = ssub.s32 %s28, %s40
      %s120 = ssub.s32 %s29, %s36
      %s121 = sor.u32 %s119, %s120
      %p122 = scmp.eq.s32.totalorder %s121, 0
      %s124 = sadd.s32 %s123, 1
      %s125 = scalar_select %p122, %s123, %s124
      %p128 = pneg %p122
      %p129 = scmp.eq.s32.totalorder %s21, 1
      %p130 = por %p128, %p129
      %p131 = scmp.ne.s32.totalorder %s123, %s126
      %p132 = scmp.eq.s32.totalorder %s21, 0
      %p133 = por %p131, %p132
      %p134 = scmp.ne.s32.totalorder %s123, %s126
      %p135 = scmp.eq.s32.totalorder %s26, 1
      %p136 = por %p134, %p135
      %p137 = scmp.ne.s32.totalorder %s126, %s127
      %p138 = scmp.eq.s32.totalorder %s26, 0
      %p139 = por %p137, %p138
      %p140 = scmp.ne.s32.totalorder %s126, %s127
      %p141 = scmp.eq.s32.totalorder %s27, 1
      %p142 = por %p140, %p141
      %p144 = scmp.ne.s32.totalorder %s127, %s143
      %p145 = scmp.eq.s32.totalorder %s27, 0
      %p146 = por %p144, %p145
      %s148 = sadd.s32 %s147, 1
      %p151 = scmp.eq.s32.totalorder %s21, 1
      %p152 = scmp.ne.s32.totalorder %s147, %s149
      %p153 = scmp.eq.s32.totalorder %s21, 0
      %p154 = por %p152, %p153
      %p155 = scmp.ne.s32.totalorder %s147, %s149
      %p156 = scmp.eq.s32.totalorder %s26, 1
      %p157 = por %p155, %p156
      %p158 = scmp.ne.s32.totalorder %s149, %s150
      %p159 = scmp.eq.s32.totalorder %s26, 0
      %p160 = por %p158, %p159
      %p161 = scmp.ne.s32.totalorder %s149, %s150
      %p162 = scmp.eq.s32.totalorder %s27, 1
      %p163 = por %p161, %p162
      %p165 = scmp.ne.s32.totalorder %s150, %s164
      %p166 = scmp.eq.s32.totalorder %s27, 0
      %p167 = por %p165, %p166
      %s169 = sadd.s32 %s168, 1
      %p172 = scmp.eq.s32.totalorder %s21, 1
      %p173 = scmp.ne.s32.totalorder %s168, %s170
      %p174 = scmp.eq.s32.totalorder %s21, 0
      %p175 = por %p173, %p174
      %p176 = scmp.ne.s32.totalorder %s168, %s170
      %p177 = scmp.eq.s32.totalorder %s26, 1
      %p178 = por %p176, %p177
      %p179 = scmp.ne.s32.totalorder %s170, %s171
      %p180 = scmp.eq.s32.totalorder %s26, 0
      %p181 = por %p179, %p180
      %p182 = scmp.ne.s32.totalorder %s170, %s171
      %p183 = scmp.eq.s32.totalorder %s27, 1
      %p184 = por %p182, %p183
      %p186 = scmp.ne.s32.totalorder %s171, %s185
      %p187 = scmp.eq.s32.totalorder %s27, 0
      %p188 = por %p186, %p187
      %s190 = sadd.s32 %s189, 1
      %p193 = scmp.eq.s32.totalorder %s21, 1
      %p194 = scmp.ne.s32.totalorder %s189, %s191
      %p195 = scmp.eq.s32.totalorder %s21, 0
      %p196 = por %p194, %p195
      %p197 = scmp.ne.s32.totalorder %s189, %s191
      %p198 = scmp.eq.s32.totalorder %s26, 1
      %p199 = por %p197, %p198
      %p200 = scmp.ne.s32.totalorder %s191, %s192
      %p201 = scmp.eq.s32.totalorder %s26, 0
      %p202 = por %p200, %p201
      %p203 = scmp.ne.s32.totalorder %s191, %s192
      %p204 = scmp.eq.s32.totalorder %s27, 1
      %p205 = por %p203, %p204
      %p207 = scmp.ne.s32.totalorder %s192, %s206
      %p208 = scmp.eq.s32.totalorder %s27, 0
      %p209 = por %p207, %p208
      %s211 = sadd.s32 %s210, 1
      %p214 = scmp.eq.s32.totalorder %s21, 1
      %p215 = scmp.ne.s32.totalorder %s210, %s212
      %p216 = scmp.eq.s32.totalorder %s21, 0
      %p217 = por %p215, %p216
      %p218 = scmp.ne.s32.totalorder %s210, %s212
      %p219 = scmp.eq.s32.totalorder %s26, 1
      %p220 = por %p218, %p219
      %p221 = scmp.ne.s32.totalorder %s212, %s213
      %p222 = scmp.eq.s32.totalorder %s26, 0
      %p223 = por %p221, %p222
      %p224 = scmp.ne.s32.totalorder %s212, %s213
      %p225 = scmp.eq.s32.totalorder %s27, 1
      %p226 = por %p224, %p225
      %p228 = scmp.ne.s32.totalorder %s213, %s227
      %p229 = scmp.eq.s32.totalorder %s27, 0
      %p230 = por %p228, %p229
      %s231 = ssub.s32 %s28, %s40
      %p232 = scmp.eq.s32.totalorder %s231, 0
      %s234 = sadd.s32 %s233, 1
      %s235 = scalar_select %p232, %s233, %s234
      %p238 = pneg %p232
      %p239 = scmp.eq.s32.totalorder %s21, 1
      %p240 = por %p238, %p239
      %p241 = scmp.ne.s32.totalorder %s233, %s236
      %p242 = scmp.eq.s32.totalorder %s21, 0
      %p243 = por %p241, %p242
      %p244 = scmp.ne.s32.totalorder %s233, %s236
      %p245 = scmp.eq.s32.totalorder %s26, 1
      %p246 = por %p244, %p245
      %p247 = scmp.ne.s32.totalorder %s236, %s237
      %p248 = scmp.eq.s32.totalorder %s26, 0
      %p249 = por %p247, %p248
      %p250 = scmp.ne.s32.totalorder %s236, %s237
      %p251 = scmp.eq.s32.totalorder %s27, 1
      %p252 = por %p250, %p251
      %p254 = scmp.ne.s32.totalorder %s237, %s253
      %p255 = scmp.eq.s32.totalorder %s27, 0
      %p256 = por %p254, %p255
      %s257 = ssub.s32 %s28, %s40
      %p258 = scmp.eq.s32.totalorder %s257, 0
      %s260 = sadd.s32 %s259, 1
      %s261 = scalar_select %p258, %s259, %s260
      %p264 = pneg %p258
      %p265 = scmp.eq.s32.totalorder %s21, 1
      %p266 = por %p264, %p265
      %p267 = scmp.ne.s32.totalorder %s259, %s262
      %p268 = scmp.eq.s32.totalorder %s21, 0
      %p269 = por %p267, %p268
      %p270 = scmp.ne.s32.totalorder %s259, %s262
      %p271 = scmp.eq.s32.totalorder %s26, 1
      %p272 = por %p270, %p271
      %p273 = scmp.ne.s32.totalorder %s262, %s263
      %p274 = scmp.eq.s32.totalorder %s26, 0
      %p275 = por %p273, %p274
      %p276 = scmp.ne.s32.totalorder %s262, %s263
      %p277 = scmp.eq.s32.totalorder %s27, 1
      %p278 = por %p276, %p277
      %p280 = scmp.ne.s32.totalorder %s263, %s279
      %p281 = scmp.eq.s32.totalorder %s27, 0
      %p282 = por %p280, %p281
      %p283 = scmp.le.s32.totalorder 1, %s21
      %p284 = scmp.lt.s32.totalorder %s21, 3
      %p285 = pnand %p283, %p284
      %p286 = pneg %p285
      // Predicated region
      $region9: #{lstm_decoder_attention.2} parent=5 // pred_check
        _
      $region10: #{lstm_decoder_attention.2} parent=5 // pred_check_branch
        %288 = sbr.rel (%p285) target = $region12
      $region11: #{lstm_decoder_attention.2} parent=5 // pred_region
        %s289 = ssub.s32 %s21, 1
        // Predicated region
        $region13: #{lstm_decoder_attention.2} parent=11 // pred_check
          %p290 = pneg %p59
        $region14: #{lstm_decoder_attention.2} parent=11 // pred_check_branch
          %292 = sbr.rel (%p290) target = $region16
        $region15: #{lstm_decoder_attention.2} parent=11 // pred_region
          %p293 = scmp.lt.s32.totalorder %s30, 0
          %s294 = scalar_select %p293, %s30, 0
          %s295 = smul.addr %s294, 2
          %s296 = scalar_lea.vmem %s0, %s295
        $region16: #{lstm_decoder_attention.2} parent=11 // pred_fallthru
          _
        // Predicated region
        $region17: #{lstm_decoder_attention.2} parent=11 // pred_check
          %p297 = pneg %p85
        $region18: #{lstm_decoder_attention.2} parent=11 // pred_check_branch
          %299 = sbr.rel (%p297) target = $region20
        $region19: #{lstm_decoder_attention.2} parent=11 // pred_region
          %p300 = scmp.lt.s32.totalorder %s30, 0
          %s301 = scalar_select %p300, %s30, 0
          %s302 = smul.addr %s301, 2
          %s303 = scalar_lea.vmem %s1, %s302
        $region20: #{lstm_decoder_attention.2} parent=11 // pred_fallthru
          _
        // Predicated region
        $region21: #{lstm_decoder_attention.2} parent=11 // pred_check
          %p304 = pneg %p111
        $region22: #{lstm_decoder_attention.2} parent=11 // pred_check_branch
          %306 = sbr.rel (%p304) target = $region24
        $region23: #{lstm_decoder_attention.2} parent=11 // pred_region
          %p307 = scmp.lt.s32.totalorder %s30, 0
          %s308 = scalar_select %p307, %s30, 0
          %s309 = smul.addr %s308, 2
          %s310 = scalar_lea.vmem %s2, %s309
        $region24: #{lstm_decoder_attention.2} parent=11 // pred_fallthru
          _
        // Predicated region
        $region25: #{lstm_decoder_attention.2} parent=11 // pred_check
          %p311 = pneg %p160
        $region26: #{lstm_decoder_attention.2} parent=11 // pred_check_branch
          %313 = sbr.rel (%p311) target = $region28
        $region27: #{lstm_decoder_attention.2} parent=11 // pred_region
          _
        $region28: #{lstm_decoder_attention.2} parent=11 // pred_fallthru
          _
        // Predicated region
        $region29: #{lstm_decoder_attention.2} parent=11 // pred_check
          %p314 = pneg %p181
        $region30: #{lstm_decoder_attention.2} parent=11 // pred_check_branch
          %316 = sbr.rel (%p314) target = $region32
        $region31: #{lstm_decoder_attention.2} parent=11 // pred_region
          _
        $region32: #{lstm_decoder_attention.2} parent=11 // pred_fallthru
          _
        // Predicated region
        $region33: #{lstm_decoder_attention.2} parent=11 // pred_check
          %p317 = pneg %p202
        $region34: #{lstm_decoder_attention.2} parent=11 // pred_check_branch
          %319 = sbr.rel (%p317) target = $region36
        $region35: #{lstm_decoder_attention.2} parent=11 // pred_region
          _
        $region36: #{lstm_decoder_attention.2} parent=11 // pred_fallthru
          _
        // Predicated region
        $region37: #{lstm_decoder_attention.2} parent=11 // pred_check
          %p320 = pneg %p223
        $region38: #{lstm_decoder_attention.2} parent=11 // pred_check_branch
          %322 = sbr.rel (%p320) target = $region40
        $region39: #{lstm_decoder_attention.2} parent=11 // pred_region
          _
        $region40: #{lstm_decoder_attention.2} parent=11 // pred_fallthru
          _
      $region12: #{lstm_decoder_attention.2} parent=5 // pred_fallthru
        _
      %p323 = scmp.lt.s32.totalorder %s21, 2
      // Predicated region
      $region41: #{lstm_decoder_attention.2} parent=5 // pred_check
        %p324 = pneg %p323
      $region42: #{lstm_decoder_attention.2} parent=5 // pred_check_branch
        %326 = sbr.rel (%p324) target = $region44
      $region43: #{lstm_decoder_attention.2} parent=5 // pred_region
        // Predicated region
        $region45: #{lstm_decoder_attention.2} parent=43 // pred_check
          %p327 = pneg %p133
        $region46: #{lstm_decoder_attention.2} parent=43 // pred_check_branch
          %329 = sbr.rel (%p327) target = $region48
        $region47: #{lstm_decoder_attention.2} parent=43 // pred_region
          %s330 = sand.u32 %s123, 1
          %s331 = sand.u32 %s123, 1
          %s332 = smul.addr %s331, 16
          %s333 = scalar_lea.vmem [#allocation11], %s332
          %s334 = smul.u32 2, %s28
          %s335 = smul.addr %s334, 2
          %s336 = sadd.s32 %s29, %s335
          %s337 = smul.addr %s336, 8
          %s338 = scalar_lea.vmem %s3, %s337
          // Predicated region
          $region49: #{lstm_decoder_attention.2} parent=47 // pred_check
            _
          $region50: #{lstm_decoder_attention.2} parent=47 // pred_check_branch
            %340 = sbr.rel (0) target = $region52
          $region51: #{lstm_decoder_attention.2} parent=47 // pred_region
            // Predicated region
            $region53: #{lstm_decoder_attention.2} parent=51 // pred_check
              _
            $region54: #{lstm_decoder_attention.2} parent=51 // pred_check_branch
              %342 = sbr.rel (0) target = $region56
            $region55: #{lstm_decoder_attention.2} parent=51 // pred_region
              // Predicated region
              $region68: #{lstm_decoder_attention.2} parent=55 // pred_check
                _
              $region69: #{lstm_decoder_attention.2} parent=55 // pred_check_branch
                %360 = sbr.rel (0) target = $region71
              $region70: #{lstm_decoder_attention.2} parent=55 // pred_region
                loop: start=0, step=1, limit=1
                $region72: #{lstm_decoder_attention.2} parent=70 // loop_pre_header
                  _
                $region73: #{lstm_decoder_attention.2} parent=70 // loop_header
                  %s362 = sphi 0, %s366
                  %p363 = scmp.ge.s32.totalorder %s362, 1
                  %s367 = sphi %s338, %s338
                  %s368 = sphi %s333, %s333
                $region74: #{lstm_decoder_attention.2} parent=70 // loop_header_branch
                  %365 = sbr.rel (%p363) target = $region78
                $region75: #{lstm_decoder_attention.2} parent=70 // loop_body
                  %v369 = vld [vmem:[%s367] sm:$0xff]
                  %370 = vst [vmem:[%s368] sm:$0xff] %v369
                  %v371 = vld [vmem:[%s367 + $0x10] sm:$0xff]
                  %372 = vst [vmem:[%s368 + $0x8] sm:$0xff] %v371
                $region76: #{lstm_decoder_attention.2} parent=70 // loop_footer
                  %s366 = sadd.s32 1, %s362
                $region77: #{lstm_decoder_attention.2} parent=70 // loop_footer_branch
                  %361 = sbr.rel target = $region73
                $region78: #{lstm_decoder_attention.2} parent=70 // loop_exit
                  _
              $region71: #{lstm_decoder_attention.2} parent=55 // pred_fallthru
                _
              // Predicated region
              $region79: #{lstm_decoder_attention.2} parent=55 // pred_check
                _
              $region80: #{lstm_decoder_attention.2} parent=55 // pred_check_branch
                %374 = sbr.rel target = $region82
              $region81: #{lstm_decoder_attention.2} parent=55 // pred_region
                _
              $region82: #{lstm_decoder_attention.2} parent=55 // pred_fallthru
                _
            $region56: #{lstm_decoder_attention.2} parent=51 // pred_fallthru
              _
            // Predicated region
            $region57: #{lstm_decoder_attention.2} parent=51 // pred_check
              _
            $region58: #{lstm_decoder_attention.2} parent=51 // pred_check_branch
              %344 = sbr.rel target = $region60
            $region59: #{lstm_decoder_attention.2} parent=51 // pred_region
              %s346 = ssub.s32 256, 1
              loop: start=0, step=1, limit=1
              $region61: #{lstm_decoder_attention.2} parent=59 // loop_pre_header
                _
              $region62: #{lstm_decoder_attention.2} parent=59 // loop_header
                %s348 = sphi 0, %s352
                %p349 = scmp.ge.s32.totalorder %s348, 1
                %s353 = sphi %s338, %s338
                %s354 = sphi %s333, %s333
              $region63: #{lstm_decoder_attention.2} parent=59 // loop_header_branch
                %351 = sbr.rel (%p349) target = $region67
              $region64: #{lstm_decoder_attention.2} parent=59 // loop_body
                %v355 = vld [vmem:[%s353] sm:%s346]
                %356 = vst [vmem:[%s354] sm:%s346] %v355
                %v357 = vld [vmem:[%s353 + $0x10] sm:%s346]
                %358 = vst [vmem:[%s354 + $0x8] sm:%s346] %v357
              $region65: #{lstm_decoder_attention.2} parent=59 // loop_footer
                %s352 = sadd.s32 1, %s348
              $region66: #{lstm_decoder_attention.2} parent=59 // loop_footer_branch
                %347 = sbr.rel target = $region62
              $region67: #{lstm_decoder_attention.2} parent=59 // loop_exit
                _
            $region60: #{lstm_decoder_attention.2} parent=51 // pred_fallthru
              _
          $region52: #{lstm_decoder_attention.2} parent=47 // pred_fallthru
            _
          %375 = vnop
        $region48: #{lstm_decoder_attention.2} parent=43 // pred_fallthru
          _
      $region44: #{lstm_decoder_attention.2} parent=5 // pred_fallthru
        _
      %p376 = scmp.le.s32.totalorder 1, %s21
      %p377 = scmp.lt.s32.totalorder %s21, 3
      %p378 = pnand %p376, %p377
      %p379 = pneg %p378
      // Predicated region
      $region83: #{lstm_decoder_attention.2} parent=5 // pred_check
        _
      $region84: #{lstm_decoder_attention.2} parent=5 // pred_check_branch
        %381 = sbr.rel (%p378) target = $region86
      $region85: #{lstm_decoder_attention.2} parent=5 // pred_region
        %s382 = ssub.s32 %s21, 1
        %s383 = sand.u32 %s126, 1
        %s384 = sand.u32 %s126, 1
        %s385 = smul.addr %s384, 16
        %s386 = scalar_lea.vmem [#allocation11], %s385
        // Predicated region
        $region87: #{lstm_decoder_attention.2} parent=85 // pred_check
          %p387 = pneg %p139
        $region88: #{lstm_decoder_attention.2} parent=85 // pred_check_branch
          %389 = sbr.rel (%p387) target = $region90
        $region89: #{lstm_decoder_attention.2} parent=85 // pred_region
          _
        $region90: #{lstm_decoder_attention.2} parent=85 // pred_fallthru
          _
        %p390 = scmp.lt.s32.totalorder %s30, 0
        %s391 = scalar_select %p390, %s30, 0
        %s392 = smul.addr %s391, 2
        %s393 = scalar_lea.vmem %s0, %s392
        %p394 = pneg %p59
        %p395 = pneg %p56
        %p396 = scmp.lt.s32.totalorder %s30, 0
        %s397 = scalar_select %p396, %s30, 0
        %s398 = smul.addr %s397, 2
        %s399 = scalar_lea.vmem %s1, %s398
        %p400 = pneg %p85
        %p401 = pneg %p82
        %p402 = scmp.lt.s32.totalorder %s30, 0
        %s403 = scalar_select %p402, %s30, 0
        %s404 = smul.addr %s403, 2
        %s405 = scalar_lea.vmem %s2, %s404
        %p406 = pneg %p111
        %p407 = pneg %p108
        %s408 = sand.u32 %s126, 1
        %s409 = sand.u32 %s126, 1
        %s410 = smul.addr %s409, 16
        %s411 = scalar_lea.vmem [#allocation11], %s410
        %p412 = pneg %p139
        %p413 = pneg %p136
        %p414 = pneg %p160
        %p415 = pneg %p157
        %p416 = pneg %p181
        %p417 = pneg %p178
        %p418 = pneg %p202
        %p419 = pneg %p199
        %p420 = pneg %p223
        %p421 = pneg %p220
        %p422 = pneg %p249
        %p423 = pneg %p246
        %p424 = scmp.lt.s32.totalorder %s30, 0
        %s425 = scalar_select %p424, %s30, 0
        %s426 = smul.addr %s425, 2
        %s427 = scalar_lea.vmem %s12, %s426
        %p428 = pneg %p275
        %p429 = pneg %p272
        %p430 = scmp.lt.s32.totalorder %s30, 0
        %s431 = scalar_select %p430, %s30, 0
        %s432 = smul.addr %s431, 2
        %s433 = scalar_lea.vmem %s0, %s432
        %p434 = scmp.lt.s32.totalorder %s30, 0
        %s435 = scalar_select %p434, %s30, 0
        %s436 = smul.addr %s435, 2
        %s437 = scalar_lea.vmem %s1, %s436
        %p438 = scmp.lt.s32.totalorder %s30, 0
        %s439 = scalar_select %p438, %s30, 0
        %s440 = smul.addr %s439, 2
        %s441 = scalar_lea.vmem %s2, %s440
        %s442 = smul.u32 2, %s30
        %p443 = scmp.lt.s32.totalorder %s30, 0
        %s444 = scalar_select %p443, %s30, 0
        %s445 = smul.addr %s444, 2
        %s446 = scalar_lea.vmem %s12, %s445
        %p447 = scmp.eq.s32.totalorder %s31, 0
        // Predicated region
        $region91: #{lstm_decoder_attention.2} parent=85 // pred_check
          %p448 = pneg %p447
        $region92: #{lstm_decoder_attention.2} parent=85 // pred_check_branch
          %450 = sbr.rel (%p448) target = $region94
        $region93: #{lstm_decoder_attention.2} parent=85 // pred_region
          %v451 = vld [vmem:[%s437] sm:$0x3]
          %v452 = vld [vmem:[%s4] sm:$0xff]
          %v453 = vld [vmem:[%s4 + $0x8] sm:$0xff]
          %v454 = vld [vmem:[%s4 + $0x10] sm:$0xff]
          %v455 = vld [vmem:[%s4 + $0x18] sm:$0xff]
          %v456 = vld [vmem:[%s6] sm:$0x1]
          %v458 = vperm.slane %v456, 0
          %vm460 = vcmask 261120
          %v462 = vsel %vm460, %v451, 0
          %464 = vmatpush.msra.mxu0 0.0
          %465 = vmatpush.msra.mxu0 0.0
          %466 = vmatpush.msra.mxu0 0.0
          %467 = vmatpush.msra.mxu0 0.0
          %468 = vmatpush.msra.mxu0 0.0
          %469 = vmatpush.msra.mxu0 0.0
          %470 = vmatpush.msra.mxu0 0.0
          %471 = vmatpush.msra.mxu0 0.0
          %472 = vmatpush.msra.mxu0 0.0
          %473 = vmatpush.msra.mxu0 0.0
          %474 = vmatpush.msra.mxu0 0.0
          %475 = vmatpush.msra.mxu0 0.0
          %476 = vmatpush.msra.mxu0 %v455
          %477 = vmatpush.msra.mxu0 %v454
          %478 = vmatpush.msra.mxu0 %v453
          %479 = vmatpush.msra.mxu0 %v452
          %480 = vmatmul.f32.gmra.mxu0 %v462
          %v481 = vpop.f32.mrf.mxu0
          %v482 = vadd.f32 %v458, %v481
          %483 = vdwg.mxu0
          %vm484 = vcmask 254976
          %485 = vst.msk [vmem:[#allocation2] sm:$0x3] %vm484, %v482
          %vm486 = vcmask 1024
          %487 = vst.msk [vmem:[#allocation3] sm:$0x3] %vm486, -inf
          %488 = vst.msk [vmem:[#allocation4] sm:$0x3] %vm486, 0.0
          %vm489 = vcmask 517120
          %490 = vst.msk [vmem:[#allocation5] sm:$0x3] %vm489, 0.0
          // Predicated region
          $region95: #{lstm_decoder_attention.2} parent=93 // pred_check
            _
          $region96: #{lstm_decoder_attention.2} parent=93 // pred_check_branch
            %492 = sbr.rel (0) target = $region98
          $region97: #{lstm_decoder_attention.2} parent=93 // pred_region
            loop: start=0, step=1, limit=1
            $region99: #{lstm_decoder_attention.2} parent=97 // loop_pre_header
              _
            $region100: #{lstm_decoder_attention.2} parent=97 // loop_header
              %s494 = sphi 0, %s498
              %p495 = scmp.ge.s32.totalorder %s494, 1
              %s499 = sphi %s8, %s8
              %s500 = sphi [#allocation6], [#allocation6]
            $region101: #{lstm_decoder_attention.2} parent=97 // loop_header_branch
              %497 = sbr.rel (%p495) target = $region105
            $region102: #{lstm_decoder_attention.2} parent=97 // loop_body
              %v501 = vld [vmem:[%s499] sm:$0xff]
              %502 = vst [vmem:[%s500] sm:$0xff] %v501
              %v503 = vld [vmem:[%s499 + $0x8] sm:$0xff]
              %504 = vst [vmem:[%s500 + $0x8] sm:$0xff] %v503
              %v505 = vld [vmem:[%s499 + $0x10] sm:$0xff]
              %506 = vst [vmem:[%s500 + $0x10] sm:$0xff] %v505
              %v507 = vld [vmem:[%s499 + $0x18] sm:$0xff]
              %508 = vst [vmem:[%s500 + $0x18] sm:$0xff] %v507
              %v509 = vld [vmem:[%s499 + $0x20] sm:$0xff]
              %510 = vst [vmem:[%s500 + $0x20] sm:$0xff] %v509
              %v511 = vld [vmem:[%s499 + $0x28] sm:$0xff]
              %512 = vst [vmem:[%s500 + $0x28] sm:$0xff] %v511
              %v513 = vld [vmem:[%s499 + $0x30] sm:$0xff]
              %514 = vst [vmem:[%s500 + $0x30] sm:$0xff] %v513
              %v515 = vld [vmem:[%s499 + $0x38] sm:$0xff]
              %516 = vst [vmem:[%s500 + $0x38] sm:$0xff] %v515
            $region103: #{lstm_decoder_attention.2} parent=97 // loop_footer
              %s498 = sadd.s32 1, %s494
            $region104: #{lstm_decoder_attention.2} parent=97 // loop_footer_branch
              %493 = sbr.rel target = $region100
            $region105: #{lstm_decoder_attention.2} parent=97 // loop_exit
              _
          $region98: #{lstm_decoder_attention.2} parent=93 // pred_fallthru
            _
          // Predicated region
          $region106: #{lstm_decoder_attention.2} parent=93 // pred_check
            _
          $region107: #{lstm_decoder_attention.2} parent=93 // pred_check_branch
            %518 = sbr.rel target = $region109
          $region108: #{lstm_decoder_attention.2} parent=93 // pred_region
            _
          $region109: #{lstm_decoder_attention.2} parent=93 // pred_fallthru
            _
          // Predicated region
          $region110: #{lstm_decoder_attention.2} parent=93 // pred_check
            _
          $region111: #{lstm_decoder_attention.2} parent=93 // pred_check_branch
            %521 = sbr.rel (0) target = $region113
          $region112: #{lstm_decoder_attention.2} parent=93 // pred_region
            %522 = vsyncadd [#allocation10], 1024
          $region113: #{lstm_decoder_attention.2} parent=93 // pred_fallthru
            _
          %s523 = scalar_lea.sflag [#allocation10], 1
          // Predicated region
          $region114: #{lstm_decoder_attention.2} parent=93 // pred_check
            _
          $region115: #{lstm_decoder_attention.2} parent=93 // pred_check_branch
            %525 = sbr.rel (0) target = $region117
          $region116: #{lstm_decoder_attention.2} parent=93 // pred_region
            loop: start=0, step=1, limit=1
            $region118: #{lstm_decoder_attention.2} parent=116 // loop_pre_header
              _
            $region119: #{lstm_decoder_attention.2} parent=116 // loop_header
              %s527 = sphi 0, %s531
              %p528 = scmp.ge.s32.totalorder %s527, 1
              %s532 = sphi %s9, %s9
              %s533 = sphi [#allocation7], [#allocation7]
            $region120: #{lstm_decoder_attention.2} parent=116 // loop_header_branch
              %530 = sbr.rel (%p528) target = $region124
            $region121: #{lstm_decoder_attention.2} parent=116 // loop_body
              %v534 = vld [vmem:[%s532] sm:$0xff]
              %535 = vst [vmem:[%s533] sm:$0xff] %v534
              %v536 = vld [vmem:[%s532 + $0x8] sm:$0xff]
              %537 = vst [vmem:[%s533 + $0x8] sm:$0xff] %v536
              %v538 = vld [vmem:[%s532 + $0x10] sm:$0xff]
              %539 = vst [vmem:[%s533 + $0x10] sm:$0xff] %v538
              %v540 = vld [vmem:[%s532 + $0x18] sm:$0xff]
              %541 = vst [vmem:[%s533 + $0x18] sm:$0xff] %v540
            $region122: #{lstm_decoder_attention.2} parent=116 // loop_footer
              %s531 = sadd.s32 1, %s527
            $region123: #{lstm_decoder_attention.2} parent=116 // loop_footer_branch
              %526 = sbr.rel target = $region119
            $region124: #{lstm_decoder_attention.2} parent=116 // loop_exit
              _
          $region117: #{lstm_decoder_attention.2} parent=93 // pred_fallthru
            _
          // Predicated region
          $region125: #{lstm_decoder_attention.2} parent=93 // pred_check
            _
          $region126: #{lstm_decoder_attention.2} parent=93 // pred_check_branch
            %543 = sbr.rel target = $region128
          $region127: #{lstm_decoder_attention.2} parent=93 // pred_region
            _
          $region128: #{lstm_decoder_attention.2} parent=93 // pred_fallthru
            _
          // Predicated region
          $region129: #{lstm_decoder_attention.2} parent=93 // pred_check
            _
          $region130: #{lstm_decoder_attention.2} parent=93 // pred_check_branch
            %546 = sbr.rel (0) target = $region132
          $region131: #{lstm_decoder_attention.2} parent=93 // pred_region
            %547 = vsyncadd %s523, 512
          $region132: #{lstm_decoder_attention.2} parent=93 // pred_fallthru
            _
          %s548 = scalar_lea.sflag [#allocation10], 2
          // Predicated region
          $region133: #{lstm_decoder_attention.2} parent=93 // pred_check
            _
          $region134: #{lstm_decoder_attention.2} parent=93 // pred_check_branch
            %550 = sbr.rel (0) target = $region136
          $region135: #{lstm_decoder_attention.2} parent=93 // pred_region
            loop: start=0, step=1, limit=1
            $region137: #{lstm_decoder_attention.2} parent=135 // loop_pre_header
              _
            $region138: #{lstm_decoder_attention.2} parent=135 // loop_header
              %s552 = sphi 0, %s556
              %p553 = scmp.ge.s32.totalorder %s552, 1
              %s557 = sphi %s10, %s10
              %s558 = sphi [#allocation8], [#allocation8]
            $region139: #{lstm_decoder_attention.2} parent=135 // loop_header_branch
              %555 = sbr.rel (%p553) target = $region143
            $region140: #{lstm_decoder_attention.2} parent=135 // loop_body
              %v559 = vld [vmem:[%s557] sm:$0xff]
              %560 = vst [vmem:[%s558] sm:$0xff] %v559
              %v561 = vld [vmem:[%s557 + $0x8] sm:$0xff]
              %562 = vst [vmem:[%s558 + $0x8] sm:$0xff] %v561
              %v563 = vld [vmem:[%s557 + $0x10] sm:$0xff]
              %564 = vst [vmem:[%s558 + $0x10] sm:$0xff] %v563
              %v565 = vld [vmem:[%s557 + $0x18] sm:$0xff]
              %566 = vst [vmem:[%s558 + $0x18] sm:$0xff] %v565
            $region141: #{lstm_decoder_attention.2} parent=135 // loop_footer
              %s556 = sadd.s32 1, %s552
            $region142: #{lstm_decoder_attention.2} parent=135 // loop_footer_branch
              %551 = sbr.rel target = $region138
            $region143: #{lstm_decoder_attention.2} parent=135 // loop_exit
              _
          $region136: #{lstm_decoder_attention.2} parent=93 // pred_fallthru
            _
          // Predicated region
          $region144: #{lstm_decoder_attention.2} parent=93 // pred_check
            _
          $region145: #{lstm_decoder_attention.2} parent=93 // pred_check_branch
            %568 = sbr.rel target = $region147
          $region146: #{lstm_decoder_attention.2} parent=93 // pred_region
            _
          $region147: #{lstm_decoder_attention.2} parent=93 // pred_fallthru
            _
          // Predicated region
          $region148: #{lstm_decoder_attention.2} parent=93 // pred_check
            _
          $region149: #{lstm_decoder_attention.2} parent=93 // pred_check_branch
            %571 = sbr.rel (0) target = $region151
          $region150: #{lstm_decoder_attention.2} parent=93 // pred_region
            %572 = vsyncadd %s548, 512
          $region151: #{lstm_decoder_attention.2} parent=93 // pred_fallthru
            _
          %s573 = scalar_lea.sflag [#allocation10], 3
          // Predicated region
          $region152: #{lstm_decoder_attention.2} parent=93 // pred_check
            _
          $region153: #{lstm_decoder_attention.2} parent=93 // pred_check_branch
            %575 = sbr.rel target = $region155
          $region154: #{lstm_decoder_attention.2} parent=93 // pred_region
            // Predicated region
            $region167: #{lstm_decoder_attention.2} parent=154 // pred_check
              _
            $region168: #{lstm_decoder_attention.2} parent=154 // pred_check_branch
              %591 = sbr.rel (0) target = $region170
            $region169: #{lstm_decoder_attention.2} parent=154 // pred_region
              %s593 = ssub.s32 2, 1
              loop: start=0, step=1, limit=1
              $region171: #{lstm_decoder_attention.2} parent=169 // loop_pre_header
                _
              $region172: #{lstm_decoder_attention.2} parent=169 // loop_header
                %s595 = sphi 0, %s599
                %p596 = scmp.ge.s32.totalorder %s595, 1
                %s600 = sphi %s11, %s11
                %s601 = sphi [#allocation9], [#allocation9]
              $region173: #{lstm_decoder_attention.2} parent=169 // loop_header_branch
                %598 = sbr.rel (%p596) target = $region177
              $region174: #{lstm_decoder_attention.2} parent=169 // loop_body
                %v602 = vld [vmem:[%s600] sm:%s593]
                %603 = vst [vmem:[%s601] sm:%s593] %v602
              $region175: #{lstm_decoder_attention.2} parent=169 // loop_footer
                %s599 = sadd.s32 1, %s595
              $region176: #{lstm_decoder_attention.2} parent=169 // loop_footer_branch
                %594 = sbr.rel target = $region172
              $region177: #{lstm_decoder_attention.2} parent=169 // loop_exit
                _
            $region170: #{lstm_decoder_attention.2} parent=154 // pred_fallthru
              _
          $region155: #{lstm_decoder_attention.2} parent=93 // pred_fallthru
            _
          // Predicated region
          $region156: #{lstm_decoder_attention.2} parent=93 // pred_check
            _
          $region157: #{lstm_decoder_attention.2} parent=93 // pred_check_branch
            %577 = sbr.rel (0) target = $region159
          $region158: #{lstm_decoder_attention.2} parent=93 // pred_region
            %s579 = ssub.s32 2, 1
            loop: start=0, step=1, limit=1
            $region160: #{lstm_decoder_attention.2} parent=158 // loop_pre_header
              _
            $region161: #{lstm_decoder_attention.2} parent=158 // loop_header
              %s581 = sphi 0, %s585
              %p582 = scmp.ge.s32.totalorder %s581, 1
              %s586 = sphi %s11, %s11
              %s587 = sphi [#allocation9], [#allocation9]
            $region162: #{lstm_decoder_attention.2} parent=158 // loop_header_branch
              %584 = sbr.rel (%p582) target = $region166
            $region163: #{lstm_decoder_attention.2} parent=158 // loop_body
              %v588 = vld [vmem:[%s586] sm:%s579]
              %589 = vst [vmem:[%s587] sm:%s579] %v588
            $region164: #{lstm_decoder_attention.2} parent=158 // loop_footer
              %s585 = sadd.s32 1, %s581
            $region165: #{lstm_decoder_attention.2} parent=158 // loop_footer_branch
              %580 = sbr.rel target = $region161
            $region166: #{lstm_decoder_attention.2} parent=158 // loop_exit
              _
          $region159: #{lstm_decoder_attention.2} parent=93 // pred_fallthru
            _
          // Predicated region
          $region178: #{lstm_decoder_attention.2} parent=93 // pred_check
            _
          $region179: #{lstm_decoder_attention.2} parent=93 // pred_check_branch
            %606 = sbr.rel (0) target = $region181
          $region180: #{lstm_decoder_attention.2} parent=93 // pred_region
            %607 = vsyncadd %s573, 16
          $region181: #{lstm_decoder_attention.2} parent=93 // pred_fallthru
            _
        $region94: #{lstm_decoder_attention.2} parent=85 // pred_fallthru
          _
        %v608 = vld [vmem:[%s386] sm:$0xff]
        %v609 = vld [vmem:[%s386 + $0x8] sm:$0xff]
        %v610 = vld [vmem:[%s5] sm:$0xff]
        %v611 = vld [vmem:[%s5 + $0x8] sm:$0xff]
        %v612 = vld [vmem:[%s5 + $0x10] sm:$0xff]
        %v613 = vld [vmem:[%s5 + $0x18] sm:$0xff]
        %v614 = vld [vmem:[%s5 + $0x20] sm:$0xff]
        %v615 = vld [vmem:[%s5 + $0x28] sm:$0xff]
        %v616 = vld [vmem:[%s5 + $0x30] sm:$0xff]
        %v617 = vld [vmem:[%s5 + $0x38] sm:$0xff]
        %vm618 = vcmask 523264
        %v620 = vsel %vm618, %v608, 0
        %v623 = vsel %vm618, %v609, 0
        %625 = vmatpush.msra.mxu0 0.0
        %626 = vmatpush.msra.mxu0 0.0
        %627 = vmatpush.msra.mxu0 0.0
        %628 = vmatpush.msra.mxu0 0.0
        %629 = vmatpush.msra.mxu0 0.0
        %630 = vmatpush.msra.mxu0 0.0
        %631 = vmatpush.msra.mxu0 0.0
        %632 = vmatpush.msra.mxu0 0.0
        %633 = vmatpush.msra.mxu0 %v617
        %634 = vmatpush.msra.mxu0 %v616
        %635 = vmatpush.msra.mxu0 %v615
        %636 = vmatpush.msra.mxu0 %v614
        %637 = vmatpush.msra.mxu0 %v613
        %638 = vmatpush.msra.mxu0 %v612
        %639 = vmatpush.msra.mxu0 %v611
        %640 = vmatpush.msra.mxu0 %v610
        %641 = vmatmul.f32.gmra.mxu0 %v620
        %v642 = vpop.f32.mrf.mxu0
        %v643 = vadd.f32 0.0, %v642
        %644 = vmatmul.f32.gmra.mxu0 %v623
        %v645 = vpop.f32.mrf.mxu0
        %v646 = vadd.f32 0.0, %v645
        %647 = vdwg.mxu0
        %v648 = vld [vmem:[#allocation2] sm:$0x3]
        %v650 = vrot.slane %v648, 1
        %v651 = vperm.slane %v648, 0
        %v652 = vperm.slane %v650, 0
        %v655 = vadd.f32 %v643, %v651
        %v656 = vadd.f32 %v646, %v652
        %v657 = vmax.f32 %v655, 0.0
        %v658 = vmax.f32 %v656, 0.0
        %v659 = vld [vmem:[%s7] sm:$0x1]
        %v661 = vperm.slane %v659, 0
        %v663 = vmul.f32 %v657, %v661
        %v664 = vmul.f32 %v658, %v661
        %vm665 = vcmask 261120
        %v666 = vsel %vm665, %v663, 0.0
        %667 = vadd.xlane.f32.xlu0 %v666
        %v668 = vpop.xlane.xlu0 %667
        %v669 = vsel %vm665, %v664, 0.0
        %670 = vadd.xlane.f32.xlu0 %v669
        %v671 = vpop.xlane.xlu0 %670
        %s672 = smul.u32 %s31, 8
        %v673 = vlaneseq
        %v674 = vand.u32 %v673, 127
        %v675 = vstv %s672
        %v676 = vadd.s32 %v675, %v674
        %vm677 = vcmp.lt.s32.totalorder %v676, 16
        %v680 = vperm.slane %v668, %v674
        %v681 = vperm.slane %v671, %v674
        %vm682 = vcmask 1041409
        %v683 = vsel %vm682, %v681, %v680
        %v685 = vsel %vm677, %v683, -inf
        %v686 = vld [vmem:[#allocation3] sm:$0x3]
        %vm687 = vcmask 58368
        %v688 = vsel %vm687, %v685, -inf
        %689 = vmax.xlane.f32.xlu0 %v688
        %v690 = vpop.xlane.xlu0 %689
        %v691 = vmax.f32 %v686, %v690
        %v692 = vsub.f32 %v686, %v691
        %v693 = vmul.f32 %v692, 1.442695
        %v694 = vpow.pop %v693
        %696 = vset.pattern.permute.xlu0 0
        %697 = vperm.xlu0 %696, %v691
        %v698 = vpop.permute.xlu0 %697
        %v700 = vsub.f32 %v685, %v698
        %v701 = vmul.f32 %v700, 1.442695
        %v702 = vpow.pop %v701
        %v703 = vld [vmem:[#allocation4] sm:$0x3]
        %v704 = vmul.f32 %v694, %v703
        %v705 = vsel %vm687, %v702, 0.0
        %706 = vadd.xlane.f32.xlu0 %v705
        %v707 = vpop.xlane.xlu0 %706
        %v708 = vadd.f32 %v704, %v707
        %vm709 = vcmask 1024
        %710 = vst.msk [vmem:[#allocation4] sm:$0x3] %vm709, %v708
        %v711 = vld [vmem:[#allocation5] sm:$0x3]
        %713 = vset.pattern.permute.xlu0 0
        %714 = vperm.xlu0 %713, %v694
        %v715 = vpop.permute.xlu0 %714
        %v717 = vmul.f32 %v715, %v711
        %v718 = vperm.slane %v702, 0
        %v719 = vlaneseq
        %v720 = vshrl.u32 %v719, 7
        %722 = vset.pattern.permute.xlu0 %v720
        %723 = vperm.xlu0 %722, %v718
        %v724 = vpop.permute.xlu0 %723
        %v725 = vperm.slane %v702, 1
        %v726 = vlaneseq
        %v727 = vshrl.u32 %v726, 7
        %729 = vset.pattern.permute.xlu0 %v727
        %730 = vperm.xlu0 %729, %v725
        %v731 = vpop.permute.xlu0 %730
        %v732 = vmul.f32 %v724, %v608
        %v733 = vmul.f32 %v731, %v609
        %v734 = vsel %vm618, %v732, 0.0
        %v735 = vrot.slane %v734, 4
        %v736 = vadd.f32 %v734, %v735
        %v737 = vrot.slane %v736, 2
        %v738 = vadd.f32 %v736, %v737
        %v739 = vrot.slane %v738, 1
        %v740 = vadd.f32 %v738, %v739
        %v741 = vsel %vm618, %v733, 0.0
        %v742 = vrot.slane %v741, 4
        %v743 = vadd.f32 %v741, %v742
        %v744 = vrot.slane %v743, 2
        %v745 = vadd.f32 %v743, %v744
        %v746 = vrot.slane %v745, 1
        %v747 = vadd.f32 %v745, %v746
        %v750 = vsel %vm682, %v747, %v740
        %v752 = vadd.f32 %v717, %v750
        %vm753 = vcmask 517120
        %754 = vst.msk [vmem:[#allocation5] sm:$0x3] %vm753, %v752
        %755 = vst.msk [vmem:[#allocation3] sm:$0x3] %vm709, %v691
        %p756 = scmp.eq.s32.totalorder %s31, 1
        // Predicated region
        $region182: #{lstm_decoder_attention.2} parent=85 // pred_check
          %p757 = pneg %p756
        $region183: #{lstm_decoder_attention.2} parent=85 // pred_check_branch
          %759 = sbr.rel (%p757) target = $region185
        $region184: #{lstm_decoder_attention.2} parent=85 // pred_region
          %s760 = smul.u32 64, 1
          %s761 = sshll.u32 %s760, 4
          %762 = dma.done [#allocation10], %s761
          %s763 = scalar_lea.sflag [#allocation10], 1
          %s764 = smul.u32 32, 1
          %s765 = sshll.u32 %s764, 4
          %766 = dma.done %s763, %s765
          %s767 = scalar_lea.sflag [#allocation10], 2
          %s768 = sshll.u32 %s764, 4
          %769 = dma.done %s767, %s768
          %s770 = scalar_lea.sflag [#allocation10], 3
          %s771 = smul.u32 1, 1
          %s772 = sshll.u32 %s771, 4
          %773 = dma.done %s770, %s772
          %v774 = vld [vmem:[#allocation4] sm:$0x3]
          %v775 = vrcp.pop %v774
          %v776 = vld [vmem:[#allocation5] sm:$0x3]
          %778 = vset.pattern.permute.xlu0 0
          %779 = vperm.xlu0 %778, %v775
          %v780 = vpop.permute.xlu0 %779
          %v782 = vmul.f32 %v776, %v780
          %v783 = vld [vmem:[#allocation6] sm:$0xff]
          %v784 = vld [vmem:[#allocation6 + $0x8] sm:$0xff]
          %v785 = vld [vmem:[#allocation6 + $0x10] sm:$0xff]
          %v786 = vld [vmem:[#allocation6 + $0x18] sm:$0xff]
          %v787 = vld [vmem:[#allocation6 + $0x20] sm:$0xff]
          %v788 = vld [vmem:[#allocation6 + $0x28] sm:$0xff]
          %v789 = vld [vmem:[#allocation6 + $0x30] sm:$0xff]
          %v790 = vld [vmem:[#allocation6 + $0x38] sm:$0xff]
          %v791 = vld [vmem:[%s433] sm:$0x3]
          %v792 = vld [vmem:[#allocation7] sm:$0xff]
          %v793 = vld [vmem:[#allocation7 + $0x8] sm:$0xff]
          %v794 = vld [vmem:[#allocation7 + $0x10] sm:$0xff]
          %v795 = vld [vmem:[#allocation7 + $0x18] sm:$0xff]
          %v797 = vsel %vm665, %v791, 0
          %799 = vmatpush.msra.mxu0 0.0
          %800 = vmatpush.msra.mxu0 0.0
          %801 = vmatpush.msra.mxu0 0.0
          %802 = vmatpush.msra.mxu0 0.0
          %803 = vmatpush.msra.mxu0 0.0
          %804 = vmatpush.msra.mxu0 0.0
          %805 = vmatpush.msra.mxu0 0.0
          %806 = vmatpush.msra.mxu0 0.0
          %807 = vmatpush.msra.mxu0 0.0
          %808 = vmatpush.msra.mxu0 0.0
          %809 = vmatpush.msra.mxu0 0.0
          %810 = vmatpush.msra.mxu0 0.0
          %811 = vmatpush.msra.mxu0 %v795
          %812 = vmatpush.msra.mxu0 %v794
          %813 = vmatpush.msra.mxu0 %v793
          %814 = vmatpush.msra.mxu0 %v792
          %815 = vmatmul.f32.gmra.mxu0 %v797
          %v816 = vpop.f32.mrf.mxu0
          %v817 = vadd.f32 0.0, %v816
          %818 = vdwg.mxu0
          %v820 = vsel %vm618, %v782, 0
          %822 = vmatpush.msra.mxu0 0.0
          %823 = vmatpush.msra.mxu0 0.0
          %824 = vmatpush.msra.mxu0 0.0
          %825 = vmatpush.msra.mxu0 0.0
          %826 = vmatpush.msra.mxu0 0.0
          %827 = vmatpush.msra.mxu0 0.0
          %828 = vmatpush.msra.mxu0 0.0
          %829 = vmatpush.msra.mxu0 0.0
          %830 = vmatpush.msra.mxu0 %v790
          %831 = vmatpush.msra.mxu0 %v789
          %832 = vmatpush.msra.mxu0 %v788
          %833 = vmatpush.msra.mxu0 %v787
          %834 = vmatpush.msra.mxu0 %v786
          %835 = vmatpush.msra.mxu0 %v785
          %836 = vmatpush.msra.mxu0 %v784
          %837 = vmatpush.msra.mxu0 %v783
          %838 = vmatmul.f32.gmra.mxu0 %v820
          %v839 = vpop.f32.mrf.mxu0
          %v840 = vadd.f32 %v817, %v839
          %841 = vdwg.mxu0
          %v842 = vld [vmem:[%s437] sm:$0x3]
          %v843 = vld [vmem:[#allocation8] sm:$0xff]
          %v844 = vld [vmem:[#allocation8 + $0x8] sm:$0xff]
          %v845 = vld [vmem:[#allocation8 + $0x10] sm:$0xff]
          %v846 = vld [vmem:[#allocation8 + $0x18] sm:$0xff]
          %v848 = vsel %vm665, %v842, 0
          %850 = vmatpush.msra.mxu0 0.0
          %851 = vmatpush.msra.mxu0 0.0
          %852 = vmatpush.msra.mxu0 0.0
          %853 = vmatpush.msra.mxu0 0.0
          %854 = vmatpush.msra.mxu0 0.0
          %855 = vmatpush.msra.mxu0 0.0
          %856 = vmatpush.msra.mxu0 0.0
          %857 = vmatpush.msra.mxu0 0.0
          %858 = vmatpush.msra.mxu0 0.0
          %859 = vmatpush.msra.mxu0 0.0
          %860 = vmatpush.msra.mxu0 0.0
          %861 = vmatpush.msra.mxu0 0.0
          %862 = vmatpush.msra.mxu0 %v846
          %863 = vmatpush.msra.mxu0 %v845
          %864 = vmatpush.msra.mxu0 %v844
          %865 = vmatpush.msra.mxu0 %v843
          %866 = vmatmul.f32.gmra.mxu0 %v848
          %v867 = vpop.f32.mrf.mxu0
          %v868 = vadd.f32 0.0, %v867
          %869 = vdwg.mxu0
          %v870 = vadd.f32 %v840, %v868
          %v871 = vld [vmem:[#allocation9] sm:$0x1]
          %v873 = vperm.slane %v871, 0
          %v875 = vadd.f32 %v870, %v873
          %v876 = vxor.u32 %v875, 2147483648
          %v877 = vmul.f32 %v876, 1.442695
          %v878 = vpow.pop %v877
          %v879 = vadd.f32 %v878, 1.0
          %v880 = vrcp.pop %v879
          %v881 = vmul.f32 %v879, %v880
          %v882 = vsub.f32 1.0, %v881
          %v883 = vmul.f32 %v880, %v882
          %v884 = vadd.f32 %v880, %v883
          %vm885 = vweird.f32 %v879
          %vm886 = vweird.f32 %v880
          %vm887 = vmor %vm885, %vm886
          %v888 = vsel %vm887, %v880, %v884
          %v889 = vand.u32 2147483647, %v879
          %vm890 = vcmp.eq.f32.partialorder %v889, 8.507059e+37
          %v891 = vand.u32 %v879, 2147483648
          %v892 = vor.u32 1.1754944e-38, %v891
          %v893 = vsel %vm890, %v892, %v888
          %v894 = vmul.f32 1.0, %v893
          %v895 = vtanh.pop %v875
          %v896 = vld [vmem:[%s441] sm:$0x3]
          %898 = vrot.lane.b32.xlu0 %v896, 32
          %v899 = vpop.permute.xlu0 %898
          %v901 = vmul.f32 %v894, %v899
          %903 = vrot.lane.b32.xlu0 %v895, 64
          %v904 = vpop.permute.xlu0 %903
          %v906 = vmul.f32 %v894, %v904
          %908 = vrot.lane.b32.xlu0 %v906, 32
          %v909 = vpop.permute.xlu0 %908
          %v911 = vadd.f32 %v901, %v909
          %v912 = vtanh.pop %v911
          %914 = vrot.lane.b32.xlu0 %v912, 64
          %v915 = vpop.permute.xlu0 %914
          %v917 = vmul.f32 %v894, %v915
          %919 = vrot.lane.b32.xlu0 %v917, 32
          %v920 = vpop.permute.xlu0 %919
          %vm922 = vcmask 254976
          %923 = vst.msk [vmem:[%s446] sm:$0x3] %vm922, %v920
          %925 = vrot.lane.b32.xlu0 %v911, 96
          %v926 = vpop.permute.xlu0 %925
          %928 = vst.msk [vmem:[#allocation12] sm:$0x3] %vm922, %v926
        $region185: #{lstm_decoder_attention.2} parent=85 // pred_fallthru
          _
        %p929 = scmp.lt.s32.totalorder %s30, 0
        %s930 = scalar_select %p929, %s30, 0
        %s931 = smul.addr %s930, 2
        %s932 = scalar_lea.vmem %s12, %s931
        // Predicated region
        $region186: #{lstm_decoder_attention.2} parent=85 // pred_check
          %p933 = pneg %p246
        $region187: #{lstm_decoder_attention.2} parent=85 // pred_check_branch
          %935 = sbr.rel (%p933) target = $region189
        $region188: #{lstm_decoder_attention.2} parent=85 // pred_region
          _
        $region189: #{lstm_decoder_attention.2} parent=85 // pred_fallthru
          _
        // Predicated region
        $region190: #{lstm_decoder_attention.2} parent=85 // pred_check
          %p936 = pneg %p272
        $region191: #{lstm_decoder_attention.2} parent=85 // pred_check_branch
          %938 = sbr.rel (%p936) target = $region193
        $region192: #{lstm_decoder_attention.2} parent=85 // pred_region
          %940 = vsyncadd [#allocation13], 0
          %s941 = smul.addr %s30, 2
          %s942 = scalar_lea.hbm %s13, %s941
          %s944 = sshll.u32 [#allocation12], 4
          %s945 = int_to_ptr.vmem [resolvable:$true] %s944
          %s946 = sshll.u32 %s942, 4
          %s947 = int_to_ptr.hbm [resolvable:$true] %s946
          %949 = dma.vmem_to_hbm [thread:$0]  %s945, 32, %s947, [#allocation13]
        $region193: #{lstm_decoder_attention.2} parent=85 // pred_fallthru
          _
        // Predicated region
        $region194: #{lstm_decoder_attention.2} parent=85 // pred_check
          %p950 = pneg %p246
        $region195: #{lstm_decoder_attention.2} parent=85 // pred_check_branch
          %952 = sbr.rel (%p950) target = $region197
        $region196: #{lstm_decoder_attention.2} parent=85 // pred_region
          %p953 = scmp.lt.s32.totalorder %s30, 0
          %s954 = scalar_select %p953, %s30, 0
          %s955 = smul.addr %s954, 2
          %s956 = scalar_lea.vmem %s12, %s955
        $region197: #{lstm_decoder_attention.2} parent=85 // pred_fallthru
          _
        // Predicated region
        $region198: #{lstm_decoder_attention.2} parent=85 // pred_check
          %p957 = pneg %p272
        $region199: #{lstm_decoder_attention.2} parent=85 // pred_check_branch
          %959 = sbr.rel (%p957) target = $region201
        $region200: #{lstm_decoder_attention.2} parent=85 // pred_region
          %961 = dma.done [#allocation13], 32
        $region201: #{lstm_decoder_attention.2} parent=85 // pred_fallthru
          _
      $region86: #{lstm_decoder_attention.2} parent=5 // pred_fallthru
        _
      %p962 = scmp.le.s32.totalorder 2, %s21
      // Predicated region
      $region202: #{lstm_decoder_attention.2} parent=5 // pred_check
        %p963 = pneg %p962
      $region203: #{lstm_decoder_attention.2} parent=5 // pred_check_branch
        %965 = sbr.rel (%p963) target = $region205
      $region204: #{lstm_decoder_attention.2} parent=5 // pred_region
        %s966 = ssub.s32 %s21, 2
      $region205: #{lstm_decoder_attention.2} parent=5 // pred_fallthru
        _
    $region6: #{lstm_decoder_attention.2} parent=1 // loop_footer
      %s25 = sadd.s32 1, %s21
    $region7: #{lstm_decoder_attention.2} parent=1 // loop_footer_branch
      %20 = sbr.rel target = $region3
    $region8: #{lstm_decoder_attention.2} parent=1 // loop_exit
      _
    %967 = vsyncpa [#allocation13], 1
    %s968 = scalar_lea.sflag [#allocation13], 1
    %969 = vsyncpa %s968, 1
  %970 = vsyncmov [#allocation10]
  %s971 = vpop.sfrf %970
  %p972 = scmp.eq.s32.totalorder %s971, 0
  %p973 = pneg %p972
  %975 = shalt.err (%p973)
  %s976 = scalar_lea.sflag [#allocation10], 1
  %977 = vsyncmov %s976
  %s978 = vpop.sfrf %977
  %p979 = scmp.eq.s32.totalorder %s978, 0
  %p980 = pneg %p979
  %982 = shalt.err (%p980)
  %s983 = scalar_lea.sflag [#allocation10], 2
  %984 = vsyncmov %s983
  %s985 = vpop.sfrf %984
  %p986 = scmp.eq.s32.totalorder %s985, 0
  %p987 = pneg %p986
  %989 = shalt.err (%p987)
  %s990 = scalar_lea.sflag [#allocation10], 3
  %991 = vsyncmov %s990
  %s992 = vpop.sfrf %991
  %p993 = scmp.eq.s32.totalorder %s992, 0
  %p994 = pneg %p993
  %996 = shalt.err (%p994)

</llo_original>
